<compile_context>
chip_gen: v7x
topology: tpu7x:2x2x1
jax: 0.10.0
libtpu: 0.0.40
codegen_flags: <defaults>
</compile_context>

<pallas_src>
import functools

import jax
import jax.numpy as jnp
from jax.experimental import pallas as pl
from jax.experimental.pallas import tpu as pltpu

LANE = 128


# ---------------------------------------------------------------------------
# helpers
# ---------------------------------------------------------------------------
def _round_up(v, m):
    return ((v + m - 1) // m) * m


def _pad2d(x, rows, cols):
    return jnp.pad(x, ((0, rows - x.shape[0]), (0, cols - x.shape[1])))


def _pick_tile(n):
    """Largest tile in {512, 256, 128} dividing n (n is a multiple of 128)."""
    for t in (512, 256, 128):
        if n % t == 0:
            return t
    return n


# ---------------------------------------------------------------------------
# Pallas kernel: one SAGEConv layer (tiled over rows x neighbor reduction)
# ---------------------------------------------------------------------------
def _sage_layer_kernel(a_ref, xn_ref, xr_ref, wl_ref, wr_ref, b_ref, o_ref,
                       acc_ref, *, apply_relu):
    """
    a_ref:  (tm, tk)  bf16 tile of the mean-normalized adjacency
    xn_ref: (tk, F)   bf16 neighbor feature rows (reduction slab)
    xr_ref: (tm, F)   bf16 root feature rows (same rows as the output tile)
    wl_ref: (F, H)    bf16 lin_l weight (applied to aggregated features)
    wr_ref: (F, H)    bf16 lin_r weight (applied to root features)
    b_ref:  (1, H)    f32 bias of lin_l
    o_ref:  (tm, H)   bf16 layer output tile
    acc_ref:(tm, F)   f32 VMEM accumulator for the mean aggregation
    """
    k = pl.program_id(1)

    @pl.when(k == 0)
    def _():
        acc_ref[...] = jnp.zeros_like(acc_ref)

    # Partial mean-aggregation: accumulate A[i, k-slab] @ X[k-slab] in f32.
    acc_ref[...] += jnp.dot(a_ref[...], xn_ref[...],
                            preferred_element_type=jnp.float32)

    @pl.when(k == pl.num_programs(1) - 1)
    def _():
        # Two MXU passes (same FLOPs as a fused pass, no concat copy).
        h = jnp.dot(acc_ref[...].astype(wl_ref.dtype), wl_ref[...],
                    preferred_element_type=jnp.float32)
        h = h + jnp.dot(xr_ref[...], wr_ref[...],
                        preferred_element_type=jnp.float32)
        h = h + b_ref[...]
        if apply_relu:
            h = jnp.maximum(h, 0.0)
        o_ref[...] = h.astype(o_ref.dtype)


def sage_layer(a, x, wl, wr, b, *, apply_relu):
    """relu?( (A@X)@Wl + X@Wr + b ) with A:(N,N) bf16, X:(N,F) bf16."""
    n = a.shape[0]
    f = x.shape[1]
    h = wl.shape[1]
    assert a.shape == (n, n) and x.shape[0] == n
    assert wl.shape == (f, h) and wr.shape == (f, h) and b.shape == (1, h)

    tm = _pick_tile(n)
    tk = _pick_tile(n)
    grid = (n // tm, n // tk)

    flops = 2 * n * n * f + 2 * 2 * n * f * h
    bytes_accessed = (a.size * a.dtype.itemsize
                      + 2 * x.size * x.dtype.itemsize
                      + wl.size * wl.dtype.itemsize
                      + wr.size * wr.dtype.itemsize
                      + b.size * b.dtype.itemsize
                      + n * h * 2)

    kernel = functools.partial(_sage_layer_kernel, apply_relu=apply_relu)
    return pl.pallas_call(
        kernel,
        out_shape=jax.ShapeDtypeStruct((n, h), jnp.bfloat16),
        grid=grid,
        in_specs=[
            pl.BlockSpec((tm, tk), lambda i, k: (i, k)),   # A tile
            pl.BlockSpec((tk, f), lambda i, k: (k, 0)),    # X neighbor rows
            pl.BlockSpec((tm, f), lambda i, k: (i, 0)),    # X root rows
            pl.BlockSpec((f, h), lambda i, k: (0, 0)),     # Wl
            pl.BlockSpec((f, h), lambda i, k: (0, 0)),     # Wr
            pl.BlockSpec((1, h), lambda i, k: (0, 0)),     # bias
        ],
        out_specs=pl.BlockSpec((tm, h), lambda i, k: (i, 0)),
        scratch_shapes=[pltpu.VMEM((tm, f), jnp.float32)],
        compiler_params=pltpu.CompilerParams(
            dimension_semantics=("parallel", "arbitrary"),
            vmem_limit_bytes=48 * 1024 * 1024,   # headroom on v7x (64 MiB/TC)
        ),
        cost_estimate=pl.CostEstimate(
            flops=flops, transcendentals=0, bytes_accessed=bytes_accessed),
    )(a, x, x, wl, wr, b)


# ---------------------------------------------------------------------------
# model glue (parameter init / padding / forward)
# ---------------------------------------------------------------------------
def build_mean_adjacency(edge_index, num_nodes):
    """Dense mean-aggregation matrix: A[i, j] = 1/deg(i) for edge j -> i."""
    src, dst = edge_index
    a = jnp.zeros((num_nodes, num_nodes), jnp.float32)
    a = a.at[dst, src].add(1.0)
    deg = jnp.sum(a, axis=1, keepdims=True)
    return a / jnp.maximum(deg, 1.0)


def init_sage_params(key, in_channels, hidden_channels, out_channels,
                     num_layers):
    """Per-layer Wl (lin_l.weight.T), Wr (lin_r.weight.T), b (lin_l.bias)."""
    glorot = jax.nn.initializers.glorot_uniform()
    dims = [in_channels] + [hidden_channels] * (num_layers - 1) + [out_channels]
    params = []
    for i in range(num_layers):
        key, k1, k2 = jax.random.split(key, 3)
        params.append({
            "wl": glorot(k1, (dims[i], dims[i + 1]), jnp.float32),
            "wr": glorot(k2, (dims[i], dims[i + 1]), jnp.float32),
            "b": jnp.zeros((dims[i + 1],), jnp.float32),
        })
    return params


def pad_params(params):
    """Zero-pad feature dims to multiples of 128; cast weights to bf16."""
    padded = []
    for p in params:
        fin, fout = p["wl"].shape
        fin_p = _round_up(fin, LANE)
        fout_p = _round_up(fout, LANE)
        padded.append({
            "wl": _pad2d(p["wl"], fin_p, fout_p).astype(jnp.bfloat16),
            "wr": _pad2d(p["wr"], fin_p, fout_p).astype(jnp.bfloat16),
            "b": _pad2d(p["b"][None, :], 1, fout_p),   # f32 bias, (1, Hpad)
        })
    return padded


@jax.jit
def sage_forward(padded_params, x_pad, a_pad):
    """SAGE forward: ReLU after every conv except the last; eval-mode dropout
    is identity.  norm_type='none' path (default).
    """
    # TODO(synk): training-mode (cold-)dropout and batch/layer norm variants
    # are not implemented (eval / norm_type='none' only).
    h = x_pad
    n_layers = len(padded_params)
    for i, p in enumerate(padded_params):
        h = sage_layer(a_pad, h, p["wl"], p["wr"], p["b"],
                       apply_relu=(i < n_layers - 1))
    return h


# ---------------------------------------------------------------------------
if __name__ == "__main__":
    key = jax.random.PRNGKey(0)

    num_nodes = 256
    in_channels = 32
    hidden_channels = 64
    out_channels = 16
    num_layers = 3
    num_edges = 1024

    key, kx, ks, kd, kp = jax.random.split(key, 5)
    x = jax.random.normal(kx, (num_nodes, in_channels), jnp.float32)
    src = jax.random.randint(ks, (num_edges,), 0, num_nodes)
    dst = jax.random.randint(kd, (num_edges,), 0, num_nodes)
    edge_index = jnp.stack([src, dst], axis=0)

    a_mean = build_mean_adjacency(edge_index, num_nodes)

    params = init_sage_params(kp, in_channels, hidden_channels, out_channels,
                              num_layers)
    padded = pad_params(params)

    # Pad nodes and input features to lane-friendly multiples of 128.
    n_pad = _round_up(num_nodes, LANE)
    f_pad = _round_up(in_channels, LANE)
    x_pad = _pad2d(x, n_pad, f_pad).astype(jnp.bfloat16)
    a_pad = _pad2d(a_mean, n_pad, n_pad).astype(jnp.bfloat16)

    out_pad = sage_forward(padded, x_pad, a_pad)
    out = out_pad[:num_nodes, :out_channels].astype(jnp.float32)
    jax.block_until_ready(out)

    assert out.shape == (num_nodes, out_channels)
    assert bool(jnp.all(jnp.isfinite(out)))
    print("KERNEL_OK")
</pallas_src>

<mosaic_0001>
module attributes {stable_mosaic.version = 11 : i64} {
  func.func @_sage_layer_kernel(%arg0: i32, %arg1: i32, %arg2: memref<256x256xbf16, #tpu.memory_space<vmem>>, %arg3: memref<256x128xbf16, #tpu.memory_space<vmem>>, %arg4: memref<256x128xbf16, #tpu.memory_space<vmem>>, %arg5: memref<128x128xbf16, #tpu.memory_space<vmem>>, %arg6: memref<128x128xbf16, #tpu.memory_space<vmem>>, %arg7: memref<1x128xf32, #tpu.memory_space<vmem>>, %arg8: memref<256x128xbf16, #tpu.memory_space<vmem>>, %arg9: memref<256x128xf32, #tpu.memory_space<vmem>>) attributes {dimension_semantics = [#tpu.dimension_semantics<parallel>, #tpu.dimension_semantics<arbitrary>], iteration_bounds = array<i64: 1, 1>, scalar_prefetch = 0 : i64, scratch_operands = 1 : i64, tpu.core_type = #tpu.core_type<tc>, window_params = [{transform_indices = @transform_0, window_bounds = array<i64: 256, 256>}, {transform_indices = @transform_1, window_bounds = array<i64: 256, 128>}, {transform_indices = @transform_2, window_bounds = array<i64: 256, 128>}, {pipeline_mode = #tpu.pipeline_mode<synchronous>, transform_indices = @transform_3, window_bounds = array<i64: 128, 128>}, {pipeline_mode = #tpu.pipeline_mode<synchronous>, transform_indices = @transform_4, window_bounds = array<i64: 128, 128>}, {pipeline_mode = #tpu.pipeline_mode<synchronous>, transform_indices = @transform_5, window_bounds = array<i64: 1, 128>}, {transform_indices = @transform_6, window_bounds = array<i64: 256, 128>}]} {
    %c0_i32 = arith.constant 0 : i32
    %0 = arith.cmpi eq, %arg1, %c0_i32 : i32
    %1 = arith.extui %0 : i1 to i32
    %c0_i32_0 = arith.constant 0 : i32
    %2 = arith.cmpi ne, %1, %c0_i32_0 : i32
    scf.if %2 {
      %cst_10 = arith.constant 0.000000e+00 : f32
      %12 = vector.broadcast %cst_10 : f32 to vector<256x128xf32>
      %c0_11 = arith.constant 0 : index
      %c0_12 = arith.constant 0 : index
      %13 = vector.load %arg9[%c0_11, %c0_12] : memref<256x128xf32, #tpu.memory_space<vmem>>, vector<256x128xf32>
      tpu.vector_store %arg9[%c0_11, %c0_12], %12 {strides = array<i32>} : memref<256x128xf32, #tpu.memory_space<vmem>>, vector<256x128xf32>,
    } else {
    }
    %c0 = arith.constant 0 : index
    %c0_1 = arith.constant 0 : index
    %3 = vector.load %arg9[%c0, %c0_1] : memref<256x128xf32, #tpu.memory_space<vmem>>, vector<256x128xf32>
    %c0_2 = arith.constant 0 : index
    %c0_3 = arith.constant 0 : index
    %4 = vector.load %arg2[%c0_2, %c0_3] : memref<256x256xbf16, #tpu.memory_space<vmem>>, vector<256x256xbf16>
    %c0_4 = arith.constant 0 : index
    %c0_5 = arith.constant 0 : index
    %5 = vector.load %arg3[%c0_4, %c0_5] : memref<256x128xbf16, #tpu.memory_space<vmem>>, vector<256x128xbf16>
    %cst = arith.constant dense<0.000000e+00> : vector<256x128xf32>
    %6 = tpu.matmul %4, %5, %cst {dimension_numbers = #tpu.dot_dimension_numbers<[1], [0], [0], [1], [0, 0, 1, 1], [], []>} : vector<256x256xbf16>, vector<256x128xbf16>, vector<256x128xf32> -> vector<256x128xf32>
    %7 = arith.addf %3, %6 : vector<256x128xf32>
    %c0_6 = arith.constant 0 : index
    %c0_7 = arith.constant 0 : index
    %8 = vector.load %arg9[%c0_6, %c0_7] : memref<256x128xf32, #tpu.memory_space<vmem>>, vector<256x128xf32>
    tpu.vector_store %arg9[%c0_6, %c0_7], %7 {strides = array<i32>} : memref<256x128xf32, #tpu.memory_space<vmem>>, vector<256x128xf32>,
    %c0_i32_8 = arith.constant 0 : i32
    %9 = arith.cmpi eq, %arg1, %c0_i32_8 : i32
    %10 = arith.extui %9 : i1 to i32
    %c0_i32_9 = arith.constant 0 : i32
    %11 = arith.cmpi ne, %10, %c0_i32_9 : i32
    scf.if %11 {
      %c0_10 = arith.constant 0 : index
      %c0_11 = arith.constant 0 : index
      %12 = vector.load %arg9[%c0_10, %c0_11] : memref<256x128xf32, #tpu.memory_space<vmem>>, vector<256x128xf32>
      %13 = arith.truncf %12 : vector<256x128xf32> to vector<256x128xbf16>
      %c0_12 = arith.constant 0 : index
      %c0_13 = arith.constant 0 : index
      %14 = vector.load %arg5[%c0_12, %c0_13] : memref<128x128xbf16, #tpu.memory_space<vmem>>, vector<128x128xbf16>
      %cst_14 = arith.constant dense<0.000000e+00> : vector<256x128xf32>
      %15 = tpu.matmul %13, %14, %cst_14 {dimension_numbers = #tpu.dot_dimension_numbers<[1], [0], [0], [1], [0, 0, 1, 1], [], []>} : vector<256x128xbf16>, vector<128x128xbf16>, vector<256x128xf32> -> vector<256x128xf32>
      %c0_15 = arith.constant 0 : index
      %c0_16 = arith.constant 0 : index
      %16 = vector.load %arg4[%c0_15, %c0_16] : memref<256x128xbf16, #tpu.memory_space<vmem>>, vector<256x128xbf16>
      %c0_17 = arith.constant 0 : index
      %c0_18 = arith.constant 0 : index
      %17 = vector.load %arg6[%c0_17, %c0_18] : memref<128x128xbf16, #tpu.memory_space<vmem>>, vector<128x128xbf16>
      %cst_19 = arith.constant dense<0.000000e+00> : vector<256x128xf32>
      %18 = tpu.matmul %16, %17, %cst_19 {dimension_numbers = #tpu.dot_dimension_numbers<[1], [0], [0], [1], [0, 0, 1, 1], [], []>} : vector<256x128xbf16>, vector<128x128xbf16>, vector<256x128xf32> -> vector<256x128xf32>
      %19 = arith.addf %15, %18 : vector<256x128xf32>
      %c0_20 = arith.constant 0 : index
      %c0_21 = arith.constant 0 : index
      %20 = vector.load %arg7[%c0_20, %c0_21] : memref<1x128xf32, #tpu.memory_space<vmem>>, vector<1x128xf32>
      %21 = vector.broadcast %20 : vector<1x128xf32> to vector<256x128xf32>
      %22 = arith.addf %19, %21 : vector<256x128xf32>
      %23 = arith.truncf %22 : vector<256x128xf32> to vector<256x128xbf16>
      %c0_22 = arith.constant 0 : index
      %c0_23 = arith.constant 0 : index
      %24 = vector.load %arg8[%c0_22, %c0_23] : memref<256x128xbf16, #tpu.memory_space<vmem>>, vector<256x128xbf16>
      tpu.vector_store %arg8[%c0_22, %c0_23], %23 {strides = array<i32>} : memref<256x128xbf16, #tpu.memory_space<vmem>>, vector<256x128xbf16>,
    } else {
    }
    return
  }
  func.func @transform_0(%arg0: i32, %arg1: i32) -> (i32, i32) {
    %c0_i32 = arith.constant 0 : i32
    return %arg0, %arg1 : i32, i32
  }
  func.func @transform_1(%arg0: i32, %arg1: i32) -> (i32, i32) {
    %c0_i32 = arith.constant 0 : i32
    %c0_i32_0 = arith.constant 0 : i32
    return %arg1, %c0_i32 : i32, i32
  }
  func.func @transform_2(%arg0: i32, %arg1: i32) -> (i32, i32) {
    %c0_i32 = arith.constant 0 : i32
    %c0_i32_0 = arith.constant 0 : i32
    return %arg0, %c0_i32 : i32, i32
  }
  func.func @transform_3(%arg0: i32, %arg1: i32) -> (i32, i32) {
    %c0_i32 = arith.constant 0 : i32
    %c0_i32_0 = arith.constant 0 : i32
    %c0_i32_1 = arith.constant 0 : i32
    return %c0_i32, %c0_i32_0 : i32, i32
  }
  func.func @transform_4(%arg0: i32, %arg1: i32) -> (i32, i32) {
    %c0_i32 = arith.constant 0 : i32
    %c0_i32_0 = arith.constant 0 : i32
    %c0_i32_1 = arith.constant 0 : i32
    return %c0_i32, %c0_i32_0 : i32, i32
  }
  func.func @transform_5(%arg0: i32, %arg1: i32) -> (i32, i32) {
    %c0_i32 = arith.constant 0 : i32
    %c0_i32_0 = arith.constant 0 : i32
    %c0_i32_1 = arith.constant 0 : i32
    return %c0_i32, %c0_i32_0 : i32, i32
  }
  func.func @transform_6(%arg0: i32, %arg1: i32) -> (i32, i32) {
    %c0_i32 = arith.constant 0 : i32
    %c0_i32_0 = arith.constant 0 : i32
    return %arg0, %c0_i32 : i32, i32
  }
}

module attributes {stable_mosaic.version = 11 : i64} {
  func.func @_sage_layer_kernel(%arg0: i32, %arg1: i32, %arg2: memref<256x256xbf16, #tpu.memory_space<vmem>>, %arg3: memref<256x128xbf16, #tpu.memory_space<vmem>>, %arg4: memref<256x128xbf16, #tpu.memory_space<vmem>>, %arg5: memref<128x128xbf16, #tpu.memory_space<vmem>>, %arg6: memref<128x128xbf16, #tpu.memory_space<vmem>>, %arg7: memref<1x128xf32, #tpu.memory_space<vmem>>, %arg8: memref<256x128xbf16, #tpu.memory_space<vmem>>, %arg9: memref<256x128xf32, #tpu.memory_space<vmem>>) attributes {dimension_semantics = [#tpu.dimension_semantics<parallel>, #tpu.dimension_semantics<arbitrary>], iteration_bounds = array<i64: 1, 1>, scalar_prefetch = 0 : i64, scratch_operands = 1 : i64, tpu.core_type = #tpu.core_type<tc>, window_params = [{transform_indices = @transform_0, window_bounds = array<i64: 256, 256>}, {transform_indices = @transform_1, window_bounds = array<i64: 256, 128>}, {transform_indices = @transform_2, window_bounds = array<i64: 256, 128>}, {pipeline_mode = #tpu.pipeline_mode<synchronous>, transform_indices = @transform_3, window_bounds = array<i64: 128, 128>}, {pipeline_mode = #tpu.pipeline_mode<synchronous>, transform_indices = @transform_4, window_bounds = array<i64: 128, 128>}, {pipeline_mode = #tpu.pipeline_mode<synchronous>, transform_indices = @transform_5, window_bounds = array<i64: 1, 128>}, {transform_indices = @transform_6, window_bounds = array<i64: 256, 128>}]} {
    %c0_i32 = arith.constant 0 : i32
    %0 = arith.cmpi eq, %arg1, %c0_i32 : i32
    %1 = arith.extui %0 : i1 to i32
    %c0_i32_0 = arith.constant 0 : i32
    %2 = arith.cmpi ne, %1, %c0_i32_0 : i32
    scf.if %2 {
      %cst_10 = arith.constant 0.000000e+00 : f32
      %12 = vector.broadcast %cst_10 : f32 to vector<256x128xf32>
      %c0_11 = arith.constant 0 : index
      %c0_12 = arith.constant 0 : index
      %13 = vector.load %arg9[%c0_11, %c0_12] : memref<256x128xf32, #tpu.memory_space<vmem>>, vector<256x128xf32>
      tpu.vector_store %arg9[%c0_11, %c0_12], %12 {strides = array<i32>} : memref<256x128xf32, #tpu.memory_space<vmem>>, vector<256x128xf32>,
    } else {
    }
    %c0 = arith.constant 0 : index
    %c0_1 = arith.constant 0 : index
    %3 = vector.load %arg9[%c0, %c0_1] : memref<256x128xf32, #tpu.memory_space<vmem>>, vector<256x128xf32>
    %c0_2 = arith.constant 0 : index
    %c0_3 = arith.constant 0 : index
    %4 = vector.load %arg2[%c0_2, %c0_3] : memref<256x256xbf16, #tpu.memory_space<vmem>>, vector<256x256xbf16>
    %c0_4 = arith.constant 0 : index
    %c0_5 = arith.constant 0 : index
    %5 = vector.load %arg3[%c0_4, %c0_5] : memref<256x128xbf16, #tpu.memory_space<vmem>>, vector<256x128xbf16>
    %cst = arith.constant dense<0.000000e+00> : vector<256x128xf32>
    %6 = tpu.matmul %4, %5, %cst {dimension_numbers = #tpu.dot_dimension_numbers<[1], [0], [0], [1], [0, 0, 1, 1], [], []>} : vector<256x256xbf16>, vector<256x128xbf16>, vector<256x128xf32> -> vector<256x128xf32>
    %7 = arith.addf %3, %6 : vector<256x128xf32>
    %c0_6 = arith.constant 0 : index
    %c0_7 = arith.constant 0 : index
    %8 = vector.load %arg9[%c0_6, %c0_7] : memref<256x128xf32, #tpu.memory_space<vmem>>, vector<256x128xf32>
    tpu.vector_store %arg9[%c0_6, %c0_7], %7 {strides = array<i32>} : memref<256x128xf32, #tpu.memory_space<vmem>>, vector<256x128xf32>,
    %c0_i32_8 = arith.constant 0 : i32
    %9 = arith.cmpi eq, %arg1, %c0_i32_8 : i32
    %10 = arith.extui %9 : i1 to i32
    %c0_i32_9 = arith.constant 0 : i32
    %11 = arith.cmpi ne, %10, %c0_i32_9 : i32
    scf.if %11 {
      %c0_10 = arith.constant 0 : index
      %c0_11 = arith.constant 0 : index
      %12 = vector.load %arg9[%c0_10, %c0_11] : memref<256x128xf32, #tpu.memory_space<vmem>>, vector<256x128xf32>
      %13 = arith.truncf %12 : vector<256x128xf32> to vector<256x128xbf16>
      %c0_12 = arith.constant 0 : index
      %c0_13 = arith.constant 0 : index
      %14 = vector.load %arg5[%c0_12, %c0_13] : memref<128x128xbf16, #tpu.memory_space<vmem>>, vector<128x128xbf16>
      %cst_14 = arith.constant dense<0.000000e+00> : vector<256x128xf32>
      %15 = tpu.matmul %13, %14, %cst_14 {dimension_numbers = #tpu.dot_dimension_numbers<[1], [0], [0], [1], [0, 0, 1, 1], [], []>} : vector<256x128xbf16>, vector<128x128xbf16>, vector<256x128xf32> -> vector<256x128xf32>
      %c0_15 = arith.constant 0 : index
      %c0_16 = arith.constant 0 : index
      %16 = vector.load %arg4[%c0_15, %c0_16] : memref<256x128xbf16, #tpu.memory_space<vmem>>, vector<256x128xbf16>
      %c0_17 = arith.constant 0 : index
      %c0_18 = arith.constant 0 : index
      %17 = vector.load %arg6[%c0_17, %c0_18] : memref<128x128xbf16, #tpu.memory_space<vmem>>, vector<128x128xbf16>
      %cst_19 = arith.constant dense<0.000000e+00> : vector<256x128xf32>
      %18 = tpu.matmul %16, %17, %cst_19 {dimension_numbers = #tpu.dot_dimension_numbers<[1], [0], [0], [1], [0, 0, 1, 1], [], []>} : vector<256x128xbf16>, vector<128x128xbf16>, vector<256x128xf32> -> vector<256x128xf32>
      %19 = arith.addf %15, %18 : vector<256x128xf32>
      %c0_20 = arith.constant 0 : index
      %c0_21 = arith.constant 0 : index
      %20 = vector.load %arg7[%c0_20, %c0_21] : memref<1x128xf32, #tpu.memory_space<vmem>>, vector<1x128xf32>
      %21 = vector.broadcast %20 : vector<1x128xf32> to vector<256x128xf32>
      %22 = arith.addf %19, %21 : vector<256x128xf32>
      %cst_22 = arith.constant 0.000000e+00 : f32
      %23 = vector.broadcast %cst_22 : f32 to vector<256x128xf32>
      %24 = arith.maximumf %22, %23 : vector<256x128xf32>
      %25 = arith.truncf %24 : vector<256x128xf32> to vector<256x128xbf16>
      %c0_23 = arith.constant 0 : index
      %c0_24 = arith.constant 0 : index
      %26 = vector.load %arg8[%c0_23, %c0_24] : memref<256x128xbf16, #tpu.memory_space<vmem>>, vector<256x128xbf16>
      tpu.vector_store %arg8[%c0_23, %c0_24], %25 {strides = array<i32>} : memref<256x128xbf16, #tpu.memory_space<vmem>>, vector<256x128xbf16>,
    } else {
    }
    return
  }
  func.func @transform_0(%arg0: i32, %arg1: i32) -> (i32, i32) {
    %c0_i32 = arith.constant 0 : i32
    return %arg0, %arg1 : i32, i32
  }
  func.func @transform_1(%arg0: i32, %arg1: i32) -> (i32, i32) {
    %c0_i32 = arith.constant 0 : i32
    %c0_i32_0 = arith.constant 0 : i32
    return %arg1, %c0_i32 : i32, i32
  }
  func.func @transform_2(%arg0: i32, %arg1: i32) -> (i32, i32) {
    %c0_i32 = arith.constant 0 : i32
    %c0_i32_0 = arith.constant 0 : i32
    return %arg0, %c0_i32 : i32, i32
  }
  func.func @transform_3(%arg0: i32, %arg1: i32) -> (i32, i32) {
    %c0_i32 = arith.constant 0 : i32
    %c0_i32_0 = arith.constant 0 : i32
    %c0_i32_1 = arith.constant 0 : i32
    return %c0_i32, %c0_i32_0 : i32, i32
  }
  func.func @transform_4(%arg0: i32, %arg1: i32) -> (i32, i32) {
    %c0_i32 = arith.constant 0 : i32
    %c0_i32_0 = arith.constant 0 : i32
    %c0_i32_1 = arith.constant 0 : i32
    return %c0_i32, %c0_i32_0 : i32, i32
  }
  func.func @transform_5(%arg0: i32, %arg1: i32) -> (i32, i32) {
    %c0_i32 = arith.constant 0 : i32
    %c0_i32_0 = arith.constant 0 : i32
    %c0_i32_1 = arith.constant 0 : i32
    return %c0_i32, %c0_i32_0 : i32, i32
  }
  func.func @transform_6(%arg0: i32, %arg1: i32) -> (i32, i32) {
    %c0_i32 = arith.constant 0 : i32
    %c0_i32_0 = arith.constant 0 : i32
    return %arg0, %c0_i32 : i32, i32
  }
}

module attributes {stable_mosaic.version = 11 : i64} {
  func.func @_sage_layer_kernel(%arg0: i32, %arg1: i32, %arg2: memref<256x256xbf16, #tpu.memory_space<vmem>>, %arg3: memref<256x128xbf16, #tpu.memory_space<vmem>>, %arg4: memref<256x128xbf16, #tpu.memory_space<vmem>>, %arg5: memref<128x128xbf16, #tpu.memory_space<vmem>>, %arg6: memref<128x128xbf16, #tpu.memory_space<vmem>>, %arg7: memref<1x128xf32, #tpu.memory_space<vmem>>, %arg8: memref<256x128xbf16, #tpu.memory_space<vmem>>, %arg9: memref<256x128xf32, #tpu.memory_space<vmem>>) attributes {dimension_semantics = [#tpu.dimension_semantics<parallel>, #tpu.dimension_semantics<arbitrary>], iteration_bounds = array<i64: 1, 1>, scalar_prefetch = 0 : i64, scratch_operands = 1 : i64, tpu.core_type = #tpu.core_type<tc>, window_params = [{transform_indices = @transform_0, window_bounds = array<i64: 256, 256>}, {transform_indices = @transform_1, window_bounds = array<i64: 256, 128>}, {transform_indices = @transform_2, window_bounds = array<i64: 256, 128>}, {pipeline_mode = #tpu.pipeline_mode<synchronous>, transform_indices = @transform_3, window_bounds = array<i64: 128, 128>}, {pipeline_mode = #tpu.pipeline_mode<synchronous>, transform_indices = @transform_4, window_bounds = array<i64: 128, 128>}, {pipeline_mode = #tpu.pipeline_mode<synchronous>, transform_indices = @transform_5, window_bounds = array<i64: 1, 128>}, {transform_indices = @transform_6, window_bounds = array<i64: 256, 128>}]} {
    %c0_i32 = arith.constant 0 : i32
    %0 = arith.cmpi eq, %arg1, %c0_i32 : i32
    %1 = arith.extui %0 : i1 to i32
    %c0_i32_0 = arith.constant 0 : i32
    %2 = arith.cmpi ne, %1, %c0_i32_0 : i32
    scf.if %2 {
      %cst_10 = arith.constant 0.000000e+00 : f32
      %12 = vector.broadcast %cst_10 : f32 to vector<256x128xf32>
      %c0_11 = arith.constant 0 : index
      %c0_12 = arith.constant 0 : index
      %13 = vector.load %arg9[%c0_11, %c0_12] : memref<256x128xf32, #tpu.memory_space<vmem>>, vector<256x128xf32>
      tpu.vector_store %arg9[%c0_11, %c0_12], %12 {strides = array<i32>} : memref<256x128xf32, #tpu.memory_space<vmem>>, vector<256x128xf32>,
    } else {
    }
    %c0 = arith.constant 0 : index
    %c0_1 = arith.constant 0 : index
    %3 = vector.load %arg9[%c0, %c0_1] : memref<256x128xf32, #tpu.memory_space<vmem>>, vector<256x128xf32>
    %c0_2 = arith.constant 0 : index
    %c0_3 = arith.constant 0 : index
    %4 = vector.load %arg2[%c0_2, %c0_3] : memref<256x256xbf16, #tpu.memory_space<vmem>>, vector<256x256xbf16>
    %c0_4 = arith.constant 0 : index
    %c0_5 = arith.constant 0 : index
    %5 = vector.load %arg3[%c0_4, %c0_5] : memref<256x128xbf16, #tpu.memory_space<vmem>>, vector<256x128xbf16>
    %cst = arith.constant dense<0.000000e+00> : vector<256x128xf32>
    %6 = tpu.matmul %4, %5, %cst {dimension_numbers = #tpu.dot_dimension_numbers<[1], [0], [0], [1], [0, 0, 1, 1], [], []>} : vector<256x256xbf16>, vector<256x128xbf16>, vector<256x128xf32> -> vector<256x128xf32>
    %7 = arith.addf %3, %6 : vector<256x128xf32>
    %c0_6 = arith.constant 0 : index
    %c0_7 = arith.constant 0 : index
    %8 = vector.load %arg9[%c0_6, %c0_7] : memref<256x128xf32, #tpu.memory_space<vmem>>, vector<256x128xf32>
    tpu.vector_store %arg9[%c0_6, %c0_7], %7 {strides = array<i32>} : memref<256x128xf32, #tpu.memory_space<vmem>>, vector<256x128xf32>,
    %c0_i32_8 = arith.constant 0 : i32
    %9 = arith.cmpi eq, %arg1, %c0_i32_8 : i32
    %10 = arith.extui %9 : i1 to i32
    %c0_i32_9 = arith.constant 0 : i32
    %11 = arith.cmpi ne, %10, %c0_i32_9 : i32
    scf.if %11 {
      %c0_10 = arith.constant 0 : index
      %c0_11 = arith.constant 0 : index
      %12 = vector.load %arg9[%c0_10, %c0_11] : memref<256x128xf32, #tpu.memory_space<vmem>>, vector<256x128xf32>
      %13 = arith.truncf %12 : vector<256x128xf32> to vector<256x128xbf16>
      %c0_12 = arith.constant 0 : index
      %c0_13 = arith.constant 0 : index
      %14 = vector.load %arg5[%c0_12, %c0_13] : memref<128x128xbf16, #tpu.memory_space<vmem>>, vector<128x128xbf16>
      %cst_14 = arith.constant dense<0.000000e+00> : vector<256x128xf32>
      %15 = tpu.matmul %13, %14, %cst_14 {dimension_numbers = #tpu.dot_dimension_numbers<[1], [0], [0], [1], [0, 0, 1, 1], [], []>} : vector<256x128xbf16>, vector<128x128xbf16>, vector<256x128xf32> -> vector<256x128xf32>
      %c0_15 = arith.constant 0 : index
      %c0_16 = arith.constant 0 : index
      %16 = vector.load %arg4[%c0_15, %c0_16] : memref<256x128xbf16, #tpu.memory_space<vmem>>, vector<256x128xbf16>
      %c0_17 = arith.constant 0 : index
      %c0_18 = arith.constant 0 : index
      %17 = vector.load %arg6[%c0_17, %c0_18] : memref<128x128xbf16, #tpu.memory_space<vmem>>, vector<128x128xbf16>
      %cst_19 = arith.constant dense<0.000000e+00> : vector<256x128xf32>
      %18 = tpu.matmul %16, %17, %cst_19 {dimension_numbers = #tpu.dot_dimension_numbers<[1], [0], [0], [1], [0, 0, 1, 1], [], []>} : vector<256x128xbf16>, vector<128x128xbf16>, vector<256x128xf32> -> vector<256x128xf32>
      %19 = arith.addf %15, %18 : vector<256x128xf32>
      %c0_20 = arith.constant 0 : index
      %c0_21 = arith.constant 0 : index
      %20 = vector.load %arg7[%c0_20, %c0_21] : memref<1x128xf32, #tpu.memory_space<vmem>>, vector<1x128xf32>
      %21 = vector.broadcast %20 : vector<1x128xf32> to vector<256x128xf32>
      %22 = arith.addf %19, %21 : vector<256x128xf32>
      %cst_22 = arith.constant 0.000000e+00 : f32
      %23 = vector.broadcast %cst_22 : f32 to vector<256x128xf32>
      %24 = arith.maximumf %22, %23 : vector<256x128xf32>
      %25 = arith.truncf %24 : vector<256x128xf32> to vector<256x128xbf16>
      %c0_23 = arith.constant 0 : index
      %c0_24 = arith.constant 0 : index
      %26 = vector.load %arg8[%c0_23, %c0_24] : memref<256x128xbf16, #tpu.memory_space<vmem>>, vector<256x128xbf16>
      tpu.vector_store %arg8[%c0_23, %c0_24], %25 {strides = array<i32>} : memref<256x128xbf16, #tpu.memory_space<vmem>>, vector<256x128xbf16>,
    } else {
    }
    return
  }
  func.func @transform_0(%arg0: i32, %arg1: i32) -> (i32, i32) {
    %c0_i32 = arith.constant 0 : i32
    return %arg0, %arg1 : i32, i32
  }
  func.func @transform_1(%arg0: i32, %arg1: i32) -> (i32, i32) {
    %c0_i32 = arith.constant 0 : i32
    %c0_i32_0 = arith.constant 0 : i32
    return %arg1, %c0_i32 : i32, i32
  }
  func.func @transform_2(%arg0: i32, %arg1: i32) -> (i32, i32) {
    %c0_i32 = arith.constant 0 : i32
    %c0_i32_0 = arith.constant 0 : i32
    return %arg0, %c0_i32 : i32, i32
  }
  func.func @transform_3(%arg0: i32, %arg1: i32) -> (i32, i32) {
    %c0_i32 = arith.constant 0 : i32
    %c0_i32_0 = arith.constant 0 : i32
    %c0_i32_1 = arith.constant 0 : i32
    return %c0_i32, %c0_i32_0 : i32, i32
  }
  func.func @transform_4(%arg0: i32, %arg1: i32) -> (i32, i32) {
    %c0_i32 = arith.constant 0 : i32
    %c0_i32_0 = arith.constant 0 : i32
    %c0_i32_1 = arith.constant 0 : i32
    return %c0_i32, %c0_i32_0 : i32, i32
  }
  func.func @transform_5(%arg0: i32, %arg1: i32) -> (i32, i32) {
    %c0_i32 = arith.constant 0 : i32
    %c0_i32_0 = arith.constant 0 : i32
    %c0_i32_1 = arith.constant 0 : i32
    return %c0_i32, %c0_i32_0 : i32, i32
  }
  func.func @transform_6(%arg0: i32, %arg1: i32) -> (i32, i32) {
    %c0_i32 = arith.constant 0 : i32
    %c0_i32_0 = arith.constant 0 : i32
    return %arg0, %c0_i32 : i32, i32
  }
}

</mosaic_0001>

<llo_original>
// kernel: sage_forward.5
$region0: #{sage_forward.5}
  #allocation0 [shape = 'u32[]', space=smem, size = 0x4, offset = 0x4, fixed_abs, tag = 'smem constant byte address 0x4 - core index']
  #allocation1 [shape = 'u32[144,128]{1,0:T(1,128)}', space=vmem, size = 0x12000, scoped, tag = 'internal scratch']
  #allocation2 [shape = 'f32[256,128]{1,0:T(8,128)}', space=vmem, size = 0x20000, scoped, tag = 'scratch operand']
  %s0 = inlined_call_operand.vmem [shape: bf16[256,256], index: 0, kind: input, shape index: {}]
  %s1 = inlined_call_operand.vmem [shape: bf16[256,128], index: 1, kind: input, shape index: {}, may-alias: {1,2}]
  %s2 = inlined_call_operand.vmem [shape: bf16[256,128], index: 2, kind: input, shape index: {}, may-alias: {1,2}]
  %s3 = inlined_call_operand.vmem [shape: bf16[128,128], index: 3, kind: input, shape index: {}]
  %s4 = inlined_call_operand.vmem [shape: bf16[128,128], index: 4, kind: input, shape index: {}]
  %s5 = inlined_call_operand.vmem [shape: f32[1,128], index: 5, kind: input, shape index: {}]
  %s6 = inlined_call_operand.hbm [shape: bf16[256,128], index: 6, kind: output, shape index: {}]
  %s7 = sld [smem:[#allocation0]]
  $region42: #{sage_forward.5} parent=0
    _
  %s9 = ssub.s32 1, %s7
  %s10 = scalar_select 0, %s9, %s7
  $region1: #{sage_forward.5} parent=0
    #allocation3 [shape = 'u8[65536]{0}', space=vmem, size = 0x10000, scoped, tag = 'output window, operand 0, single buffered']
    #allocation4 [shape = 's32[1]{0}', space=sflag, size = 0x4, scoped, tag = 'scoped memory for sage_forward.5']
    %11 = vsyncpa [#allocation4], 0
    // Predicated region
    $region2: #{sage_forward.5} parent=1 // pred_check
      _
    $region3: #{sage_forward.5} parent=1 // pred_check_branch
      %13 = sbr.rel (0) target = $region5
    $region4: #{sage_forward.5} parent=1 // pred_region
      _
    $region5: #{sage_forward.5} parent=1 // pred_fallthru
      _
    // Predicated region
    $region6: #{sage_forward.5} parent=1 // pred_check
      _
    $region7: #{sage_forward.5} parent=1 // pred_check_branch
      %15 = sbr.rel (0) target = $region9
    $region8: #{sage_forward.5} parent=1 // pred_region
      _
    $region9: #{sage_forward.5} parent=1 // pred_fallthru
      _
    // Predicated region
    $region10: #{sage_forward.5} parent=1 // pred_check
      _
    $region11: #{sage_forward.5} parent=1 // pred_check_branch
      %17 = sbr.rel (0) target = $region13
    $region12: #{sage_forward.5} parent=1 // pred_region
      _
    $region13: #{sage_forward.5} parent=1 // pred_fallthru
      _
    // Predicated region
    $region14: #{sage_forward.5} parent=1 // pred_check
      _
    $region15: #{sage_forward.5} parent=1 // pred_check_branch
      %19 = sbr.rel (0) target = $region17
    $region16: #{sage_forward.5} parent=1 // pred_region
      _
    $region17: #{sage_forward.5} parent=1 // pred_fallthru
      _
    // Predicated region
    $region18: #{sage_forward.5} parent=1 // pred_check
      _
    $region19: #{sage_forward.5} parent=1 // pred_check_branch
      %21 = sbr.rel (0) target = $region21
    $region20: #{sage_forward.5} parent=1 // pred_region
      _
    $region21: #{sage_forward.5} parent=1 // pred_fallthru
      _
    // Predicated region
    $region22: #{sage_forward.5} parent=1 // pred_check
      _
    $region23: #{sage_forward.5} parent=1 // pred_check_branch
      %23 = sbr.rel (0) target = $region25
    $region24: #{sage_forward.5} parent=1 // pred_region
      _
    $region25: #{sage_forward.5} parent=1 // pred_fallthru
      _
    %p25 = scmp.eq.s32.totalorder 0, 0
    // Predicated region
    $region26: #{sage_forward.5} parent=1 // pred_check
      %p26 = pneg %p25
    $region27: #{sage_forward.5} parent=1 // pred_check_branch
      %28 = sbr.rel (%p26) target = $region29
    $region28: #{sage_forward.5} parent=1 // pred_region
      %29 = vst [vmem:[#allocation2] sm:$0xff] 0.0
      %30 = vst [vmem:[#allocation2 + $0x8] sm:$0xff] 0.0
      %31 = vst [vmem:[#allocation2 + $0x10] sm:$0xff] 0.0
      %32 = vst [vmem:[#allocation2 + $0x18] sm:$0xff] 0.0
      %33 = vst [vmem:[#allocation2 + $0x20] sm:$0xff] 0.0
      %34 = vst [vmem:[#allocation2 + $0x28] sm:$0xff] 0.0
      %35 = vst [vmem:[#allocation2 + $0x30] sm:$0xff] 0.0
      %36 = vst [vmem:[#allocation2 + $0x38] sm:$0xff] 0.0
      %37 = vst [vmem:[#allocation2 + $0x40] sm:$0xff] 0.0
      %38 = vst [vmem:[#allocation2 + $0x48] sm:$0xff] 0.0
      %39 = vst [vmem:[#allocation2 + $0x50] sm:$0xff] 0.0
      %40 = vst [vmem:[#allocation2 + $0x58] sm:$0xff] 0.0
      %41 = vst [vmem:[#allocation2 + $0x60] sm:$0xff] 0.0
      %42 = vst [vmem:[#allocation2 + $0x68] sm:$0xff] 0.0
      %43 = vst [vmem:[#allocation2 + $0x70] sm:$0xff] 0.0
      %44 = vst [vmem:[#allocation2 + $0x78] sm:$0xff] 0.0
      %45 = vst [vmem:[#allocation2 + $0x80] sm:$0xff] 0.0
      %46 = vst [vmem:[#allocation2 + $0x88] sm:$0xff] 0.0
      %47 = vst [vmem:[#allocation2 + $0x90] sm:$0xff] 0.0
      %48 = vst [vmem:[#allocation2 + $0x98] sm:$0xff] 0.0
      %49 = vst [vmem:[#allocation2 + $0xa0] sm:$0xff] 0.0
      %50 = vst [vmem:[#allocation2 + $0xa8] sm:$0xff] 0.0
      %51 = vst [vmem:[#allocation2 + $0xb0] sm:$0xff] 0.0
      %52 = vst [vmem:[#allocation2 + $0xb8] sm:$0xff] 0.0
      %53 = vst [vmem:[#allocation2 + $0xc0] sm:$0xff] 0.0
      %54 = vst [vmem:[#allocation2 + $0xc8] sm:$0xff] 0.0
      %55 = vst [vmem:[#allocation2 + $0xd0] sm:$0xff] 0.0
      %56 = vst [vmem:[#allocation2 + $0xd8] sm:$0xff] 0.0
      %57 = vst [vmem:[#allocation2 + $0xe0] sm:$0xff] 0.0
      %58 = vst [vmem:[#allocation2 + $0xe8] sm:$0xff] 0.0
      %59 = vst [vmem:[#allocation2 + $0xf0] sm:$0xff] 0.0
      %60 = vst [vmem:[#allocation2 + $0xf8] sm:$0xff] 0.0
    $region29: #{sage_forward.5} parent=1 // pred_fallthru
      _
    %v61 = vld [vmem:[#allocation2] sm:$0xff]
    %v62 = vld [vmem:[#allocation2 + $0x8] sm:$0xff]
    %v63 = vld [vmem:[#allocation2 + $0x10] sm:$0xff]
    %v64 = vld [vmem:[#allocation2 + $0x18] sm:$0xff]
    %v65 = vld [vmem:[#allocation2 + $0x20] sm:$0xff]
    %v66 = vld [vmem:[#allocation2 + $0x28] sm:$0xff]
    %v67 = vld [vmem:[#allocation2 + $0x30] sm:$0xff]
    %v68 = vld [vmem:[#allocation2 + $0x38] sm:$0xff]
    %v69 = vld [vmem:[#allocation2 + $0x40] sm:$0xff]
    %v70 = vld [vmem:[#allocation2 + $0x48] sm:$0xff]
    %v71 = vld [vmem:[#allocation2 + $0x50] sm:$0xff]
    %v72 = vld [vmem:[#allocation2 + $0x58] sm:$0xff]
    %v73 = vld [vmem:[#allocation2 + $0x60] sm:$0xff]
    %v74 = vld [vmem:[#allocation2 + $0x68] sm:$0xff]
    %v75 = vld [vmem:[#allocation2 + $0x70] sm:$0xff]
    %v76 = vld [vmem:[#allocation2 + $0x78] sm:$0xff]
    %v77 = vld [vmem:[#allocation2 + $0x80] sm:$0xff]
    %v78 = vld [vmem:[#allocation2 + $0x88] sm:$0xff]
    %v79 = vld [vmem:[#allocation2 + $0x90] sm:$0xff]
    %v80 = vld [vmem:[#allocation2 + $0x98] sm:$0xff]
    %v81 = vld [vmem:[#allocation2 + $0xa0] sm:$0xff]
    %v82 = vld [vmem:[#allocation2 + $0xa8] sm:$0xff]
    %v83 = vld [vmem:[#allocation2 + $0xb0] sm:$0xff]
    %v84 = vld [vmem:[#allocation2 + $0xb8] sm:$0xff]
    %v85 = vld [vmem:[#allocation2 + $0xc0] sm:$0xff]
    %v86 = vld [vmem:[#allocation2 + $0xc8] sm:$0xff]
    %v87 = vld [vmem:[#allocation2 + $0xd0] sm:$0xff]
    %v88 = vld [vmem:[#allocation2 + $0xd8] sm:$0xff]
    %v89 = vld [vmem:[#allocation2 + $0xe0] sm:$0xff]
    %v90 = vld [vmem:[#allocation2 + $0xe8] sm:$0xff]
    %v91 = vld [vmem:[#allocation2 + $0xf0] sm:$0xff]
    %v92 = vld [vmem:[#allocation2 + $0xf8] sm:$0xff]
    %v93 = vld [vmem:[%s0] sm:$0xff]
    %v94 = vld [vmem:[%s0 + $0x8] sm:$0xff]
    %v95 = vld [vmem:[%s0 + $0x10] sm:$0xff]
    %v96 = vld [vmem:[%s0 + $0x18] sm:$0xff]
    %v97 = vld [vmem:[%s0 + $0x20] sm:$0xff]
    %v98 = vld [vmem:[%s0 + $0x28] sm:$0xff]
    %v99 = vld [vmem:[%s0 + $0x30] sm:$0xff]
    %v100 = vld [vmem:[%s0 + $0x38] sm:$0xff]
    %v101 = vld [vmem:[%s0 + $0x40] sm:$0xff]
    %v102 = vld [vmem:[%s0 + $0x48] sm:$0xff]
    %v103 = vld [vmem:[%s0 + $0x50] sm:$0xff]
    %v104 = vld [vmem:[%s0 + $0x58] sm:$0xff]
    %v105 = vld [vmem:[%s0 + $0x60] sm:$0xff]
    %v106 = vld [vmem:[%s0 + $0x68] sm:$0xff]
    %v107 = vld [vmem:[%s0 + $0x70] sm:$0xff]
    %v108 = vld [vmem:[%s0 + $0x78] sm:$0xff]
    %v109 = vld [vmem:[%s0 + $0x80] sm:$0xff]
    %v110 = vld [vmem:[%s0 + $0x88] sm:$0xff]
    %v111 = vld [vmem:[%s0 + $0x90] sm:$0xff]
    %v112 = vld [vmem:[%s0 + $0x98] sm:$0xff]
    %v113 = vld [vmem:[%s0 + $0xa0] sm:$0xff]
    %v114 = vld [vmem:[%s0 + $0xa8] sm:$0xff]
    %v115 = vld [vmem:[%s0 + $0xb0] sm:$0xff]
    %v116 = vld [vmem:[%s0 + $0xb8] sm:$0xff]
    %v117 = vld [vmem:[%s0 + $0xc0] sm:$0xff]
    %v118 = vld [vmem:[%s0 + $0xc8] sm:$0xff]
    %v119 = vld [vmem:[%s0 + $0xd0] sm:$0xff]
    %v120 = vld [vmem:[%s0 + $0xd8] sm:$0xff]
    %v121 = vld [vmem:[%s0 + $0xe0] sm:$0xff]
    %v122 = vld [vmem:[%s0 + $0xe8] sm:$0xff]
    %v123 = vld [vmem:[%s0 + $0xf0] sm:$0xff]
    %v124 = vld [vmem:[%s0 + $0xf8] sm:$0xff]
    %v125 = vld [vmem:[%s1] sm:$0xf]
    %v126 = vld [vmem:[%s1 + $0x4] sm:$0xf]
    %v127 = vld [vmem:[%s1 + $0x8] sm:$0xf]
    %v128 = vld [vmem:[%s1 + $0xc] sm:$0xf]
    %v129 = vld [vmem:[%s1 + $0x10] sm:$0xf]
    %v130 = vld [vmem:[%s1 + $0x14] sm:$0xf]
    %v131 = vld [vmem:[%s1 + $0x18] sm:$0xf]
    %v132 = vld [vmem:[%s1 + $0x1c] sm:$0xf]
    %v133 = vld [vmem:[%s1 + $0x20] sm:$0xf]
    %v134 = vld [vmem:[%s1 + $0x24] sm:$0xf]
    %v135 = vld [vmem:[%s1 + $0x28] sm:$0xf]
    %v136 = vld [vmem:[%s1 + $0x2c] sm:$0xf]
    %v137 = vld [vmem:[%s1 + $0x30] sm:$0xf]
    %v138 = vld [vmem:[%s1 + $0x34] sm:$0xf]
    %v139 = vld [vmem:[%s1 + $0x38] sm:$0xf]
    %v140 = vld [vmem:[%s1 + $0x3c] sm:$0xf]
    %v141 = vld [vmem:[%s1 + $0x40] sm:$0xf]
    %v142 = vld [vmem:[%s1 + $0x44] sm:$0xf]
    %v143 = vld [vmem:[%s1 + $0x48] sm:$0xf]
    %v144 = vld [vmem:[%s1 + $0x4c] sm:$0xf]
    %v145 = vld [vmem:[%s1 + $0x50] sm:$0xf]
    %v146 = vld [vmem:[%s1 + $0x54] sm:$0xf]
    %v147 = vld [vmem:[%s1 + $0x58] sm:$0xf]
    %v148 = vld [vmem:[%s1 + $0x5c] sm:$0xf]
    %v149 = vld [vmem:[%s1 + $0x60] sm:$0xf]
    %v150 = vld [vmem:[%s1 + $0x64] sm:$0xf]
    %v151 = vld [vmem:[%s1 + $0x68] sm:$0xf]
    %v152 = vld [vmem:[%s1 + $0x6c] sm:$0xf]
    %v153 = vld [vmem:[%s1 + $0x70] sm:$0xf]
    %v154 = vld [vmem:[%s1 + $0x74] sm:$0xf]
    %v155 = vld [vmem:[%s1 + $0x78] sm:$0xf]
    %v156 = vld [vmem:[%s1 + $0x7c] sm:$0xf]
    %v189 = vunpack.c.l.b16 %v93
    %v190 = vunpack.c.h.b16 %v93
    %v191 = vunpack.c.l.b16 %v94
    %v192 = vunpack.c.h.b16 %v94
    %v193 = vunpack.c.l.b16 %v95
    %v194 = vunpack.c.h.b16 %v95
    %v195 = vunpack.c.l.b16 %v96
    %v196 = vunpack.c.h.b16 %v96
    %v197 = vunpack.c.l.b16 %v97
    %v198 = vunpack.c.h.b16 %v97
    %v199 = vunpack.c.l.b16 %v98
    %v200 = vunpack.c.h.b16 %v98
    %v201 = vunpack.c.l.b16 %v99
    %v202 = vunpack.c.h.b16 %v99
    %v203 = vunpack.c.l.b16 %v100
    %v204 = vunpack.c.h.b16 %v100
    %v205 = vunpack.c.l.b16 %v101
    %v206 = vunpack.c.h.b16 %v101
    %v207 = vunpack.c.l.b16 %v102
    %v208 = vunpack.c.h.b16 %v102
    %v209 = vunpack.c.l.b16 %v103
    %v210 = vunpack.c.h.b16 %v103
    %v211 = vunpack.c.l.b16 %v104
    %v212 = vunpack.c.h.b16 %v104
    %v213 = vunpack.c.l.b16 %v105
    %v214 = vunpack.c.h.b16 %v105
    %v215 = vunpack.c.l.b16 %v106
    %v216 = vunpack.c.h.b16 %v106
    %v217 = vunpack.c.l.b16 %v107
    %v218 = vunpack.c.h.b16 %v107
    %v219 = vunpack.c.l.b16 %v108
    %v220 = vunpack.c.h.b16 %v108
    %v221 = vunpack.c.l.b16 %v109
    %v222 = vunpack.c.h.b16 %v109
    %v223 = vunpack.c.l.b16 %v110
    %v224 = vunpack.c.h.b16 %v110
    %v225 = vunpack.c.l.b16 %v111
    %v226 = vunpack.c.h.b16 %v111
    %v227 = vunpack.c.l.b16 %v112
    %v228 = vunpack.c.h.b16 %v112
    %v229 = vunpack.c.l.b16 %v113
    %v230 = vunpack.c.h.b16 %v113
    %v231 = vunpack.c.l.b16 %v114
    %v232 = vunpack.c.h.b16 %v114
    %v233 = vunpack.c.l.b16 %v115
    %v234 = vunpack.c.h.b16 %v115
    %v235 = vunpack.c.l.b16 %v116
    %v236 = vunpack.c.h.b16 %v116
    %v237 = vunpack.c.l.b16 %v117
    %v238 = vunpack.c.h.b16 %v117
    %v239 = vunpack.c.l.b16 %v118
    %v240 = vunpack.c.h.b16 %v118
    %v241 = vunpack.c.l.b16 %v119
    %v242 = vunpack.c.h.b16 %v119
    %v243 = vunpack.c.l.b16 %v120
    %v244 = vunpack.c.h.b16 %v120
    %v245 = vunpack.c.l.b16 %v121
    %v246 = vunpack.c.h.b16 %v121
    %v247 = vunpack.c.l.b16 %v122
    %v248 = vunpack.c.h.b16 %v122
    %v249 = vunpack.c.l.b16 %v123
    %v250 = vunpack.c.h.b16 %v123
    %v251 = vunpack.c.l.b16 %v124
    %v252 = vunpack.c.h.b16 %v124
    %v253 = vpack.c.b16 %v191, %v189
    %v254 = vpack.c.b16 %v192, %v190
    %v255 = vpack.c.b16 %v195, %v193
    %v256 = vpack.c.b16 %v196, %v194
    %v257 = vpack.c.b16 %v199, %v197
    %v258 = vpack.c.b16 %v200, %v198
    %v259 = vpack.c.b16 %v203, %v201
    %v260 = vpack.c.b16 %v204, %v202
    %v261 = vpack.c.b16 %v207, %v205
    %v262 = vpack.c.b16 %v208, %v206
    %v263 = vpack.c.b16 %v211, %v209
    %v264 = vpack.c.b16 %v212, %v210
    %v265 = vpack.c.b16 %v215, %v213
    %v266 = vpack.c.b16 %v216, %v214
    %v267 = vpack.c.b16 %v219, %v217
    %v268 = vpack.c.b16 %v220, %v218
    %v269 = vpack.c.b16 %v223, %v221
    %v270 = vpack.c.b16 %v224, %v222
    %v271 = vpack.c.b16 %v227, %v225
    %v272 = vpack.c.b16 %v228, %v226
    %v273 = vpack.c.b16 %v231, %v229
    %v274 = vpack.c.b16 %v232, %v230
    %v275 = vpack.c.b16 %v235, %v233
    %v276 = vpack.c.b16 %v236, %v234
    %v277 = vpack.c.b16 %v239, %v237
    %v278 = vpack.c.b16 %v240, %v238
    %v279 = vpack.c.b16 %v243, %v241
    %v280 = vpack.c.b16 %v244, %v242
    %v281 = vpack.c.b16 %v247, %v245
    %v282 = vpack.c.b16 %v248, %v246
    %v283 = vpack.c.b16 %v251, %v249
    %v284 = vpack.c.b16 %v252, %v250
    %v349 = vunpack.c.l.b16 %v125
    %v350 = vunpack.c.l.b16 %v126
    %v351 = vunpack.c.l.b16 %v127
    %v352 = vunpack.c.l.b16 %v128
    %v353 = vunpack.c.l.b16 %v129
    %v354 = vunpack.c.l.b16 %v130
    %v355 = vunpack.c.l.b16 %v131
    %v356 = vunpack.c.l.b16 %v132
    %v357 = vunpack.c.l.b16 %v133
    %v358 = vunpack.c.l.b16 %v134
    %v359 = vunpack.c.l.b16 %v135
    %v360 = vunpack.c.l.b16 %v136
    %v361 = vunpack.c.l.b16 %v137
    %v362 = vunpack.c.l.b16 %v138
    %v363 = vunpack.c.l.b16 %v139
    %v364 = vunpack.c.l.b16 %v140
    %v365 = vunpack.c.l.b16 %v141
    %v366 = vunpack.c.l.b16 %v142
    %v367 = vunpack.c.l.b16 %v143
    %v368 = vunpack.c.l.b16 %v144
    %v369 = vunpack.c.l.b16 %v145
    %v370 = vunpack.c.l.b16 %v146
    %v371 = vunpack.c.l.b16 %v147
    %v372 = vunpack.c.l.b16 %v148
    %v373 = vunpack.c.l.b16 %v149
    %v374 = vunpack.c.l.b16 %v150
    %v375 = vunpack.c.l.b16 %v151
    %v376 = vunpack.c.l.b16 %v152
    %v377 = vunpack.c.l.b16 %v153
    %v378 = vunpack.c.l.b16 %v154
    %v379 = vunpack.c.l.b16 %v155
    %v380 = vunpack.c.l.b16 %v156
    %v381 = vpack.c.b16 %v350, %v349
    %v382 = vpack.c.b16 %v352, %v351
    %v383 = vpack.c.b16 %v354, %v353
    %v384 = vpack.c.b16 %v356, %v355
    %v385 = vpack.c.b16 %v358, %v357
    %v386 = vpack.c.b16 %v360, %v359
    %v387 = vpack.c.b16 %v362, %v361
    %v388 = vpack.c.b16 %v364, %v363
    %v389 = vpack.c.b16 %v366, %v365
    %v390 = vpack.c.b16 %v368, %v367
    %v391 = vpack.c.b16 %v370, %v369
    %v392 = vpack.c.b16 %v372, %v371
    %v393 = vpack.c.b16 %v374, %v373
    %v394 = vpack.c.b16 %v376, %v375
    %v395 = vpack.c.b16 %v378, %v377
    %v396 = vpack.c.b16 %v380, %v379
    %413 = vmatprep.subr.bf16.mxu0 0
    %414 = vmatpush1.bf16.msra.mxu0 %v381
    %415 = vmatprep.subr.bf16.mxu0 0
    %416 = vmatpush1.bf16.msra.mxu0 %v382
    %417 = vmatprep.subr.bf16.mxu0 0
    %418 = vmatpush1.bf16.msra.mxu0 %v383
    %419 = vmatprep.subr.bf16.mxu0 0
    %420 = vmatpush1.bf16.msra.mxu0 %v384
    %421 = vmatprep.subr.bf16.mxu0 0
    %422 = vmatpush1.bf16.msra.mxu0 %v385
    %423 = vmatprep.subr.bf16.mxu0 0
    %424 = vmatpush1.bf16.msra.mxu0 %v386
    %425 = vmatprep.subr.bf16.mxu0 0
    %426 = vmatpush1.bf16.msra.mxu0 %v387
    %427 = vmatprep.subr.bf16.mxu0 0
    %428 = vmatpush1.bf16.msra.mxu0 %v388
    %429 = vmatprep.subr.bf16.mxu0 0
    %430 = vmatpush1.bf16.msra.mxu0 %v389
    %431 = vmatprep.subr.bf16.mxu0 0
    %432 = vmatpush1.bf16.msra.mxu0 %v390
    %433 = vmatprep.subr.bf16.mxu0 0
    %434 = vmatpush1.bf16.msra.mxu0 %v391
    %435 = vmatprep.subr.bf16.mxu0 0
    %436 = vmatpush1.bf16.msra.mxu0 %v392
    %437 = vmatprep.subr.bf16.mxu0 0
    %438 = vmatpush1.bf16.msra.mxu0 %v393
    %439 = vmatprep.subr.bf16.mxu0 0
    %440 = vmatpush1.bf16.msra.mxu0 %v394
    %441 = vmatprep.subr.bf16.mxu0 0
    %442 = vmatpush1.bf16.msra.mxu0 %v395
    %443 = vmatprep.subr.bf16.mxu0 0
    %444 = vmatpush1.bf16.msra.mxu0 %v396
    %445 = vmatprep.mubr.bf16.mxu0 %v254
    %446 = vmatmul.mubr.bf16.gmra.mrb[0].mxu0 %v253
    %v447 = vpop.f32.mrb[0].mxu0
    %v448 = vadd.f32 0.0, %v447
    %v449 = vpop.f32.mrb[0].mxu0
    %v450 = vpop.f32.mrb[0].mxu0
    %v451 = vadd.f32 0.0, %v450
    %v452 = vpop.f32.mrb[0].mxu0
    %453 = vmatprep.mubr.bf16.mxu0 %v256
    %454 = vmatmul.mubr.bf16.gmra.mrb[0].mxu0 %v255
    %v455 = vpop.f32.mrb[0].mxu0
    %v456 = vadd.f32 0.0, %v455
    %v457 = vpop.f32.mrb[0].mxu0
    %v458 = vpop.f32.mrb[0].mxu0
    %v459 = vadd.f32 0.0, %v458
    %v460 = vpop.f32.mrb[0].mxu0
    %461 = vmatprep.mubr.bf16.mxu0 %v258
    %462 = vmatmul.mubr.bf16.gmra.mrb[0].mxu0 %v257
    %v463 = vpop.f32.mrb[0].mxu0
    %v464 = vadd.f32 0.0, %v463
    %v465 = vpop.f32.mrb[0].mxu0
    %v466 = vpop.f32.mrb[0].mxu0
    %v467 = vadd.f32 0.0, %v466
    %v468 = vpop.f32.mrb[0].mxu0
    %469 = vmatprep.mubr.bf16.mxu0 %v260
    %470 = vmatmul.mubr.bf16.gmra.mrb[0].mxu0 %v259
    %v471 = vpop.f32.mrb[0].mxu0
    %v472 = vadd.f32 0.0, %v471
    %v473 = vpop.f32.mrb[0].mxu0
    %v474 = vpop.f32.mrb[0].mxu0
    %v475 = vadd.f32 0.0, %v474
    %v476 = vpop.f32.mrb[0].mxu0
    %477 = vmatprep.mubr.bf16.mxu0 %v262
    %478 = vmatmul.mubr.bf16.gmra.mrb[0].mxu0 %v261
    %v479 = vpop.f32.mrb[0].mxu0
    %v480 = vadd.f32 0.0, %v479
    %v481 = vpop.f32.mrb[0].mxu0
    %v482 = vpop.f32.mrb[0].mxu0
    %v483 = vadd.f32 0.0, %v482
    %v484 = vpop.f32.mrb[0].mxu0
    %485 = vmatprep.mubr.bf16.mxu0 %v264
    %486 = vmatmul.mubr.bf16.gmra.mrb[0].mxu0 %v263
    %v487 = vpop.f32.mrb[0].mxu0
    %v488 = vadd.f32 0.0, %v487
    %v489 = vpop.f32.mrb[0].mxu0
    %v490 = vpop.f32.mrb[0].mxu0
    %v491 = vadd.f32 0.0, %v490
    %v492 = vpop.f32.mrb[0].mxu0
    %493 = vmatprep.mubr.bf16.mxu0 %v266
    %494 = vmatmul.mubr.bf16.gmra.mrb[0].mxu0 %v265
    %v495 = vpop.f32.mrb[0].mxu0
    %v496 = vadd.f32 0.0, %v495
    %v497 = vpop.f32.mrb[0].mxu0
    %v498 = vpop.f32.mrb[0].mxu0
    %v499 = vadd.f32 0.0, %v498
    %v500 = vpop.f32.mrb[0].mxu0
    %501 = vmatprep.mubr.bf16.mxu0 %v268
    %502 = vmatmul.mubr.bf16.gmra.mrb[0].mxu0 %v267
    %v503 = vpop.f32.mrb[0].mxu0
    %v504 = vadd.f32 0.0, %v503
    %v505 = vpop.f32.mrb[0].mxu0
    %v506 = vpop.f32.mrb[0].mxu0
    %v507 = vadd.f32 0.0, %v506
    %v508 = vpop.f32.mrb[0].mxu0
    %509 = vmatprep.mubr.bf16.mxu0 %v270
    %510 = vmatmul.mubr.bf16.gmra.mrb[0].mxu0 %v269
    %v511 = vpop.f32.mrb[0].mxu0
    %v512 = vadd.f32 0.0, %v511
    %v513 = vpop.f32.mrb[0].mxu0
    %v514 = vpop.f32.mrb[0].mxu0
    %v515 = vadd.f32 0.0, %v514
    %v516 = vpop.f32.mrb[0].mxu0
    %517 = vmatprep.mubr.bf16.mxu0 %v272
    %518 = vmatmul.mubr.bf16.gmra.mrb[0].mxu0 %v271
    %v519 = vpop.f32.mrb[0].mxu0
    %v520 = vadd.f32 0.0, %v519
    %v521 = vpop.f32.mrb[0].mxu0
    %v522 = vpop.f32.mrb[0].mxu0
    %v523 = vadd.f32 0.0, %v522
    %v524 = vpop.f32.mrb[0].mxu0
    %525 = vmatprep.mubr.bf16.mxu0 %v274
    %526 = vmatmul.mubr.bf16.gmra.mrb[0].mxu0 %v273
    %v527 = vpop.f32.mrb[0].mxu0
    %v528 = vadd.f32 0.0, %v527
    %v529 = vpop.f32.mrb[0].mxu0
    %v530 = vpop.f32.mrb[0].mxu0
    %v531 = vadd.f32 0.0, %v530
    %v532 = vpop.f32.mrb[0].mxu0
    %533 = vmatprep.mubr.bf16.mxu0 %v276
    %534 = vmatmul.mubr.bf16.gmra.mrb[0].mxu0 %v275
    %v535 = vpop.f32.mrb[0].mxu0
    %v536 = vadd.f32 0.0, %v535
    %v537 = vpop.f32.mrb[0].mxu0
    %v538 = vpop.f32.mrb[0].mxu0
    %v539 = vadd.f32 0.0, %v538
    %v540 = vpop.f32.mrb[0].mxu0
    %541 = vmatprep.mubr.bf16.mxu0 %v278
    %542 = vmatmul.mubr.bf16.gmra.mrb[0].mxu0 %v277
    %v543 = vpop.f32.mrb[0].mxu0
    %v544 = vadd.f32 0.0, %v543
    %v545 = vpop.f32.mrb[0].mxu0
    %v546 = vpop.f32.mrb[0].mxu0
    %v547 = vadd.f32 0.0, %v546
    %v548 = vpop.f32.mrb[0].mxu0
    %549 = vmatprep.mubr.bf16.mxu0 %v280
    %550 = vmatmul.mubr.bf16.gmra.mrb[0].mxu0 %v279
    %v551 = vpop.f32.mrb[0].mxu0
    %v552 = vadd.f32 0.0, %v551
    %v553 = vpop.f32.mrb[0].mxu0
    %v554 = vpop.f32.mrb[0].mxu0
    %v555 = vadd.f32 0.0, %v554
    %v556 = vpop.f32.mrb[0].mxu0
    %557 = vmatprep.mubr.bf16.mxu0 %v282
    %558 = vmatmul.mubr.bf16.gmra.mrb[0].mxu0 %v281
    %v559 = vpop.f32.mrb[0].mxu0
    %v560 = vadd.f32 0.0, %v559
    %v561 = vpop.f32.mrb[0].mxu0
    %v562 = vpop.f32.mrb[0].mxu0
    %v563 = vadd.f32 0.0, %v562
    %v564 = vpop.f32.mrb[0].mxu0
    %565 = vmatprep.mubr.bf16.mxu0 %v284
    %566 = vmatmul.mubr.bf16.gmra.mrb[0].mxu0 %v283
    %v567 = vpop.f32.mrb[0].mxu0
    %v568 = vadd.f32 0.0, %v567
    %v569 = vpop.f32.mrb[0].mxu0
    %v570 = vpop.f32.mrb[0].mxu0
    %v571 = vadd.f32 0.0, %v570
    %v572 = vpop.f32.mrb[0].mxu0
    %573 = vdwg.mxu0
    %v574 = vadd.f32 %v61, %v448
    %v575 = vadd.f32 %v62, %v451
    %v576 = vadd.f32 %v63, %v456
    %v577 = vadd.f32 %v64, %v459
    %v578 = vadd.f32 %v65, %v464
    %v579 = vadd.f32 %v66, %v467
    %v580 = vadd.f32 %v67, %v472
    %v581 = vadd.f32 %v68, %v475
    %v582 = vadd.f32 %v69, %v480
    %v583 = vadd.f32 %v70, %v483
    %v584 = vadd.f32 %v71, %v488
    %v585 = vadd.f32 %v72, %v491
    %v586 = vadd.f32 %v73, %v496
    %v587 = vadd.f32 %v74, %v499
    %v588 = vadd.f32 %v75, %v504
    %v589 = vadd.f32 %v76, %v507
    %v590 = vadd.f32 %v77, %v512
    %v591 = vadd.f32 %v78, %v515
    %v592 = vadd.f32 %v79, %v520
    %v593 = vadd.f32 %v80, %v523
    %v594 = vadd.f32 %v81, %v528
    %v595 = vadd.f32 %v82, %v531
    %v596 = vadd.f32 %v83, %v536
    %v597 = vadd.f32 %v84, %v539
    %v598 = vadd.f32 %v85, %v544
    %v599 = vadd.f32 %v86, %v547
    %v600 = vadd.f32 %v87, %v552
    %v601 = vadd.f32 %v88, %v555
    %v602 = vadd.f32 %v89, %v560
    %v603 = vadd.f32 %v90, %v563
    %v604 = vadd.f32 %v91, %v568
    %v605 = vadd.f32 %v92, %v571
    %606 = vst [vmem:[#allocation2] sm:$0xff] %v574
    %607 = vst [vmem:[#allocation2 + $0x8] sm:$0xff] %v575
    %608 = vst [vmem:[#allocation2 + $0x10] sm:$0xff] %v576
    %609 = vst [vmem:[#allocation2 + $0x18] sm:$0xff] %v577
    %610 = vst [vmem:[#allocation2 + $0x20] sm:$0xff] %v578
    %611 = vst [vmem:[#allocation2 + $0x28] sm:$0xff] %v579
    %612 = vst [vmem:[#allocation2 + $0x30] sm:$0xff] %v580
    %613 = vst [vmem:[#allocation2 + $0x38] sm:$0xff] %v581
    %614 = vst [vmem:[#allocation2 + $0x40] sm:$0xff] %v582
    %615 = vst [vmem:[#allocation2 + $0x48] sm:$0xff] %v583
    %616 = vst [vmem:[#allocation2 + $0x50] sm:$0xff] %v584
    %617 = vst [vmem:[#allocation2 + $0x58] sm:$0xff] %v585
    %618 = vst [vmem:[#allocation2 + $0x60] sm:$0xff] %v586
    %619 = vst [vmem:[#allocation2 + $0x68] sm:$0xff] %v587
    %620 = vst [vmem:[#allocation2 + $0x70] sm:$0xff] %v588
    %621 = vst [vmem:[#allocation2 + $0x78] sm:$0xff] %v589
    %622 = vst [vmem:[#allocation2 + $0x80] sm:$0xff] %v590
    %623 = vst [vmem:[#allocation2 + $0x88] sm:$0xff] %v591
    %624 = vst [vmem:[#allocation2 + $0x90] sm:$0xff] %v592
    %625 = vst [vmem:[#allocation2 + $0x98] sm:$0xff] %v593
    %626 = vst [vmem:[#allocation2 + $0xa0] sm:$0xff] %v594
    %627 = vst [vmem:[#allocation2 + $0xa8] sm:$0xff] %v595
    %628 = vst [vmem:[#allocation2 + $0xb0] sm:$0xff] %v596
    %629 = vst [vmem:[#allocation2 + $0xb8] sm:$0xff] %v597
    %630 = vst [vmem:[#allocation2 + $0xc0] sm:$0xff] %v598
    %631 = vst [vmem:[#allocation2 + $0xc8] sm:$0xff] %v599
    %632 = vst [vmem:[#allocation2 + $0xd0] sm:$0xff] %v600
    %633 = vst [vmem:[#allocation2 + $0xd8] sm:$0xff] %v601
    %634 = vst [vmem:[#allocation2 + $0xe0] sm:$0xff] %v602
    %635 = vst [vmem:[#allocation2 + $0xe8] sm:$0xff] %v603
    %636 = vst [vmem:[#allocation2 + $0xf0] sm:$0xff] %v604
    %637 = vst [vmem:[#allocation2 + $0xf8] sm:$0xff] %v605
    // Predicated region
    $region30: #{sage_forward.5} parent=1 // pred_check
      %p638 = pneg %p25
    $region31: #{sage_forward.5} parent=1 // pred_check_branch
      %640 = sbr.rel (%p638) target = $region33
    $region32: #{sage_forward.5} parent=1 // pred_region
      %v641 = vld [vmem:[#allocation2] sm:$0xff]
      %v642 = vld [vmem:[#allocation2 + $0x8] sm:$0xff]
      %v643 = vld [vmem:[#allocation2 + $0x10] sm:$0xff]
      %v644 = vld [vmem:[#allocation2 + $0x18] sm:$0xff]
      %v645 = vld [vmem:[#allocation2 + $0x20] sm:$0xff]
      %v646 = vld [vmem:[#allocation2 + $0x28] sm:$0xff]
      %v647 = vld [vmem:[#allocation2 + $0x30] sm:$0xff]
      %v648 = vld [vmem:[#allocation2 + $0x38] sm:$0xff]
      %v649 = vld [vmem:[#allocation2 + $0x40] sm:$0xff]
      %v650 = vld [vmem:[#allocation2 + $0x48] sm:$0xff]
      %v651 = vld [vmem:[#allocation2 + $0x50] sm:$0xff]
      %v652 = vld [vmem:[#allocation2 + $0x58] sm:$0xff]
      %v653 = vld [vmem:[#allocation2 + $0x60] sm:$0xff]
      %v654 = vld [vmem:[#allocation2 + $0x68] sm:$0xff]
      %v655 = vld [vmem:[#allocation2 + $0x70] sm:$0xff]
      %v656 = vld [vmem:[#allocation2 + $0x78] sm:$0xff]
      %v657 = vld [vmem:[#allocation2 + $0x80] sm:$0xff]
      %v658 = vld [vmem:[#allocation2 + $0x88] sm:$0xff]
      %v659 = vld [vmem:[#allocation2 + $0x90] sm:$0xff]
      %v660 = vld [vmem:[#allocation2 + $0x98] sm:$0xff]
      %v661 = vld [vmem:[#allocation2 + $0xa0] sm:$0xff]
      %v662 = vld [vmem:[#allocation2 + $0xa8] sm:$0xff]
      %v663 = vld [vmem:[#allocation2 + $0xb0] sm:$0xff]
      %v664 = vld [vmem:[#allocation2 + $0xb8] sm:$0xff]
      %v665 = vld [vmem:[#allocation2 + $0xc0] sm:$0xff]
      %v666 = vld [vmem:[#allocation2 + $0xc8] sm:$0xff]
      %v667 = vld [vmem:[#allocation2 + $0xd0] sm:$0xff]
      %v668 = vld [vmem:[#allocation2 + $0xd8] sm:$0xff]
      %v669 = vld [vmem:[#allocation2 + $0xe0] sm:$0xff]
      %v670 = vld [vmem:[#allocation2 + $0xe8] sm:$0xff]
      %v671 = vld [vmem:[#allocation2 + $0xf0] sm:$0xff]
      %v672 = vld [vmem:[#allocation2 + $0xf8] sm:$0xff]
      %v673 = vpack.c.bf16 %v642, %v641
      %v674 = vpack.c.bf16 %v644, %v643
      %v675 = vpack.c.bf16 %v646, %v645
      %v676 = vpack.c.bf16 %v648, %v647
      %v677 = vpack.c.bf16 %v650, %v649
      %v678 = vpack.c.bf16 %v652, %v651
      %v679 = vpack.c.bf16 %v654, %v653
      %v680 = vpack.c.bf16 %v656, %v655
      %v681 = vpack.c.bf16 %v658, %v657
      %v682 = vpack.c.bf16 %v660, %v659
      %v683 = vpack.c.bf16 %v662, %v661
      %v684 = vpack.c.bf16 %v664, %v663
      %v685 = vpack.c.bf16 %v666, %v665
      %v686 = vpack.c.bf16 %v668, %v667
      %v687 = vpack.c.bf16 %v670, %v669
      %v688 = vpack.c.bf16 %v672, %v671
      %v689 = vld [vmem:[%s3] sm:$0xf]
      %v690 = vld [vmem:[%s3 + $0x4] sm:$0xf]
      %v691 = vld [vmem:[%s3 + $0x8] sm:$0xf]
      %v692 = vld [vmem:[%s3 + $0xc] sm:$0xf]
      %v693 = vld [vmem:[%s3 + $0x10] sm:$0xf]
      %v694 = vld [vmem:[%s3 + $0x14] sm:$0xf]
      %v695 = vld [vmem:[%s3 + $0x18] sm:$0xf]
      %v696 = vld [vmem:[%s3 + $0x1c] sm:$0xf]
      %v697 = vld [vmem:[%s3 + $0x20] sm:$0xf]
      %v698 = vld [vmem:[%s3 + $0x24] sm:$0xf]
      %v699 = vld [vmem:[%s3 + $0x28] sm:$0xf]
      %v700 = vld [vmem:[%s3 + $0x2c] sm:$0xf]
      %v701 = vld [vmem:[%s3 + $0x30] sm:$0xf]
      %v702 = vld [vmem:[%s3 + $0x34] sm:$0xf]
      %v703 = vld [vmem:[%s3 + $0x38] sm:$0xf]
      %v704 = vld [vmem:[%s3 + $0x3c] sm:$0xf]
      %v705 = vld [vmem:[%s2] sm:$0xf]
      %v706 = vld [vmem:[%s2 + $0x4] sm:$0xf]
      %v707 = vld [vmem:[%s2 + $0x8] sm:$0xf]
      %v708 = vld [vmem:[%s2 + $0xc] sm:$0xf]
      %v709 = vld [vmem:[%s2 + $0x10] sm:$0xf]
      %v710 = vld [vmem:[%s2 + $0x14] sm:$0xf]
      %v711 = vld [vmem:[%s2 + $0x18] sm:$0xf]
      %v712 = vld [vmem:[%s2 + $0x1c] sm:$0xf]
      %v713 = vld [vmem:[%s2 + $0x20] sm:$0xf]
      %v714 = vld [vmem:[%s2 + $0x24] sm:$0xf]
      %v715 = vld [vmem:[%s2 + $0x28] sm:$0xf]
      %v716 = vld [vmem:[%s2 + $0x2c] sm:$0xf]
      %v717 = vld [vmem:[%s2 + $0x30] sm:$0xf]
      %v718 = vld [vmem:[%s2 + $0x34] sm:$0xf]
      %v719 = vld [vmem:[%s2 + $0x38] sm:$0xf]
      %v720 = vld [vmem:[%s2 + $0x3c] sm:$0xf]
      %v721 = vld [vmem:[%s2 + $0x40] sm:$0xf]
      %v722 = vld [vmem:[%s2 + $0x44] sm:$0xf]
      %v723 = vld [vmem:[%s2 + $0x48] sm:$0xf]
      %v724 = vld [vmem:[%s2 + $0x4c] sm:$0xf]
      %v725 = vld [vmem:[%s2 + $0x50] sm:$0xf]
      %v726 = vld [vmem:[%s2 + $0x54] sm:$0xf]
      %v727 = vld [vmem:[%s2 + $0x58] sm:$0xf]
      %v728 = vld [vmem:[%s2 + $0x5c] sm:$0xf]
      %v729 = vld [vmem:[%s2 + $0x60] sm:$0xf]
      %v730 = vld [vmem:[%s2 + $0x64] sm:$0xf]
      %v731 = vld [vmem:[%s2 + $0x68] sm:$0xf]
      %v732 = vld [vmem:[%s2 + $0x6c] sm:$0xf]
      %v733 = vld [vmem:[%s2 + $0x70] sm:$0xf]
      %v734 = vld [vmem:[%s2 + $0x74] sm:$0xf]
      %v735 = vld [vmem:[%s2 + $0x78] sm:$0xf]
      %v736 = vld [vmem:[%s2 + $0x7c] sm:$0xf]
      %v737 = vld [vmem:[%s4] sm:$0xf]
      %v738 = vld [vmem:[%s4 + $0x4] sm:$0xf]
      %v739 = vld [vmem:[%s4 + $0x8] sm:$0xf]
      %v740 = vld [vmem:[%s4 + $0xc] sm:$0xf]
      %v741 = vld [vmem:[%s4 + $0x10] sm:$0xf]
      %v742 = vld [vmem:[%s4 + $0x14] sm:$0xf]
      %v743 = vld [vmem:[%s4 + $0x18] sm:$0xf]
      %v744 = vld [vmem:[%s4 + $0x1c] sm:$0xf]
      %v745 = vld [vmem:[%s4 + $0x20] sm:$0xf]
      %v746 = vld [vmem:[%s4 + $0x24] sm:$0xf]
      %v747 = vld [vmem:[%s4 + $0x28] sm:$0xf]
      %v748 = vld [vmem:[%s4 + $0x2c] sm:$0xf]
      %v749 = vld [vmem:[%s4 + $0x30] sm:$0xf]
      %v750 = vld [vmem:[%s4 + $0x34] sm:$0xf]
      %v751 = vld [vmem:[%s4 + $0x38] sm:$0xf]
      %v752 = vld [vmem:[%s4 + $0x3c] sm:$0xf]
      %v785 = vunpack.c.l.b16 %v705
      %v786 = vunpack.c.l.b16 %v706
      %v787 = vunpack.c.l.b16 %v707
      %v788 = vunpack.c.l.b16 %v708
      %v789 = vunpack.c.l.b16 %v709
      %v790 = vunpack.c.l.b16 %v710
      %v791 = vunpack.c.l.b16 %v711
      %v792 = vunpack.c.l.b16 %v712
      %v793 = vunpack.c.l.b16 %v713
      %v794 = vunpack.c.l.b16 %v714
      %v795 = vunpack.c.l.b16 %v715
      %v796 = vunpack.c.l.b16 %v716
      %v797 = vunpack.c.l.b16 %v717
      %v798 = vunpack.c.l.b16 %v718
      %v799 = vunpack.c.l.b16 %v719
      %v800 = vunpack.c.l.b16 %v720
      %v801 = vunpack.c.l.b16 %v721
      %v802 = vunpack.c.l.b16 %v722
      %v803 = vunpack.c.l.b16 %v723
      %v804 = vunpack.c.l.b16 %v724
      %v805 = vunpack.c.l.b16 %v725
      %v806 = vunpack.c.l.b16 %v726
      %v807 = vunpack.c.l.b16 %v727
      %v808 = vunpack.c.l.b16 %v728
      %v809 = vunpack.c.l.b16 %v729
      %v810 = vunpack.c.l.b16 %v730
      %v811 = vunpack.c.l.b16 %v731
      %v812 = vunpack.c.l.b16 %v732
      %v813 = vunpack.c.l.b16 %v733
      %v814 = vunpack.c.l.b16 %v734
      %v815 = vunpack.c.l.b16 %v735
      %v816 = vunpack.c.l.b16 %v736
      %v817 = vpack.c.b16 %v786, %v785
      %v818 = vpack.c.b16 %v788, %v787
      %v819 = vpack.c.b16 %v790, %v789
      %v820 = vpack.c.b16 %v792, %v791
      %v821 = vpack.c.b16 %v794, %v793
      %v822 = vpack.c.b16 %v796, %v795
      %v823 = vpack.c.b16 %v798, %v797
      %v824 = vpack.c.b16 %v800, %v799
      %v825 = vpack.c.b16 %v802, %v801
      %v826 = vpack.c.b16 %v804, %v803
      %v827 = vpack.c.b16 %v806, %v805
      %v828 = vpack.c.b16 %v808, %v807
      %v829 = vpack.c.b16 %v810, %v809
      %v830 = vpack.c.b16 %v812, %v811
      %v831 = vpack.c.b16 %v814, %v813
      %v832 = vpack.c.b16 %v816, %v815
      %v865 = vunpack.c.l.b16 %v737
      %v866 = vunpack.c.l.b16 %v738
      %v867 = vunpack.c.l.b16 %v739
      %v868 = vunpack.c.l.b16 %v740
      %v869 = vunpack.c.l.b16 %v741
      %v870 = vunpack.c.l.b16 %v742
      %v871 = vunpack.c.l.b16 %v743
      %v872 = vunpack.c.l.b16 %v744
      %v873 = vunpack.c.l.b16 %v745
      %v874 = vunpack.c.l.b16 %v746
      %v875 = vunpack.c.l.b16 %v747
      %v876 = vunpack.c.l.b16 %v748
      %v877 = vunpack.c.l.b16 %v749
      %v878 = vunpack.c.l.b16 %v750
      %v879 = vunpack.c.l.b16 %v751
      %v880 = vunpack.c.l.b16 %v752
      %v881 = vpack.c.b16 %v866, %v865
      %v882 = vpack.c.b16 %v868, %v867
      %v883 = vpack.c.b16 %v870, %v869
      %v884 = vpack.c.b16 %v872, %v871
      %v885 = vpack.c.b16 %v874, %v873
      %v886 = vpack.c.b16 %v876, %v875
      %v887 = vpack.c.b16 %v878, %v877
      %v888 = vpack.c.b16 %v880, %v879
      %897 = vmatprep.subr.bf16.mxu0 0
      %898 = vmatpush1.bf16.msra.mxu0 %v881
      %899 = vmatprep.subr.bf16.mxu0 0
      %900 = vmatpush1.bf16.msra.mxu0 %v882
      %901 = vmatprep.subr.bf16.mxu0 0
      %902 = vmatpush1.bf16.msra.mxu0 %v883
      %903 = vmatprep.subr.bf16.mxu0 0
      %904 = vmatpush1.bf16.msra.mxu0 %v884
      %905 = vmatprep.subr.bf16.mxu0 0
      %906 = vmatpush1.bf16.msra.mxu0 %v885
      %907 = vmatprep.subr.bf16.mxu0 0
      %908 = vmatpush1.bf16.msra.mxu0 %v886
      %909 = vmatprep.subr.bf16.mxu0 0
      %910 = vmatpush1.bf16.msra.mxu0 %v887
      %911 = vmatprep.subr.bf16.mxu0 0
      %912 = vmatpush1.bf16.msra.mxu0 %v888
      %913 = vmatprep.subr.bf16.mxu0 0
      %914 = vmatpush1.bf16.msra.mxu0 0
      %915 = vmatprep.subr.bf16.mxu0 0
      %916 = vmatpush1.bf16.msra.mxu0 0
      %917 = vmatprep.subr.bf16.mxu0 0
      %918 = vmatpush1.bf16.msra.mxu0 0
      %919 = vmatprep.subr.bf16.mxu0 0
      %920 = vmatpush1.bf16.msra.mxu0 0
      %921 = vmatprep.subr.bf16.mxu0 0
      %922 = vmatpush1.bf16.msra.mxu0 0
      %923 = vmatprep.subr.bf16.mxu0 0
      %924 = vmatpush1.bf16.msra.mxu0 0
      %925 = vmatprep.subr.bf16.mxu0 0
      %926 = vmatpush1.bf16.msra.mxu0 0
      %927 = vmatprep.subr.bf16.mxu0 0
      %928 = vmatpush1.bf16.msra.mxu0 0
      %929 = vmatprep.mubr.bf16.mxu0 0
      %930 = vmatmul.mubr.bf16.gmra.mrb[0].mxu0 %v817
      %v931 = vpop.f32.mrb[0].mxu0
      %v932 = vadd.f32 0.0, %v931
      %v933 = vpop.f32.mrb[0].mxu0
      %v934 = vpop.f32.mrb[0].mxu0
      %v935 = vadd.f32 0.0, %v934
      %v936 = vpop.f32.mrb[0].mxu0
      %937 = vmatprep.mubr.bf16.mxu0 0
      %938 = vmatmul.mubr.bf16.gmra.mrb[0].mxu0 %v818
      %v939 = vpop.f32.mrb[0].mxu0
      %v940 = vadd.f32 0.0, %v939
      %v941 = vpop.f32.mrb[0].mxu0
      %v942 = vpop.f32.mrb[0].mxu0
      %v943 = vadd.f32 0.0, %v942
      %v944 = vpop.f32.mrb[0].mxu0
      %945 = vmatprep.mubr.bf16.mxu0 0
      %946 = vmatmul.mubr.bf16.gmra.mrb[0].mxu0 %v819
      %v947 = vpop.f32.mrb[0].mxu0
      %v948 = vadd.f32 0.0, %v947
      %v949 = vpop.f32.mrb[0].mxu0
      %v950 = vpop.f32.mrb[0].mxu0
      %v951 = vadd.f32 0.0, %v950
      %v952 = vpop.f32.mrb[0].mxu0
      %953 = vmatprep.mubr.bf16.mxu0 0
      %954 = vmatmul.mubr.bf16.gmra.mrb[0].mxu0 %v820
      %v955 = vpop.f32.mrb[0].mxu0
      %v956 = vadd.f32 0.0, %v955
      %v957 = vpop.f32.mrb[0].mxu0
      %v958 = vpop.f32.mrb[0].mxu0
      %v959 = vadd.f32 0.0, %v958
      %v960 = vpop.f32.mrb[0].mxu0
      %961 = vmatprep.mubr.bf16.mxu0 0
      %962 = vmatmul.mubr.bf16.gmra.mrb[0].mxu0 %v821
      %v963 = vpop.f32.mrb[0].mxu0
      %v964 = vadd.f32 0.0, %v963
      %v965 = vpop.f32.mrb[0].mxu0
      %v966 = vpop.f32.mrb[0].mxu0
      %v967 = vadd.f32 0.0, %v966
      %v968 = vpop.f32.mrb[0].mxu0
      %969 = vmatprep.mubr.bf16.mxu0 0
      %970 = vmatmul.mubr.bf16.gmra.mrb[0].mxu0 %v822
      %v971 = vpop.f32.mrb[0].mxu0
      %v972 = vadd.f32 0.0, %v971
      %v973 = vpop.f32.mrb[0].mxu0
      %v974 = vpop.f32.mrb[0].mxu0
      %v975 = vadd.f32 0.0, %v974
      %v976 = vpop.f32.mrb[0].mxu0
      %977 = vmatprep.mubr.bf16.mxu0 0
      %978 = vmatmul.mubr.bf16.gmra.mrb[0].mxu0 %v823
      %v979 = vpop.f32.mrb[0].mxu0
      %v980 = vadd.f32 0.0, %v979
      %v981 = vpop.f32.mrb[0].mxu0
      %v982 = vpop.f32.mrb[0].mxu0
      %v983 = vadd.f32 0.0, %v982
      %v984 = vpop.f32.mrb[0].mxu0
      %985 = vmatprep.mubr.bf16.mxu0 0
      %986 = vmatmul.mubr.bf16.gmra.mrb[0].mxu0 %v824
      %v987 = vpop.f32.mrb[0].mxu0
      %v988 = vadd.f32 0.0, %v987
      %v989 = vpop.f32.mrb[0].mxu0
      %v990 = vpop.f32.mrb[0].mxu0
      %v991 = vadd.f32 0.0, %v990
      %v992 = vpop.f32.mrb[0].mxu0
      %993 = vmatprep.mubr.bf16.mxu0 0
      %994 = vmatmul.mubr.bf16.gmra.mrb[0].mxu0 %v825
      %v995 = vpop.f32.mrb[0].mxu0
      %v996 = vadd.f32 0.0, %v995
      %v997 = vpop.f32.mrb[0].mxu0
      %v998 = vpop.f32.mrb[0].mxu0
      %v999 = vadd.f32 0.0, %v998
      %v1000 = vpop.f32.mrb[0].mxu0
      %1001 = vmatprep.mubr.bf16.mxu0 0
      %1002 = vmatmul.mubr.bf16.gmra.mrb[0].mxu0 %v826
      %v1003 = vpop.f32.mrb[0].mxu0
      %v1004 = vadd.f32 0.0, %v1003
      %v1005 = vpop.f32.mrb[0].mxu0
      %v1006 = vpop.f32.mrb[0].mxu0
      %v1007 = vadd.f32 0.0, %v1006
      %v1008 = vpop.f32.mrb[0].mxu0
      %1009 = vmatprep.mubr.bf16.mxu0 0
      %1010 = vmatmul.mubr.bf16.gmra.mrb[0].mxu0 %v827
      %v1011 = vpop.f32.mrb[0].mxu0
      %v1012 = vadd.f32 0.0, %v1011
      %v1013 = vpop.f32.mrb[0].mxu0
      %v1014 = vpop.f32.mrb[0].mxu0
      %v1015 = vadd.f32 0.0, %v1014
      %v1016 = vpop.f32.mrb[0].mxu0
      %1017 = vmatprep.mubr.bf16.mxu0 0
      %1018 = vmatmul.mubr.bf16.gmra.mrb[0].mxu0 %v828
      %v1019 = vpop.f32.mrb[0].mxu0
      %v1020 = vadd.f32 0.0, %v1019
      %v1021 = vpop.f32.mrb[0].mxu0
      %v1022 = vpop.f32.mrb[0].mxu0
      %v1023 = vadd.f32 0.0, %v1022
      %v1024 = vpop.f32.mrb[0].mxu0
      %1025 = vmatprep.mubr.bf16.mxu0 0
      %1026 = vmatmul.mubr.bf16.gmra.mrb[0].mxu0 %v829
      %v1027 = vpop.f32.mrb[0].mxu0
      %v1028 = vadd.f32 0.0, %v1027
      %v1029 = vpop.f32.mrb[0].mxu0
      %v1030 = vpop.f32.mrb[0].mxu0
      %v1031 = vadd.f32 0.0, %v1030
      %v1032 = vpop.f32.mrb[0].mxu0
      %1033 = vmatprep.mubr.bf16.mxu0 0
      %1034 = vmatmul.mubr.bf16.gmra.mrb[0].mxu0 %v830
      %v1035 = vpop.f32.mrb[0].mxu0
      %v1036 = vadd.f32 0.0, %v1035
      %v1037 = vpop.f32.mrb[0].mxu0
      %v1038 = vpop.f32.mrb[0].mxu0
      %v1039 = vadd.f32 0.0, %v1038
      %v1040 = vpop.f32.mrb[0].mxu0
      %1041 = vmatprep.mubr.bf16.mxu0 0
      %1042 = vmatmul.mubr.bf16.gmra.mrb[0].mxu0 %v831
      %v1043 = vpop.f32.mrb[0].mxu0
      %v1044 = vadd.f32 0.0, %v1043
      %v1045 = vpop.f32.mrb[0].mxu0
      %v1046 = vpop.f32.mrb[0].mxu0
      %v1047 = vadd.f32 0.0, %v1046
      %v1048 = vpop.f32.mrb[0].mxu0
      %1049 = vmatprep.mubr.bf16.mxu0 0
      %1050 = vmatmul.mubr.bf16.gmra.mrb[0].mxu0 %v832
      %v1051 = vpop.f32.mrb[0].mxu0
      %v1052 = vadd.f32 0.0, %v1051
      %v1053 = vpop.f32.mrb[0].mxu0
      %v1054 = vpop.f32.mrb[0].mxu0
      %v1055 = vadd.f32 0.0, %v1054
      %v1056 = vpop.f32.mrb[0].mxu0
      %1057 = vdwg.mxu0
      %v1074 = vunpack.c.l.b16 %v689
      %v1075 = vunpack.c.l.b16 %v690
      %v1076 = vunpack.c.l.b16 %v691
      %v1077 = vunpack.c.l.b16 %v692
      %v1078 = vunpack.c.l.b16 %v693
      %v1079 = vunpack.c.l.b16 %v694
      %v1080 = vunpack.c.l.b16 %v695
      %v1081 = vunpack.c.l.b16 %v696
      %v1082 = vunpack.c.l.b16 %v697
      %v1083 = vunpack.c.l.b16 %v698
      %v1084 = vunpack.c.l.b16 %v699
      %v1085 = vunpack.c.l.b16 %v700
      %v1086 = vunpack.c.l.b16 %v701
      %v1087 = vunpack.c.l.b16 %v702
      %v1088 = vunpack.c.l.b16 %v703
      %v1089 = vunpack.c.l.b16 %v704
      %v1090 = vpack.c.b16 %v1075, %v1074
      %v1091 = vpack.c.b16 %v1077, %v1076
      %v1092 = vpack.c.b16 %v1079, %v1078
      %v1093 = vpack.c.b16 %v1081, %v1080
      %v1094 = vpack.c.b16 %v1083, %v1082
      %v1095 = vpack.c.b16 %v1085, %v1084
      %v1096 = vpack.c.b16 %v1087, %v1086
      %v1097 = vpack.c.b16 %v1089, %v1088
      %1106 = vmatprep.subr.bf16.mxu0 0
      %1107 = vmatpush1.bf16.msra.mxu0 %v1090
      %1108 = vmatprep.subr.bf16.mxu0 0
      %1109 = vmatpush1.bf16.msra.mxu0 %v1091
      %1110 = vmatprep.subr.bf16.mxu0 0
      %1111 = vmatpush1.bf16.msra.mxu0 %v1092
      %1112 = vmatprep.subr.bf16.mxu0 0
      %1113 = vmatpush1.bf16.msra.mxu0 %v1093
      %1114 = vmatprep.subr.bf16.mxu0 0
      %1115 = vmatpush1.bf16.msra.mxu0 %v1094
      %1116 = vmatprep.subr.bf16.mxu0 0
      %1117 = vmatpush1.bf16.msra.mxu0 %v1095
      %1118 = vmatprep.subr.bf16.mxu0 0
      %1119 = vmatpush1.bf16.msra.mxu0 %v1096
      %1120 = vmatprep.subr.bf16.mxu0 0
      %1121 = vmatpush1.bf16.msra.mxu0 %v1097
      %1122 = vmatprep.subr.bf16.mxu0 0
      %1123 = vmatpush1.bf16.msra.mxu0 0
      %1124 = vmatprep.subr.bf16.mxu0 0
      %1125 = vmatpush1.bf16.msra.mxu0 0
      %1126 = vmatprep.subr.bf16.mxu0 0
      %1127 = vmatpush1.bf16.msra.mxu0 0
      %1128 = vmatprep.subr.bf16.mxu0 0
      %1129 = vmatpush1.bf16.msra.mxu0 0
      %1130 = vmatprep.subr.bf16.mxu0 0
      %1131 = vmatpush1.bf16.msra.mxu0 0
      %1132 = vmatprep.subr.bf16.mxu0 0
      %1133 = vmatpush1.bf16.msra.mxu0 0
      %1134 = vmatprep.subr.bf16.mxu0 0
      %1135 = vmatpush1.bf16.msra.mxu0 0
      %1136 = vmatprep.subr.bf16.mxu0 0
      %1137 = vmatpush1.bf16.msra.mxu0 0
      %1138 = vmatprep.mubr.bf16.mxu0 0
      %1139 = vmatmul.mubr.bf16.gmra.mrb[0].mxu0 %v673
      %v1140 = vpop.f32.mrb[0].mxu0
      %v1141 = vadd.f32 %v932, %v1140
      %v1142 = vpop.f32.mrb[0].mxu0
      %v1143 = vpop.f32.mrb[0].mxu0
      %v1144 = vadd.f32 %v935, %v1143
      %v1145 = vpop.f32.mrb[0].mxu0
      %1146 = vmatprep.mubr.bf16.mxu0 0
      %1147 = vmatmul.mubr.bf16.gmra.mrb[0].mxu0 %v674
      %v1148 = vpop.f32.mrb[0].mxu0
      %v1149 = vadd.f32 %v940, %v1148
      %v1150 = vpop.f32.mrb[0].mxu0
      %v1151 = vpop.f32.mrb[0].mxu0
      %v1152 = vadd.f32 %v943, %v1151
      %v1153 = vpop.f32.mrb[0].mxu0
      %1154 = vmatprep.mubr.bf16.mxu0 0
      %1155 = vmatmul.mubr.bf16.gmra.mrb[0].mxu0 %v675
      %v1156 = vpop.f32.mrb[0].mxu0
      %v1157 = vadd.f32 %v948, %v1156
      %v1158 = vpop.f32.mrb[0].mxu0
      %v1159 = vpop.f32.mrb[0].mxu0
      %v1160 = vadd.f32 %v951, %v1159
      %v1161 = vpop.f32.mrb[0].mxu0
      %1162 = vmatprep.mubr.bf16.mxu0 0
      %1163 = vmatmul.mubr.bf16.gmra.mrb[0].mxu0 %v676
      %v1164 = vpop.f32.mrb[0].mxu0
      %v1165 = vadd.f32 %v956, %v1164
      %v1166 = vpop.f32.mrb[0].mxu0
      %v1167 = vpop.f32.mrb[0].mxu0
      %v1168 = vadd.f32 %v959, %v1167
      %v1169 = vpop.f32.mrb[0].mxu0
      %1170 = vmatprep.mubr.bf16.mxu0 0
      %1171 = vmatmul.mubr.bf16.gmra.mrb[0].mxu0 %v677
      %v1172 = vpop.f32.mrb[0].mxu0
      %v1173 = vadd.f32 %v964, %v1172
      %v1174 = vpop.f32.mrb[0].mxu0
      %v1175 = vpop.f32.mrb[0].mxu0
      %v1176 = vadd.f32 %v967, %v1175
      %v1177 = vpop.f32.mrb[0].mxu0
      %1178 = vmatprep.mubr.bf16.mxu0 0
      %1179 = vmatmul.mubr.bf16.gmra.mrb[0].mxu0 %v678
      %v1180 = vpop.f32.mrb[0].mxu0
      %v1181 = vadd.f32 %v972, %v1180
      %v1182 = vpop.f32.mrb[0].mxu0
      %v1183 = vpop.f32.mrb[0].mxu0
      %v1184 = vadd.f32 %v975, %v1183
      %v1185 = vpop.f32.mrb[0].mxu0
      %1186 = vmatprep.mubr.bf16.mxu0 0
      %1187 = vmatmul.mubr.bf16.gmra.mrb[0].mxu0 %v679
      %v1188 = vpop.f32.mrb[0].mxu0
      %v1189 = vadd.f32 %v980, %v1188
      %v1190 = vpop.f32.mrb[0].mxu0
      %v1191 = vpop.f32.mrb[0].mxu0
      %v1192 = vadd.f32 %v983, %v1191
      %v1193 = vpop.f32.mrb[0].mxu0
      %1194 = vmatprep.mubr.bf16.mxu0 0
      %1195 = vmatmul.mubr.bf16.gmra.mrb[0].mxu0 %v680
      %v1196 = vpop.f32.mrb[0].mxu0
      %v1197 = vadd.f32 %v988, %v1196
      %v1198 = vpop.f32.mrb[0].mxu0
      %v1199 = vpop.f32.mrb[0].mxu0
      %v1200 = vadd.f32 %v991, %v1199
      %v1201 = vpop.f32.mrb[0].mxu0
      %1202 = vmatprep.mubr.bf16.mxu0 0
      %1203 = vmatmul.mubr.bf16.gmra.mrb[0].mxu0 %v681
      %v1204 = vpop.f32.mrb[0].mxu0
      %v1205 = vadd.f32 %v996, %v1204
      %v1206 = vpop.f32.mrb[0].mxu0
      %v1207 = vpop.f32.mrb[0].mxu0
      %v1208 = vadd.f32 %v999, %v1207
      %v1209 = vpop.f32.mrb[0].mxu0
      %1210 = vmatprep.mubr.bf16.mxu0 0
      %1211 = vmatmul.mubr.bf16.gmra.mrb[0].mxu0 %v682
      %v1212 = vpop.f32.mrb[0].mxu0
      %v1213 = vadd.f32 %v1004, %v1212
      %v1214 = vpop.f32.mrb[0].mxu0
      %v1215 = vpop.f32.mrb[0].mxu0
      %v1216 = vadd.f32 %v1007, %v1215
      %v1217 = vpop.f32.mrb[0].mxu0
      %1218 = vmatprep.mubr.bf16.mxu0 0
      %1219 = vmatmul.mubr.bf16.gmra.mrb[0].mxu0 %v683
      %v1220 = vpop.f32.mrb[0].mxu0
      %v1221 = vadd.f32 %v1012, %v1220
      %v1222 = vpop.f32.mrb[0].mxu0
      %v1223 = vpop.f32.mrb[0].mxu0
      %v1224 = vadd.f32 %v1015, %v1223
      %v1225 = vpop.f32.mrb[0].mxu0
      %1226 = vmatprep.mubr.bf16.mxu0 0
      %1227 = vmatmul.mubr.bf16.gmra.mrb[0].mxu0 %v684
      %v1228 = vpop.f32.mrb[0].mxu0
      %v1229 = vadd.f32 %v1020, %v1228
      %v1230 = vpop.f32.mrb[0].mxu0
      %v1231 = vpop.f32.mrb[0].mxu0
      %v1232 = vadd.f32 %v1023, %v1231
      %v1233 = vpop.f32.mrb[0].mxu0
      %1234 = vmatprep.mubr.bf16.mxu0 0
      %1235 = vmatmul.mubr.bf16.gmra.mrb[0].mxu0 %v685
      %v1236 = vpop.f32.mrb[0].mxu0
      %v1237 = vadd.f32 %v1028, %v1236
      %v1238 = vpop.f32.mrb[0].mxu0
      %v1239 = vpop.f32.mrb[0].mxu0
      %v1240 = vadd.f32 %v1031, %v1239
      %v1241 = vpop.f32.mrb[0].mxu0
      %1242 = vmatprep.mubr.bf16.mxu0 0
      %1243 = vmatmul.mubr.bf16.gmra.mrb[0].mxu0 %v686
      %v1244 = vpop.f32.mrb[0].mxu0
      %v1245 = vadd.f32 %v1036, %v1244
      %v1246 = vpop.f32.mrb[0].mxu0
      %v1247 = vpop.f32.mrb[0].mxu0
      %v1248 = vadd.f32 %v1039, %v1247
      %v1249 = vpop.f32.mrb[0].mxu0
      %1250 = vmatprep.mubr.bf16.mxu0 0
      %1251 = vmatmul.mubr.bf16.gmra.mrb[0].mxu0 %v687
      %v1252 = vpop.f32.mrb[0].mxu0
      %v1253 = vadd.f32 %v1044, %v1252
      %v1254 = vpop.f32.mrb[0].mxu0
      %v1255 = vpop.f32.mrb[0].mxu0
      %v1256 = vadd.f32 %v1047, %v1255
      %v1257 = vpop.f32.mrb[0].mxu0
      %1258 = vmatprep.mubr.bf16.mxu0 0
      %1259 = vmatmul.mubr.bf16.gmra.mrb[0].mxu0 %v688
      %v1260 = vpop.f32.mrb[0].mxu0
      %v1261 = vadd.f32 %v1052, %v1260
      %v1262 = vpop.f32.mrb[0].mxu0
      %v1263 = vpop.f32.mrb[0].mxu0
      %v1264 = vadd.f32 %v1055, %v1263
      %v1265 = vpop.f32.mrb[0].mxu0
      %1266 = vdwg.mxu0
      %v1267 = vld [vmem:[%s5] sm:$0x1]
      %v1269 = vlaneseq
      %v1270 = vshrl.u32 %v1269, 7
      %v1271 = vsub.s32 0, %v1270
      %v1272 = vrot.slane %v1267, %v1271
      %v1274 = vadd.f32 %v1141, %v1272
      %v1275 = vadd.f32 %v1144, %v1272
      %v1276 = vadd.f32 %v1149, %v1272
      %v1277 = vadd.f32 %v1152, %v1272
      %v1278 = vadd.f32 %v1157, %v1272
      %v1279 = vadd.f32 %v1160, %v1272
      %v1280 = vadd.f32 %v1165, %v1272
      %v1281 = vadd.f32 %v1168, %v1272
      %v1282 = vadd.f32 %v1173, %v1272
      %v1283 = vadd.f32 %v1176, %v1272
      %v1284 = vadd.f32 %v1181, %v1272
      %v1285 = vadd.f32 %v1184, %v1272
      %v1286 = vadd.f32 %v1189, %v1272
      %v1287 = vadd.f32 %v1192, %v1272
      %v1288 = vadd.f32 %v1197, %v1272
      %v1289 = vadd.f32 %v1200, %v1272
      %v1290 = vadd.f32 %v1205, %v1272
      %v1291 = vadd.f32 %v1208, %v1272
      %v1292 = vadd.f32 %v1213, %v1272
      %v1293 = vadd.f32 %v1216, %v1272
      %v1294 = vadd.f32 %v1221, %v1272
      %v1295 = vadd.f32 %v1224, %v1272
      %v1296 = vadd.f32 %v1229, %v1272
      %v1297 = vadd.f32 %v1232, %v1272
      %v1298 = vadd.f32 %v1237, %v1272
      %v1299 = vadd.f32 %v1240, %v1272
      %v1300 = vadd.f32 %v1245, %v1272
      %v1301 = vadd.f32 %v1248, %v1272
      %v1302 = vadd.f32 %v1253, %v1272
      %v1303 = vadd.f32 %v1256, %v1272
      %v1304 = vadd.f32 %v1261, %v1272
      %v1305 = vadd.f32 %v1264, %v1272
      %v1306 = vpack.c.bf16 %v1275, %v1274
      %v1307 = vpack.c.bf16 %v1277, %v1276
      %v1308 = vpack.c.bf16 %v1279, %v1278
      %v1309 = vpack.c.bf16 %v1281, %v1280
      %v1310 = vpack.c.bf16 %v1283, %v1282
      %v1311 = vpack.c.bf16 %v1285, %v1284
      %v1312 = vpack.c.bf16 %v1287, %v1286
      %v1313 = vpack.c.bf16 %v1289, %v1288
      %v1314 = vpack.c.bf16 %v1291, %v1290
      %v1315 = vpack.c.bf16 %v1293, %v1292
      %v1316 = vpack.c.bf16 %v1295, %v1294
      %v1317 = vpack.c.bf16 %v1297, %v1296
      %v1318 = vpack.c.bf16 %v1299, %v1298
      %v1319 = vpack.c.bf16 %v1301, %v1300
      %v1320 = vpack.c.bf16 %v1303, %v1302
      %v1321 = vpack.c.bf16 %v1305, %v1304
      %v1338 = vunpack.c.l.b16 %v1306
      %v1339 = vunpack.c.h.b16 %v1306
      %v1340 = vunpack.c.l.b16 %v1307
      %v1341 = vunpack.c.h.b16 %v1307
      %v1342 = vunpack.c.l.b16 %v1308
      %v1343 = vunpack.c.h.b16 %v1308
      %v1344 = vunpack.c.l.b16 %v1309
      %v1345 = vunpack.c.h.b16 %v1309
      %v1346 = vunpack.c.l.b16 %v1310
      %v1347 = vunpack.c.h.b16 %v1310
      %v1348 = vunpack.c.l.b16 %v1311
      %v1349 = vunpack.c.h.b16 %v1311
      %v1350 = vunpack.c.l.b16 %v1312
      %v1351 = vunpack.c.h.b16 %v1312
      %v1352 = vunpack.c.l.b16 %v1313
      %v1353 = vunpack.c.h.b16 %v1313
      %v1354 = vunpack.c.l.b16 %v1314
      %v1355 = vunpack.c.h.b16 %v1314
      %v1356 = vunpack.c.l.b16 %v1315
      %v1357 = vunpack.c.h.b16 %v1315
      %v1358 = vunpack.c.l.b16 %v1316
      %v1359 = vunpack.c.h.b16 %v1316
      %v1360 = vunpack.c.l.b16 %v1317
      %v1361 = vunpack.c.h.b16 %v1317
      %v1362 = vunpack.c.l.b16 %v1318
      %v1363 = vunpack.c.h.b16 %v1318
      %v1364 = vunpack.c.l.b16 %v1319
      %v1365 = vunpack.c.h.b16 %v1319
      %v1366 = vunpack.c.l.b16 %v1320
      %v1367 = vunpack.c.h.b16 %v1320
      %v1368 = vunpack.c.l.b16 %v1321
      %v1369 = vunpack.c.h.b16 %v1321
      %v1370 = vpack.c.b16 %v1338, %v1338
      %v1371 = vpack.c.b16 %v1339, %v1339
      %v1372 = vpack.c.b16 %v1340, %v1340
      %v1373 = vpack.c.b16 %v1341, %v1341
      %v1374 = vpack.c.b16 %v1342, %v1342
      %v1375 = vpack.c.b16 %v1343, %v1343
      %v1376 = vpack.c.b16 %v1344, %v1344
      %v1377 = vpack.c.b16 %v1345, %v1345
      %v1378 = vpack.c.b16 %v1346, %v1346
      %v1379 = vpack.c.b16 %v1347, %v1347
      %v1380 = vpack.c.b16 %v1348, %v1348
      %v1381 = vpack.c.b16 %v1349, %v1349
      %v1382 = vpack.c.b16 %v1350, %v1350
      %v1383 = vpack.c.b16 %v1351, %v1351
      %v1384 = vpack.c.b16 %v1352, %v1352
      %v1385 = vpack.c.b16 %v1353, %v1353
      %v1386 = vpack.c.b16 %v1354, %v1354
      %v1387 = vpack.c.b16 %v1355, %v1355
      %v1388 = vpack.c.b16 %v1356, %v1356
      %v1389 = vpack.c.b16 %v1357, %v1357
      %v1390 = vpack.c.b16 %v1358, %v1358
      %v1391 = vpack.c.b16 %v1359, %v1359
      %v1392 = vpack.c.b16 %v1360, %v1360
      %v1393 = vpack.c.b16 %v1361, %v1361
      %v1394 = vpack.c.b16 %v1362, %v1362
      %v1395 = vpack.c.b16 %v1363, %v1363
      %v1396 = vpack.c.b16 %v1364, %v1364
      %v1397 = vpack.c.b16 %v1365, %v1365
      %v1398 = vpack.c.b16 %v1366, %v1366
      %v1399 = vpack.c.b16 %v1367, %v1367
      %v1400 = vpack.c.b16 %v1368, %v1368
      %v1401 = vpack.c.b16 %v1369, %v1369
      %1434 = vst [vmem:[#allocation3] sm:$0xf] %v1370
      %1435 = vst [vmem:[#allocation3 + $0x4] sm:$0xf] %v1371
      %1436 = vst [vmem:[#allocation3 + $0x8] sm:$0xf] %v1372
      %1437 = vst [vmem:[#allocation3 + $0xc] sm:$0xf] %v1373
      %1438 = vst [vmem:[#allocation3 + $0x10] sm:$0xf] %v1374
      %1439 = vst [vmem:[#allocation3 + $0x14] sm:$0xf] %v1375
      %1440 = vst [vmem:[#allocation3 + $0x18] sm:$0xf] %v1376
      %1441 = vst [vmem:[#allocation3 + $0x1c] sm:$0xf] %v1377
      %1442 = vst [vmem:[#allocation3 + $0x20] sm:$0xf] %v1378
      %1443 = vst [vmem:[#allocation3 + $0x24] sm:$0xf] %v1379
      %1444 = vst [vmem:[#allocation3 + $0x28] sm:$0xf] %v1380
      %1445 = vst [vmem:[#allocation3 + $0x2c] sm:$0xf] %v1381
      %1446 = vst [vmem:[#allocation3 + $0x30] sm:$0xf] %v1382
      %1447 = vst [vmem:[#allocation3 + $0x34] sm:$0xf] %v1383
      %1448 = vst [vmem:[#allocation3 + $0x38] sm:$0xf] %v1384
      %1449 = vst [vmem:[#allocation3 + $0x3c] sm:$0xf] %v1385
      %1450 = vst [vmem:[#allocation3 + $0x40] sm:$0xf] %v1386
      %1451 = vst [vmem:[#allocation3 + $0x44] sm:$0xf] %v1387
      %1452 = vst [vmem:[#allocation3 + $0x48] sm:$0xf] %v1388
      %1453 = vst [vmem:[#allocation3 + $0x4c] sm:$0xf] %v1389
      %1454 = vst [vmem:[#allocation3 + $0x50] sm:$0xf] %v1390
      %1455 = vst [vmem:[#allocation3 + $0x54] sm:$0xf] %v1391
      %1456 = vst [vmem:[#allocation3 + $0x58] sm:$0xf] %v1392
      %1457 = vst [vmem:[#allocation3 + $0x5c] sm:$0xf] %v1393
      %1458 = vst [vmem:[#allocation3 + $0x60] sm:$0xf] %v1394
      %1459 = vst [vmem:[#allocation3 + $0x64] sm:$0xf] %v1395
      %1460 = vst [vmem:[#allocation3 + $0x68] sm:$0xf] %v1396
      %1461 = vst [vmem:[#allocation3 + $0x6c] sm:$0xf] %v1397
      %1462 = vst [vmem:[#allocation3 + $0x70] sm:$0xf] %v1398
      %1463 = vst [vmem:[#allocation3 + $0x74] sm:$0xf] %v1399
      %1464 = vst [vmem:[#allocation3 + $0x78] sm:$0xf] %v1400
      %1465 = vst [vmem:[#allocation3 + $0x7c] sm:$0xf] %v1401
    $region33: #{sage_forward.5} parent=1 // pred_fallthru
      _
    // Predicated region
    $region34: #{sage_forward.5} parent=1 // pred_check
      _
    $region35: #{sage_forward.5} parent=1 // pred_check_branch
      %1467 = sbr.rel (0) target = $region37
    $region36: #{sage_forward.5} parent=1 // pred_region
      %s1469 = ssub.s32 2048, 2048
      %1470 = vsyncadd [#allocation4], %s1469
      %s1471 = sshll.u32 [#allocation3], 4
      %s1472 = int_to_ptr.vmem [resolvable:$true] %s1471
      %1477 = dma.vmem_to_hbm [thread:$0]  %s1472, 2048, %s6, [#allocation4], 64, 64, 4
    $region37: #{sage_forward.5} parent=1 // pred_fallthru
      _
    // Predicated region
    $region38: #{sage_forward.5} parent=1 // pred_check
      _
    $region39: #{sage_forward.5} parent=1 // pred_check_branch
      %1479 = sbr.rel (0) target = $region41
    $region40: #{sage_forward.5} parent=1 // pred_region
      %1480 = dma.done [#allocation4], 2048
    $region41: #{sage_forward.5} parent=1 // pred_fallthru
      _
    %1481 = vsyncpa [#allocation4], 1

// kernel: sage_forward.4
$region0: #{sage_forward.4}
  #allocation0 [shape = 'u32[]', space=smem, size = 0x4, offset = 0x4, fixed_abs, tag = 'smem constant byte address 0x4 - core index']
  #allocation1 [shape = 'u32[144,128]{1,0:T(1,128)}', space=vmem, size = 0x12000, scoped, tag = 'internal scratch']
  #allocation2 [shape = 'f32[256,128]{1,0:T(8,128)}', space=vmem, size = 0x20000, scoped, tag = 'scratch operand']
  %s0 = inlined_call_operand.vmem [shape: bf16[256,256], index: 0, kind: input, shape index: {}]
  %s1 = inlined_call_operand.vmem [shape: bf16[256,128], index: 1, kind: input, shape index: {}, may-alias: {1,2}]
  %s2 = inlined_call_operand.vmem [shape: bf16[256,128], index: 2, kind: input, shape index: {}, may-alias: {1,2}]
  %s3 = inlined_call_operand.vmem [shape: bf16[128,128], index: 3, kind: input, shape index: {}]
  %s4 = inlined_call_operand.vmem [shape: bf16[128,128], index: 4, kind: input, shape index: {}]
  %s5 = inlined_call_operand.vmem [shape: f32[1,128], index: 5, kind: input, shape index: {}]
  %s6 = inlined_call_operand.vmem [shape: bf16[256,128], index: 6, kind: output, shape index: {}]
  %s7 = sld [smem:[#allocation0]]
  $region42: #{sage_forward.4} parent=0
    _
  %s9 = ssub.s32 1, %s7
  %s10 = scalar_select 0, %s9, %s7
  // Predicated region
  $region2: #{sage_forward.4} parent=0 // pred_check
    _
  $region3: #{sage_forward.4} parent=0 // pred_check_branch
    %12 = sbr.rel (0) target = $region5
  $region4: #{sage_forward.4} parent=0 // pred_region
    _
  $region5: #{sage_forward.4} parent=0 // pred_fallthru
    _
  // Predicated region
  $region6: #{sage_forward.4} parent=0 // pred_check
    _
  $region7: #{sage_forward.4} parent=0 // pred_check_branch
    %14 = sbr.rel (0) target = $region9
  $region8: #{sage_forward.4} parent=0 // pred_region
    _
  $region9: #{sage_forward.4} parent=0 // pred_fallthru
    _
  // Predicated region
  $region10: #{sage_forward.4} parent=0 // pred_check
    _
  $region11: #{sage_forward.4} parent=0 // pred_check_branch
    %16 = sbr.rel (0) target = $region13
  $region12: #{sage_forward.4} parent=0 // pred_region
    _
  $region13: #{sage_forward.4} parent=0 // pred_fallthru
    _
  // Predicated region
  $region14: #{sage_forward.4} parent=0 // pred_check
    _
  $region15: #{sage_forward.4} parent=0 // pred_check_branch
    %18 = sbr.rel (0) target = $region17
  $region16: #{sage_forward.4} parent=0 // pred_region
    _
  $region17: #{sage_forward.4} parent=0 // pred_fallthru
    _
  // Predicated region
  $region18: #{sage_forward.4} parent=0 // pred_check
    _
  $region19: #{sage_forward.4} parent=0 // pred_check_branch
    %20 = sbr.rel (0) target = $region21
  $region20: #{sage_forward.4} parent=0 // pred_region
    _
  $region21: #{sage_forward.4} parent=0 // pred_fallthru
    _
  // Predicated region
  $region22: #{sage_forward.4} parent=0 // pred_check
    _
  $region23: #{sage_forward.4} parent=0 // pred_check_branch
    %22 = sbr.rel (0) target = $region25
  $region24: #{sage_forward.4} parent=0 // pred_region
    _
  $region25: #{sage_forward.4} parent=0 // pred_fallthru
    _
  %p24 = scmp.eq.s32.totalorder 0, 0
  // Predicated region
  $region26: #{sage_forward.4} parent=0 // pred_check
    %p25 = pneg %p24
  $region27: #{sage_forward.4} parent=0 // pred_check_branch
    %27 = sbr.rel (%p25) target = $region29
  $region28: #{sage_forward.4} parent=0 // pred_region
    %28 = vst [vmem:[#allocation2] sm:$0xff] 0.0
    %29 = vst [vmem:[#allocation2 + $0x8] sm:$0xff] 0.0
    %30 = vst [vmem:[#allocation2 + $0x10] sm:$0xff] 0.0
    %31 = vst [vmem:[#allocation2 + $0x18] sm:$0xff] 0.0
    %32 = vst [vmem:[#allocation2 + $0x20] sm:$0xff] 0.0
    %33 = vst [vmem:[#allocation2 + $0x28] sm:$0xff] 0.0
    %34 = vst [vmem:[#allocation2 + $0x30] sm:$0xff] 0.0
    %35 = vst [vmem:[#allocation2 + $0x38] sm:$0xff] 0.0
    %36 = vst [vmem:[#allocation2 + $0x40] sm:$0xff] 0.0
    %37 = vst [vmem:[#allocation2 + $0x48] sm:$0xff] 0.0
    %38 = vst [vmem:[#allocation2 + $0x50] sm:$0xff] 0.0
    %39 = vst [vmem:[#allocation2 + $0x58] sm:$0xff] 0.0
    %40 = vst [vmem:[#allocation2 + $0x60] sm:$0xff] 0.0
    %41 = vst [vmem:[#allocation2 + $0x68] sm:$0xff] 0.0
    %42 = vst [vmem:[#allocation2 + $0x70] sm:$0xff] 0.0
    %43 = vst [vmem:[#allocation2 + $0x78] sm:$0xff] 0.0
    %44 = vst [vmem:[#allocation2 + $0x80] sm:$0xff] 0.0
    %45 = vst [vmem:[#allocation2 + $0x88] sm:$0xff] 0.0
    %46 = vst [vmem:[#allocation2 + $0x90] sm:$0xff] 0.0
    %47 = vst [vmem:[#allocation2 + $0x98] sm:$0xff] 0.0
    %48 = vst [vmem:[#allocation2 + $0xa0] sm:$0xff] 0.0
    %49 = vst [vmem:[#allocation2 + $0xa8] sm:$0xff] 0.0
    %50 = vst [vmem:[#allocation2 + $0xb0] sm:$0xff] 0.0
    %51 = vst [vmem:[#allocation2 + $0xb8] sm:$0xff] 0.0
    %52 = vst [vmem:[#allocation2 + $0xc0] sm:$0xff] 0.0
    %53 = vst [vmem:[#allocation2 + $0xc8] sm:$0xff] 0.0
    %54 = vst [vmem:[#allocation2 + $0xd0] sm:$0xff] 0.0
    %55 = vst [vmem:[#allocation2 + $0xd8] sm:$0xff] 0.0
    %56 = vst [vmem:[#allocation2 + $0xe0] sm:$0xff] 0.0
    %57 = vst [vmem:[#allocation2 + $0xe8] sm:$0xff] 0.0
    %58 = vst [vmem:[#allocation2 + $0xf0] sm:$0xff] 0.0
    %59 = vst [vmem:[#allocation2 + $0xf8] sm:$0xff] 0.0
  $region29: #{sage_forward.4} parent=0 // pred_fallthru
    _
  %v60 = vld [vmem:[#allocation2] sm:$0xff]
  %v61 = vld [vmem:[#allocation2 + $0x8] sm:$0xff]
  %v62 = vld [vmem:[#allocation2 + $0x10] sm:$0xff]
  %v63 = vld [vmem:[#allocation2 + $0x18] sm:$0xff]
  %v64 = vld [vmem:[#allocation2 + $0x20] sm:$0xff]
  %v65 = vld [vmem:[#allocation2 + $0x28] sm:$0xff]
  %v66 = vld [vmem:[#allocation2 + $0x30] sm:$0xff]
  %v67 = vld [vmem:[#allocation2 + $0x38] sm:$0xff]
  %v68 = vld [vmem:[#allocation2 + $0x40] sm:$0xff]
  %v69 = vld [vmem:[#allocation2 + $0x48] sm:$0xff]
  %v70 = vld [vmem:[#allocation2 + $0x50] sm:$0xff]
  %v71 = vld [vmem:[#allocation2 + $0x58] sm:$0xff]
  %v72 = vld [vmem:[#allocation2 + $0x60] sm:$0xff]
  %v73 = vld [vmem:[#allocation2 + $0x68] sm:$0xff]
  %v74 = vld [vmem:[#allocation2 + $0x70] sm:$0xff]
  %v75 = vld [vmem:[#allocation2 + $0x78] sm:$0xff]
  %v76 = vld [vmem:[#allocation2 + $0x80] sm:$0xff]
  %v77 = vld [vmem:[#allocation2 + $0x88] sm:$0xff]
  %v78 = vld [vmem:[#allocation2 + $0x90] sm:$0xff]
  %v79 = vld [vmem:[#allocation2 + $0x98] sm:$0xff]
  %v80 = vld [vmem:[#allocation2 + $0xa0] sm:$0xff]
  %v81 = vld [vmem:[#allocation2 + $0xa8] sm:$0xff]
  %v82 = vld [vmem:[#allocation2 + $0xb0] sm:$0xff]
  %v83 = vld [vmem:[#allocation2 + $0xb8] sm:$0xff]
  %v84 = vld [vmem:[#allocation2 + $0xc0] sm:$0xff]
  %v85 = vld [vmem:[#allocation2 + $0xc8] sm:$0xff]
  %v86 = vld [vmem:[#allocation2 + $0xd0] sm:$0xff]
  %v87 = vld [vmem:[#allocation2 + $0xd8] sm:$0xff]
  %v88 = vld [vmem:[#allocation2 + $0xe0] sm:$0xff]
  %v89 = vld [vmem:[#allocation2 + $0xe8] sm:$0xff]
  %v90 = vld [vmem:[#allocation2 + $0xf0] sm:$0xff]
  %v91 = vld [vmem:[#allocation2 + $0xf8] sm:$0xff]
  %v92 = vld [vmem:[%s0] sm:$0xff]
  %v93 = vld [vmem:[%s0 + $0x8] sm:$0xff]
  %v94 = vld [vmem:[%s0 + $0x10] sm:$0xff]
  %v95 = vld [vmem:[%s0 + $0x18] sm:$0xff]
  %v96 = vld [vmem:[%s0 + $0x20] sm:$0xff]
  %v97 = vld [vmem:[%s0 + $0x28] sm:$0xff]
  %v98 = vld [vmem:[%s0 + $0x30] sm:$0xff]
  %v99 = vld [vmem:[%s0 + $0x38] sm:$0xff]
  %v100 = vld [vmem:[%s0 + $0x40] sm:$0xff]
  %v101 = vld [vmem:[%s0 + $0x48] sm:$0xff]
  %v102 = vld [vmem:[%s0 + $0x50] sm:$0xff]
  %v103 = vld [vmem:[%s0 + $0x58] sm:$0xff]
  %v104 = vld [vmem:[%s0 + $0x60] sm:$0xff]
  %v105 = vld [vmem:[%s0 + $0x68] sm:$0xff]
  %v106 = vld [vmem:[%s0 + $0x70] sm:$0xff]
  %v107 = vld [vmem:[%s0 + $0x78] sm:$0xff]
  %v108 = vld [vmem:[%s0 + $0x80] sm:$0xff]
  %v109 = vld [vmem:[%s0 + $0x88] sm:$0xff]
  %v110 = vld [vmem:[%s0 + $0x90] sm:$0xff]
  %v111 = vld [vmem:[%s0 + $0x98] sm:$0xff]
  %v112 = vld [vmem:[%s0 + $0xa0] sm:$0xff]
  %v113 = vld [vmem:[%s0 + $0xa8] sm:$0xff]
  %v114 = vld [vmem:[%s0 + $0xb0] sm:$0xff]
  %v115 = vld [vmem:[%s0 + $0xb8] sm:$0xff]
  %v116 = vld [vmem:[%s0 + $0xc0] sm:$0xff]
  %v117 = vld [vmem:[%s0 + $0xc8] sm:$0xff]
  %v118 = vld [vmem:[%s0 + $0xd0] sm:$0xff]
  %v119 = vld [vmem:[%s0 + $0xd8] sm:$0xff]
  %v120 = vld [vmem:[%s0 + $0xe0] sm:$0xff]
  %v121 = vld [vmem:[%s0 + $0xe8] sm:$0xff]
  %v122 = vld [vmem:[%s0 + $0xf0] sm:$0xff]
  %v123 = vld [vmem:[%s0 + $0xf8] sm:$0xff]
  %v124 = vld [vmem:[%s1] sm:$0xf]
  %v125 = vld [vmem:[%s1 + $0x4] sm:$0xf]
  %v126 = vld [vmem:[%s1 + $0x8] sm:$0xf]
  %v127 = vld [vmem:[%s1 + $0xc] sm:$0xf]
  %v128 = vld [vmem:[%s1 + $0x10] sm:$0xf]
  %v129 = vld [vmem:[%s1 + $0x14] sm:$0xf]
  %v130 = vld [vmem:[%s1 + $0x18] sm:$0xf]
  %v131 = vld [vmem:[%s1 + $0x1c] sm:$0xf]
  %v132 = vld [vmem:[%s1 + $0x20] sm:$0xf]
  %v133 = vld [vmem:[%s1 + $0x24] sm:$0xf]
  %v134 = vld [vmem:[%s1 + $0x28] sm:$0xf]
  %v135 = vld [vmem:[%s1 + $0x2c] sm:$0xf]
  %v136 = vld [vmem:[%s1 + $0x30] sm:$0xf]
  %v137 = vld [vmem:[%s1 + $0x34] sm:$0xf]
  %v138 = vld [vmem:[%s1 + $0x38] sm:$0xf]
  %v139 = vld [vmem:[%s1 + $0x3c] sm:$0xf]
  %v140 = vld [vmem:[%s1 + $0x40] sm:$0xf]
  %v141 = vld [vmem:[%s1 + $0x44] sm:$0xf]
  %v142 = vld [vmem:[%s1 + $0x48] sm:$0xf]
  %v143 = vld [vmem:[%s1 + $0x4c] sm:$0xf]
  %v144 = vld [vmem:[%s1 + $0x50] sm:$0xf]
  %v145 = vld [vmem:[%s1 + $0x54] sm:$0xf]
  %v146 = vld [vmem:[%s1 + $0x58] sm:$0xf]
  %v147 = vld [vmem:[%s1 + $0x5c] sm:$0xf]
  %v148 = vld [vmem:[%s1 + $0x60] sm:$0xf]
  %v149 = vld [vmem:[%s1 + $0x64] sm:$0xf]
  %v150 = vld [vmem:[%s1 + $0x68] sm:$0xf]
  %v151 = vld [vmem:[%s1 + $0x6c] sm:$0xf]
  %v152 = vld [vmem:[%s1 + $0x70] sm:$0xf]
  %v153 = vld [vmem:[%s1 + $0x74] sm:$0xf]
  %v154 = vld [vmem:[%s1 + $0x78] sm:$0xf]
  %v155 = vld [vmem:[%s1 + $0x7c] sm:$0xf]
  %v188 = vunpack.c.l.b16 %v92
  %v189 = vunpack.c.h.b16 %v92
  %v190 = vunpack.c.l.b16 %v93
  %v191 = vunpack.c.h.b16 %v93
  %v192 = vunpack.c.l.b16 %v94
  %v193 = vunpack.c.h.b16 %v94
  %v194 = vunpack.c.l.b16 %v95
  %v195 = vunpack.c.h.b16 %v95
  %v196 = vunpack.c.l.b16 %v96
  %v197 = vunpack.c.h.b16 %v96
  %v198 = vunpack.c.l.b16 %v97
  %v199 = vunpack.c.h.b16 %v97
  %v200 = vunpack.c.l.b16 %v98
  %v201 = vunpack.c.h.b16 %v98
  %v202 = vunpack.c.l.b16 %v99
  %v203 = vunpack.c.h.b16 %v99
  %v204 = vunpack.c.l.b16 %v100
  %v205 = vunpack.c.h.b16 %v100
  %v206 = vunpack.c.l.b16 %v101
  %v207 = vunpack.c.h.b16 %v101
  %v208 = vunpack.c.l.b16 %v102
  %v209 = vunpack.c.h.b16 %v102
  %v210 = vunpack.c.l.b16 %v103
  %v211 = vunpack.c.h.b16 %v103
  %v212 = vunpack.c.l.b16 %v104
  %v213 = vunpack.c.h.b16 %v104
  %v214 = vunpack.c.l.b16 %v105
  %v215 = vunpack.c.h.b16 %v105
  %v216 = vunpack.c.l.b16 %v106
  %v217 = vunpack.c.h.b16 %v106
  %v218 = vunpack.c.l.b16 %v107
  %v219 = vunpack.c.h.b16 %v107
  %v220 = vunpack.c.l.b16 %v108
  %v221 = vunpack.c.h.b16 %v108
  %v222 = vunpack.c.l.b16 %v109
  %v223 = vunpack.c.h.b16 %v109
  %v224 = vunpack.c.l.b16 %v110
  %v225 = vunpack.c.h.b16 %v110
  %v226 = vunpack.c.l.b16 %v111
  %v227 = vunpack.c.h.b16 %v111
  %v228 = vunpack.c.l.b16 %v112
  %v229 = vunpack.c.h.b16 %v112
  %v230 = vunpack.c.l.b16 %v113
  %v231 = vunpack.c.h.b16 %v113
  %v232 = vunpack.c.l.b16 %v114
  %v233 = vunpack.c.h.b16 %v114
  %v234 = vunpack.c.l.b16 %v115
  %v235 = vunpack.c.h.b16 %v115
  %v236 = vunpack.c.l.b16 %v116
  %v237 = vunpack.c.h.b16 %v116
  %v238 = vunpack.c.l.b16 %v117
  %v239 = vunpack.c.h.b16 %v117
  %v240 = vunpack.c.l.b16 %v118
  %v241 = vunpack.c.h.b16 %v118
  %v242 = vunpack.c.l.b16 %v119
  %v243 = vunpack.c.h.b16 %v119
  %v244 = vunpack.c.l.b16 %v120
  %v245 = vunpack.c.h.b16 %v120
  %v246 = vunpack.c.l.b16 %v121
  %v247 = vunpack.c.h.b16 %v121
  %v248 = vunpack.c.l.b16 %v122
  %v249 = vunpack.c.h.b16 %v122
  %v250 = vunpack.c.l.b16 %v123
  %v251 = vunpack.c.h.b16 %v123
  %v252 = vpack.c.b16 %v190, %v188
  %v253 = vpack.c.b16 %v191, %v189
  %v254 = vpack.c.b16 %v194, %v192
  %v255 = vpack.c.b16 %v195, %v193
  %v256 = vpack.c.b16 %v198, %v196
  %v257 = vpack.c.b16 %v199, %v197
  %v258 = vpack.c.b16 %v202, %v200
  %v259 = vpack.c.b16 %v203, %v201
  %v260 = vpack.c.b16 %v206, %v204
  %v261 = vpack.c.b16 %v207, %v205
  %v262 = vpack.c.b16 %v210, %v208
  %v263 = vpack.c.b16 %v211, %v209
  %v264 = vpack.c.b16 %v214, %v212
  %v265 = vpack.c.b16 %v215, %v213
  %v266 = vpack.c.b16 %v218, %v216
  %v267 = vpack.c.b16 %v219, %v217
  %v268 = vpack.c.b16 %v222, %v220
  %v269 = vpack.c.b16 %v223, %v221
  %v270 = vpack.c.b16 %v226, %v224
  %v271 = vpack.c.b16 %v227, %v225
  %v272 = vpack.c.b16 %v230, %v228
  %v273 = vpack.c.b16 %v231, %v229
  %v274 = vpack.c.b16 %v234, %v232
  %v275 = vpack.c.b16 %v235, %v233
  %v276 = vpack.c.b16 %v238, %v236
  %v277 = vpack.c.b16 %v239, %v237
  %v278 = vpack.c.b16 %v242, %v240
  %v279 = vpack.c.b16 %v243, %v241
  %v280 = vpack.c.b16 %v246, %v244
  %v281 = vpack.c.b16 %v247, %v245
  %v282 = vpack.c.b16 %v250, %v248
  %v283 = vpack.c.b16 %v251, %v249
  %v348 = vunpack.c.l.b16 %v124
  %v349 = vunpack.c.l.b16 %v125
  %v350 = vunpack.c.l.b16 %v126
  %v351 = vunpack.c.l.b16 %v127
  %v352 = vunpack.c.l.b16 %v128
  %v353 = vunpack.c.l.b16 %v129
  %v354 = vunpack.c.l.b16 %v130
  %v355 = vunpack.c.l.b16 %v131
  %v356 = vunpack.c.l.b16 %v132
  %v357 = vunpack.c.l.b16 %v133
  %v358 = vunpack.c.l.b16 %v134
  %v359 = vunpack.c.l.b16 %v135
  %v360 = vunpack.c.l.b16 %v136
  %v361 = vunpack.c.l.b16 %v137
  %v362 = vunpack.c.l.b16 %v138
  %v363 = vunpack.c.l.b16 %v139
  %v364 = vunpack.c.l.b16 %v140
  %v365 = vunpack.c.l.b16 %v141
  %v366 = vunpack.c.l.b16 %v142
  %v367 = vunpack.c.l.b16 %v143
  %v368 = vunpack.c.l.b16 %v144
  %v369 = vunpack.c.l.b16 %v145
  %v370 = vunpack.c.l.b16 %v146
  %v371 = vunpack.c.l.b16 %v147
  %v372 = vunpack.c.l.b16 %v148
  %v373 = vunpack.c.l.b16 %v149
  %v374 = vunpack.c.l.b16 %v150
  %v375 = vunpack.c.l.b16 %v151
  %v376 = vunpack.c.l.b16 %v152
  %v377 = vunpack.c.l.b16 %v153
  %v378 = vunpack.c.l.b16 %v154
  %v379 = vunpack.c.l.b16 %v155
  %v380 = vpack.c.b16 %v349, %v348
  %v381 = vpack.c.b16 %v351, %v350
  %v382 = vpack.c.b16 %v353, %v352
  %v383 = vpack.c.b16 %v355, %v354
  %v384 = vpack.c.b16 %v357, %v356
  %v385 = vpack.c.b16 %v359, %v358
  %v386 = vpack.c.b16 %v361, %v360
  %v387 = vpack.c.b16 %v363, %v362
  %v388 = vpack.c.b16 %v365, %v364
  %v389 = vpack.c.b16 %v367, %v366
  %v390 = vpack.c.b16 %v369, %v368
  %v391 = vpack.c.b16 %v371, %v370
  %v392 = vpack.c.b16 %v373, %v372
  %v393 = vpack.c.b16 %v375, %v374
  %v394 = vpack.c.b16 %v377, %v376
  %v395 = vpack.c.b16 %v379, %v378
  %412 = vmatprep.subr.bf16.mxu0 0
  %413 = vmatpush1.bf16.msra.mxu0 %v380
  %414 = vmatprep.subr.bf16.mxu0 0
  %415 = vmatpush1.bf16.msra.mxu0 %v381
  %416 = vmatprep.subr.bf16.mxu0 0
  %417 = vmatpush1.bf16.msra.mxu0 %v382
  %418 = vmatprep.subr.bf16.mxu0 0
  %419 = vmatpush1.bf16.msra.mxu0 %v383
  %420 = vmatprep.subr.bf16.mxu0 0
  %421 = vmatpush1.bf16.msra.mxu0 %v384
  %422 = vmatprep.subr.bf16.mxu0 0
  %423 = vmatpush1.bf16.msra.mxu0 %v385
  %424 = vmatprep.subr.bf16.mxu0 0
  %425 = vmatpush1.bf16.msra.mxu0 %v386
  %426 = vmatprep.subr.bf16.mxu0 0
  %427 = vmatpush1.bf16.msra.mxu0 %v387
  %428 = vmatprep.subr.bf16.mxu0 0
  %429 = vmatpush1.bf16.msra.mxu0 %v388
  %430 = vmatprep.subr.bf16.mxu0 0
  %431 = vmatpush1.bf16.msra.mxu0 %v389
  %432 = vmatprep.subr.bf16.mxu0 0
  %433 = vmatpush1.bf16.msra.mxu0 %v390
  %434 = vmatprep.subr.bf16.mxu0 0
  %435 = vmatpush1.bf16.msra.mxu0 %v391
  %436 = vmatprep.subr.bf16.mxu0 0
  %437 = vmatpush1.bf16.msra.mxu0 %v392
  %438 = vmatprep.subr.bf16.mxu0 0
  %439 = vmatpush1.bf16.msra.mxu0 %v393
  %440 = vmatprep.subr.bf16.mxu0 0
  %441 = vmatpush1.bf16.msra.mxu0 %v394
  %442 = vmatprep.subr.bf16.mxu0 0
  %443 = vmatpush1.bf16.msra.mxu0 %v395
  %444 = vmatprep.mubr.bf16.mxu0 %v253
  %445 = vmatmul.mubr.bf16.gmra.mrb[0].mxu0 %v252
  %v446 = vpop.f32.mrb[0].mxu0
  %v447 = vadd.f32 0.0, %v446
  %v448 = vpop.f32.mrb[0].mxu0
  %v449 = vpop.f32.mrb[0].mxu0
  %v450 = vadd.f32 0.0, %v449
  %v451 = vpop.f32.mrb[0].mxu0
  %452 = vmatprep.mubr.bf16.mxu0 %v255
  %453 = vmatmul.mubr.bf16.gmra.mrb[0].mxu0 %v254
  %v454 = vpop.f32.mrb[0].mxu0
  %v455 = vadd.f32 0.0, %v454
  %v456 = vpop.f32.mrb[0].mxu0
  %v457 = vpop.f32.mrb[0].mxu0
  %v458 = vadd.f32 0.0, %v457
  %v459 = vpop.f32.mrb[0].mxu0
  %460 = vmatprep.mubr.bf16.mxu0 %v257
  %461 = vmatmul.mubr.bf16.gmra.mrb[0].mxu0 %v256
  %v462 = vpop.f32.mrb[0].mxu0
  %v463 = vadd.f32 0.0, %v462
  %v464 = vpop.f32.mrb[0].mxu0
  %v465 = vpop.f32.mrb[0].mxu0
  %v466 = vadd.f32 0.0, %v465
  %v467 = vpop.f32.mrb[0].mxu0
  %468 = vmatprep.mubr.bf16.mxu0 %v259
  %469 = vmatmul.mubr.bf16.gmra.mrb[0].mxu0 %v258
  %v470 = vpop.f32.mrb[0].mxu0
  %v471 = vadd.f32 0.0, %v470
  %v472 = vpop.f32.mrb[0].mxu0
  %v473 = vpop.f32.mrb[0].mxu0
  %v474 = vadd.f32 0.0, %v473
  %v475 = vpop.f32.mrb[0].mxu0
  %476 = vmatprep.mubr.bf16.mxu0 %v261
  %477 = vmatmul.mubr.bf16.gmra.mrb[0].mxu0 %v260
  %v478 = vpop.f32.mrb[0].mxu0
  %v479 = vadd.f32 0.0, %v478
  %v480 = vpop.f32.mrb[0].mxu0
  %v481 = vpop.f32.mrb[0].mxu0
  %v482 = vadd.f32 0.0, %v481
  %v483 = vpop.f32.mrb[0].mxu0
  %484 = vmatprep.mubr.bf16.mxu0 %v263
  %485 = vmatmul.mubr.bf16.gmra.mrb[0].mxu0 %v262
  %v486 = vpop.f32.mrb[0].mxu0
  %v487 = vadd.f32 0.0, %v486
  %v488 = vpop.f32.mrb[0].mxu0
  %v489 = vpop.f32.mrb[0].mxu0
  %v490 = vadd.f32 0.0, %v489
  %v491 = vpop.f32.mrb[0].mxu0
  %492 = vmatprep.mubr.bf16.mxu0 %v265
  %493 = vmatmul.mubr.bf16.gmra.mrb[0].mxu0 %v264
  %v494 = vpop.f32.mrb[0].mxu0
  %v495 = vadd.f32 0.0, %v494
  %v496 = vpop.f32.mrb[0].mxu0
  %v497 = vpop.f32.mrb[0].mxu0
  %v498 = vadd.f32 0.0, %v497
  %v499 = vpop.f32.mrb[0].mxu0
  %500 = vmatprep.mubr.bf16.mxu0 %v267
  %501 = vmatmul.mubr.bf16.gmra.mrb[0].mxu0 %v266
  %v502 = vpop.f32.mrb[0].mxu0
  %v503 = vadd.f32 0.0, %v502
  %v504 = vpop.f32.mrb[0].mxu0
  %v505 = vpop.f32.mrb[0].mxu0
  %v506 = vadd.f32 0.0, %v505
  %v507 = vpop.f32.mrb[0].mxu0
  %508 = vmatprep.mubr.bf16.mxu0 %v269
  %509 = vmatmul.mubr.bf16.gmra.mrb[0].mxu0 %v268
  %v510 = vpop.f32.mrb[0].mxu0
  %v511 = vadd.f32 0.0, %v510
  %v512 = vpop.f32.mrb[0].mxu0
  %v513 = vpop.f32.mrb[0].mxu0
  %v514 = vadd.f32 0.0, %v513
  %v515 = vpop.f32.mrb[0].mxu0
  %516 = vmatprep.mubr.bf16.mxu0 %v271
  %517 = vmatmul.mubr.bf16.gmra.mrb[0].mxu0 %v270
  %v518 = vpop.f32.mrb[0].mxu0
  %v519 = vadd.f32 0.0, %v518
  %v520 = vpop.f32.mrb[0].mxu0
  %v521 = vpop.f32.mrb[0].mxu0
  %v522 = vadd.f32 0.0, %v521
  %v523 = vpop.f32.mrb[0].mxu0
  %524 = vmatprep.mubr.bf16.mxu0 %v273
  %525 = vmatmul.mubr.bf16.gmra.mrb[0].mxu0 %v272
  %v526 = vpop.f32.mrb[0].mxu0
  %v527 = vadd.f32 0.0, %v526
  %v528 = vpop.f32.mrb[0].mxu0
  %v529 = vpop.f32.mrb[0].mxu0
  %v530 = vadd.f32 0.0, %v529
  %v531 = vpop.f32.mrb[0].mxu0
  %532 = vmatprep.mubr.bf16.mxu0 %v275
  %533 = vmatmul.mubr.bf16.gmra.mrb[0].mxu0 %v274
  %v534 = vpop.f32.mrb[0].mxu0
  %v535 = vadd.f32 0.0, %v534
  %v536 = vpop.f32.mrb[0].mxu0
  %v537 = vpop.f32.mrb[0].mxu0
  %v538 = vadd.f32 0.0, %v537
  %v539 = vpop.f32.mrb[0].mxu0
  %540 = vmatprep.mubr.bf16.mxu0 %v277
  %541 = vmatmul.mubr.bf16.gmra.mrb[0].mxu0 %v276
  %v542 = vpop.f32.mrb[0].mxu0
  %v543 = vadd.f32 0.0, %v542
  %v544 = vpop.f32.mrb[0].mxu0
  %v545 = vpop.f32.mrb[0].mxu0
  %v546 = vadd.f32 0.0, %v545
  %v547 = vpop.f32.mrb[0].mxu0
  %548 = vmatprep.mubr.bf16.mxu0 %v279
  %549 = vmatmul.mubr.bf16.gmra.mrb[0].mxu0 %v278
  %v550 = vpop.f32.mrb[0].mxu0
  %v551 = vadd.f32 0.0, %v550
  %v552 = vpop.f32.mrb[0].mxu0
  %v553 = vpop.f32.mrb[0].mxu0
  %v554 = vadd.f32 0.0, %v553
  %v555 = vpop.f32.mrb[0].mxu0
  %556 = vmatprep.mubr.bf16.mxu0 %v281
  %557 = vmatmul.mubr.bf16.gmra.mrb[0].mxu0 %v280
  %v558 = vpop.f32.mrb[0].mxu0
  %v559 = vadd.f32 0.0, %v558
  %v560 = vpop.f32.mrb[0].mxu0
  %v561 = vpop.f32.mrb[0].mxu0
  %v562 = vadd.f32 0.0, %v561
  %v563 = vpop.f32.mrb[0].mxu0
  %564 = vmatprep.mubr.bf16.mxu0 %v283
  %565 = vmatmul.mubr.bf16.gmra.mrb[0].mxu0 %v282
  %v566 = vpop.f32.mrb[0].mxu0
  %v567 = vadd.f32 0.0, %v566
  %v568 = vpop.f32.mrb[0].mxu0
  %v569 = vpop.f32.mrb[0].mxu0
  %v570 = vadd.f32 0.0, %v569
  %v571 = vpop.f32.mrb[0].mxu0
  %572 = vdwg.mxu0
  %v573 = vadd.f32 %v60, %v447
  %v574 = vadd.f32 %v61, %v450
  %v575 = vadd.f32 %v62, %v455
  %v576 = vadd.f32 %v63, %v458
  %v577 = vadd.f32 %v64, %v463
  %v578 = vadd.f32 %v65, %v466
  %v579 = vadd.f32 %v66, %v471
  %v580 = vadd.f32 %v67, %v474
  %v581 = vadd.f32 %v68, %v479
  %v582 = vadd.f32 %v69, %v482
  %v583 = vadd.f32 %v70, %v487
  %v584 = vadd.f32 %v71, %v490
  %v585 = vadd.f32 %v72, %v495
  %v586 = vadd.f32 %v73, %v498
  %v587 = vadd.f32 %v74, %v503
  %v588 = vadd.f32 %v75, %v506
  %v589 = vadd.f32 %v76, %v511
  %v590 = vadd.f32 %v77, %v514
  %v591 = vadd.f32 %v78, %v519
  %v592 = vadd.f32 %v79, %v522
  %v593 = vadd.f32 %v80, %v527
  %v594 = vadd.f32 %v81, %v530
  %v595 = vadd.f32 %v82, %v535
  %v596 = vadd.f32 %v83, %v538
  %v597 = vadd.f32 %v84, %v543
  %v598 = vadd.f32 %v85, %v546
  %v599 = vadd.f32 %v86, %v551
  %v600 = vadd.f32 %v87, %v554
  %v601 = vadd.f32 %v88, %v559
  %v602 = vadd.f32 %v89, %v562
  %v603 = vadd.f32 %v90, %v567
  %v604 = vadd.f32 %v91, %v570
  %605 = vst [vmem:[#allocation2] sm:$0xff] %v573
  %606 = vst [vmem:[#allocation2 + $0x8] sm:$0xff] %v574
  %607 = vst [vmem:[#allocation2 + $0x10] sm:$0xff] %v575
  %608 = vst [vmem:[#allocation2 + $0x18] sm:$0xff] %v576
  %609 = vst [vmem:[#allocation2 + $0x20] sm:$0xff] %v577
  %610 = vst [vmem:[#allocation2 + $0x28] sm:$0xff] %v578
  %611 = vst [vmem:[#allocation2 + $0x30] sm:$0xff] %v579
  %612 = vst [vmem:[#allocation2 + $0x38] sm:$0xff] %v580
  %613 = vst [vmem:[#allocation2 + $0x40] sm:$0xff] %v581
  %614 = vst [vmem:[#allocation2 + $0x48] sm:$0xff] %v582
  %615 = vst [vmem:[#allocation2 + $0x50] sm:$0xff] %v583
  %616 = vst [vmem:[#allocation2 + $0x58] sm:$0xff] %v584
  %617 = vst [vmem:[#allocation2 + $0x60] sm:$0xff] %v585
  %618 = vst [vmem:[#allocation2 + $0x68] sm:$0xff] %v586
  %619 = vst [vmem:[#allocation2 + $0x70] sm:$0xff] %v587
  %620 = vst [vmem:[#allocation2 + $0x78] sm:$0xff] %v588
  %621 = vst [vmem:[#allocation2 + $0x80] sm:$0xff] %v589
  %622 = vst [vmem:[#allocation2 + $0x88] sm:$0xff] %v590
  %623 = vst [vmem:[#allocation2 + $0x90] sm:$0xff] %v591
  %624 = vst [vmem:[#allocation2 + $0x98] sm:$0xff] %v592
  %625 = vst [vmem:[#allocation2 + $0xa0] sm:$0xff] %v593
  %626 = vst [vmem:[#allocation2 + $0xa8] sm:$0xff] %v594
  %627 = vst [vmem:[#allocation2 + $0xb0] sm:$0xff] %v595
  %628 = vst [vmem:[#allocation2 + $0xb8] sm:$0xff] %v596
  %629 = vst [vmem:[#allocation2 + $0xc0] sm:$0xff] %v597
  %630 = vst [vmem:[#allocation2 + $0xc8] sm:$0xff] %v598
  %631 = vst [vmem:[#allocation2 + $0xd0] sm:$0xff] %v599
  %632 = vst [vmem:[#allocation2 + $0xd8] sm:$0xff] %v600
  %633 = vst [vmem:[#allocation2 + $0xe0] sm:$0xff] %v601
  %634 = vst [vmem:[#allocation2 + $0xe8] sm:$0xff] %v602
  %635 = vst [vmem:[#allocation2 + $0xf0] sm:$0xff] %v603
  %636 = vst [vmem:[#allocation2 + $0xf8] sm:$0xff] %v604
  // Predicated region
  $region30: #{sage_forward.4} parent=0 // pred_check
    %p637 = pneg %p24
  $region31: #{sage_forward.4} parent=0 // pred_check_branch
    %639 = sbr.rel (%p637) target = $region33
  $region32: #{sage_forward.4} parent=0 // pred_region
    %v640 = vld [vmem:[#allocation2] sm:$0xff]
    %v641 = vld [vmem:[#allocation2 + $0x8] sm:$0xff]
    %v642 = vld [vmem:[#allocation2 + $0x10] sm:$0xff]
    %v643 = vld [vmem:[#allocation2 + $0x18] sm:$0xff]
    %v644 = vld [vmem:[#allocation2 + $0x20] sm:$0xff]
    %v645 = vld [vmem:[#allocation2 + $0x28] sm:$0xff]
    %v646 = vld [vmem:[#allocation2 + $0x30] sm:$0xff]
    %v647 = vld [vmem:[#allocation2 + $0x38] sm:$0xff]
    %v648 = vld [vmem:[#allocation2 + $0x40] sm:$0xff]
    %v649 = vld [vmem:[#allocation2 + $0x48] sm:$0xff]
    %v650 = vld [vmem:[#allocation2 + $0x50] sm:$0xff]
    %v651 = vld [vmem:[#allocation2 + $0x58] sm:$0xff]
    %v652 = vld [vmem:[#allocation2 + $0x60] sm:$0xff]
    %v653 = vld [vmem:[#allocation2 + $0x68] sm:$0xff]
    %v654 = vld [vmem:[#allocation2 + $0x70] sm:$0xff]
    %v655 = vld [vmem:[#allocation2 + $0x78] sm:$0xff]
    %v656 = vld [vmem:[#allocation2 + $0x80] sm:$0xff]
    %v657 = vld [vmem:[#allocation2 + $0x88] sm:$0xff]
    %v658 = vld [vmem:[#allocation2 + $0x90] sm:$0xff]
    %v659 = vld [vmem:[#allocation2 + $0x98] sm:$0xff]
    %v660 = vld [vmem:[#allocation2 + $0xa0] sm:$0xff]
    %v661 = vld [vmem:[#allocation2 + $0xa8] sm:$0xff]
    %v662 = vld [vmem:[#allocation2 + $0xb0] sm:$0xff]
    %v663 = vld [vmem:[#allocation2 + $0xb8] sm:$0xff]
    %v664 = vld [vmem:[#allocation2 + $0xc0] sm:$0xff]
    %v665 = vld [vmem:[#allocation2 + $0xc8] sm:$0xff]
    %v666 = vld [vmem:[#allocation2 + $0xd0] sm:$0xff]
    %v667 = vld [vmem:[#allocation2 + $0xd8] sm:$0xff]
    %v668 = vld [vmem:[#allocation2 + $0xe0] sm:$0xff]
    %v669 = vld [vmem:[#allocation2 + $0xe8] sm:$0xff]
    %v670 = vld [vmem:[#allocation2 + $0xf0] sm:$0xff]
    %v671 = vld [vmem:[#allocation2 + $0xf8] sm:$0xff]
    %v672 = vpack.c.bf16 %v641, %v640
    %v673 = vpack.c.bf16 %v643, %v642
    %v674 = vpack.c.bf16 %v645, %v644
    %v675 = vpack.c.bf16 %v647, %v646
    %v676 = vpack.c.bf16 %v649, %v648
    %v677 = vpack.c.bf16 %v651, %v650
    %v678 = vpack.c.bf16 %v653, %v652
    %v679 = vpack.c.bf16 %v655, %v654
    %v680 = vpack.c.bf16 %v657, %v656
    %v681 = vpack.c.bf16 %v659, %v658
    %v682 = vpack.c.bf16 %v661, %v660
    %v683 = vpack.c.bf16 %v663, %v662
    %v684 = vpack.c.bf16 %v665, %v664
    %v685 = vpack.c.bf16 %v667, %v666
    %v686 = vpack.c.bf16 %v669, %v668
    %v687 = vpack.c.bf16 %v671, %v670
    %v688 = vld [vmem:[%s3] sm:$0xf]
    %v689 = vld [vmem:[%s3 + $0x4] sm:$0xf]
    %v690 = vld [vmem:[%s3 + $0x8] sm:$0xf]
    %v691 = vld [vmem:[%s3 + $0xc] sm:$0xf]
    %v692 = vld [vmem:[%s3 + $0x10] sm:$0xf]
    %v693 = vld [vmem:[%s3 + $0x14] sm:$0xf]
    %v694 = vld [vmem:[%s3 + $0x18] sm:$0xf]
    %v695 = vld [vmem:[%s3 + $0x1c] sm:$0xf]
    %v696 = vld [vmem:[%s3 + $0x20] sm:$0xf]
    %v697 = vld [vmem:[%s3 + $0x24] sm:$0xf]
    %v698 = vld [vmem:[%s3 + $0x28] sm:$0xf]
    %v699 = vld [vmem:[%s3 + $0x2c] sm:$0xf]
    %v700 = vld [vmem:[%s3 + $0x30] sm:$0xf]
    %v701 = vld [vmem:[%s3 + $0x34] sm:$0xf]
    %v702 = vld [vmem:[%s3 + $0x38] sm:$0xf]
    %v703 = vld [vmem:[%s3 + $0x3c] sm:$0xf]
    %v704 = vld [vmem:[%s2] sm:$0xf]
    %v705 = vld [vmem:[%s2 + $0x4] sm:$0xf]
    %v706 = vld [vmem:[%s2 + $0x8] sm:$0xf]
    %v707 = vld [vmem:[%s2 + $0xc] sm:$0xf]
    %v708 = vld [vmem:[%s2 + $0x10] sm:$0xf]
    %v709 = vld [vmem:[%s2 + $0x14] sm:$0xf]
    %v710 = vld [vmem:[%s2 + $0x18] sm:$0xf]
    %v711 = vld [vmem:[%s2 + $0x1c] sm:$0xf]
    %v712 = vld [vmem:[%s2 + $0x20] sm:$0xf]
    %v713 = vld [vmem:[%s2 + $0x24] sm:$0xf]
    %v714 = vld [vmem:[%s2 + $0x28] sm:$0xf]
    %v715 = vld [vmem:[%s2 + $0x2c] sm:$0xf]
    %v716 = vld [vmem:[%s2 + $0x30] sm:$0xf]
    %v717 = vld [vmem:[%s2 + $0x34] sm:$0xf]
    %v718 = vld [vmem:[%s2 + $0x38] sm:$0xf]
    %v719 = vld [vmem:[%s2 + $0x3c] sm:$0xf]
    %v720 = vld [vmem:[%s2 + $0x40] sm:$0xf]
    %v721 = vld [vmem:[%s2 + $0x44] sm:$0xf]
    %v722 = vld [vmem:[%s2 + $0x48] sm:$0xf]
    %v723 = vld [vmem:[%s2 + $0x4c] sm:$0xf]
    %v724 = vld [vmem:[%s2 + $0x50] sm:$0xf]
    %v725 = vld [vmem:[%s2 + $0x54] sm:$0xf]
    %v726 = vld [vmem:[%s2 + $0x58] sm:$0xf]
    %v727 = vld [vmem:[%s2 + $0x5c] sm:$0xf]
    %v728 = vld [vmem:[%s2 + $0x60] sm:$0xf]
    %v729 = vld [vmem:[%s2 + $0x64] sm:$0xf]
    %v730 = vld [vmem:[%s2 + $0x68] sm:$0xf]
    %v731 = vld [vmem:[%s2 + $0x6c] sm:$0xf]
    %v732 = vld [vmem:[%s2 + $0x70] sm:$0xf]
    %v733 = vld [vmem:[%s2 + $0x74] sm:$0xf]
    %v734 = vld [vmem:[%s2 + $0x78] sm:$0xf]
    %v735 = vld [vmem:[%s2 + $0x7c] sm:$0xf]
    %v736 = vld [vmem:[%s4] sm:$0xf]
    %v737 = vld [vmem:[%s4 + $0x4] sm:$0xf]
    %v738 = vld [vmem:[%s4 + $0x8] sm:$0xf]
    %v739 = vld [vmem:[%s4 + $0xc] sm:$0xf]
    %v740 = vld [vmem:[%s4 + $0x10] sm:$0xf]
    %v741 = vld [vmem:[%s4 + $0x14] sm:$0xf]
    %v742 = vld [vmem:[%s4 + $0x18] sm:$0xf]
    %v743 = vld [vmem:[%s4 + $0x1c] sm:$0xf]
    %v744 = vld [vmem:[%s4 + $0x20] sm:$0xf]
    %v745 = vld [vmem:[%s4 + $0x24] sm:$0xf]
    %v746 = vld [vmem:[%s4 + $0x28] sm:$0xf]
    %v747 = vld [vmem:[%s4 + $0x2c] sm:$0xf]
    %v748 = vld [vmem:[%s4 + $0x30] sm:$0xf]
    %v749 = vld [vmem:[%s4 + $0x34] sm:$0xf]
    %v750 = vld [vmem:[%s4 + $0x38] sm:$0xf]
    %v751 = vld [vmem:[%s4 + $0x3c] sm:$0xf]
    %v784 = vunpack.c.l.b16 %v704
    %v785 = vunpack.c.l.b16 %v705
    %v786 = vunpack.c.l.b16 %v706
    %v787 = vunpack.c.l.b16 %v707
    %v788 = vunpack.c.l.b16 %v708
    %v789 = vunpack.c.l.b16 %v709
    %v790 = vunpack.c.l.b16 %v710
    %v791 = vunpack.c.l.b16 %v711
    %v792 = vunpack.c.l.b16 %v712
    %v793 = vunpack.c.l.b16 %v713
    %v794 = vunpack.c.l.b16 %v714
    %v795 = vunpack.c.l.b16 %v715
    %v796 = vunpack.c.l.b16 %v716
    %v797 = vunpack.c.l.b16 %v717
    %v798 = vunpack.c.l.b16 %v718
    %v799 = vunpack.c.l.b16 %v719
    %v800 = vunpack.c.l.b16 %v720
    %v801 = vunpack.c.l.b16 %v721
    %v802 = vunpack.c.l.b16 %v722
    %v803 = vunpack.c.l.b16 %v723
    %v804 = vunpack.c.l.b16 %v724
    %v805 = vunpack.c.l.b16 %v725
    %v806 = vunpack.c.l.b16 %v726
    %v807 = vunpack.c.l.b16 %v727
    %v808 = vunpack.c.l.b16 %v728
    %v809 = vunpack.c.l.b16 %v729
    %v810 = vunpack.c.l.b16 %v730
    %v811 = vunpack.c.l.b16 %v731
    %v812 = vunpack.c.l.b16 %v732
    %v813 = vunpack.c.l.b16 %v733
    %v814 = vunpack.c.l.b16 %v734
    %v815 = vunpack.c.l.b16 %v735
    %v816 = vpack.c.b16 %v785, %v784
    %v817 = vpack.c.b16 %v787, %v786
    %v818 = vpack.c.b16 %v789, %v788
    %v819 = vpack.c.b16 %v791, %v790
    %v820 = vpack.c.b16 %v793, %v792
    %v821 = vpack.c.b16 %v795, %v794
    %v822 = vpack.c.b16 %v797, %v796
    %v823 = vpack.c.b16 %v799, %v798
    %v824 = vpack.c.b16 %v801, %v800
    %v825 = vpack.c.b16 %v803, %v802
    %v826 = vpack.c.b16 %v805, %v804
    %v827 = vpack.c.b16 %v807, %v806
    %v828 = vpack.c.b16 %v809, %v808
    %v829 = vpack.c.b16 %v811, %v810
    %v830 = vpack.c.b16 %v813, %v812
    %v831 = vpack.c.b16 %v815, %v814
    %v864 = vunpack.c.l.b16 %v736
    %v865 = vunpack.c.l.b16 %v737
    %v866 = vunpack.c.l.b16 %v738
    %v867 = vunpack.c.l.b16 %v739
    %v868 = vunpack.c.l.b16 %v740
    %v869 = vunpack.c.l.b16 %v741
    %v870 = vunpack.c.l.b16 %v742
    %v871 = vunpack.c.l.b16 %v743
    %v872 = vunpack.c.l.b16 %v744
    %v873 = vunpack.c.l.b16 %v745
    %v874 = vunpack.c.l.b16 %v746
    %v875 = vunpack.c.l.b16 %v747
    %v876 = vunpack.c.l.b16 %v748
    %v877 = vunpack.c.l.b16 %v749
    %v878 = vunpack.c.l.b16 %v750
    %v879 = vunpack.c.l.b16 %v751
    %v880 = vpack.c.b16 %v865, %v864
    %v881 = vpack.c.b16 %v867, %v866
    %v882 = vpack.c.b16 %v869, %v868
    %v883 = vpack.c.b16 %v871, %v870
    %v884 = vpack.c.b16 %v873, %v872
    %v885 = vpack.c.b16 %v875, %v874
    %v886 = vpack.c.b16 %v877, %v876
    %v887 = vpack.c.b16 %v879, %v878
    %896 = vmatprep.subr.bf16.mxu0 0
    %897 = vmatpush1.bf16.msra.mxu0 %v880
    %898 = vmatprep.subr.bf16.mxu0 0
    %899 = vmatpush1.bf16.msra.mxu0 %v881
    %900 = vmatprep.subr.bf16.mxu0 0
    %901 = vmatpush1.bf16.msra.mxu0 %v882
    %902 = vmatprep.subr.bf16.mxu0 0
    %903 = vmatpush1.bf16.msra.mxu0 %v883
    %904 = vmatprep.subr.bf16.mxu0 0
    %905 = vmatpush1.bf16.msra.mxu0 %v884
    %906 = vmatprep.subr.bf16.mxu0 0
    %907 = vmatpush1.bf16.msra.mxu0 %v885
    %908 = vmatprep.subr.bf16.mxu0 0
    %909 = vmatpush1.bf16.msra.mxu0 %v886
    %910 = vmatprep.subr.bf16.mxu0 0
    %911 = vmatpush1.bf16.msra.mxu0 %v887
    %912 = vmatprep.subr.bf16.mxu0 0
    %913 = vmatpush1.bf16.msra.mxu0 0
    %914 = vmatprep.subr.bf16.mxu0 0
    %915 = vmatpush1.bf16.msra.mxu0 0
    %916 = vmatprep.subr.bf16.mxu0 0
    %917 = vmatpush1.bf16.msra.mxu0 0
    %918 = vmatprep.subr.bf16.mxu0 0
    %919 = vmatpush1.bf16.msra.mxu0 0
    %920 = vmatprep.subr.bf16.mxu0 0
    %921 = vmatpush1.bf16.msra.mxu0 0
    %922 = vmatprep.subr.bf16.mxu0 0
    %923 = vmatpush1.bf16.msra.mxu0 0
    %924 = vmatprep.subr.bf16.mxu0 0
    %925 = vmatpush1.bf16.msra.mxu0 0
    %926 = vmatprep.subr.bf16.mxu0 0
    %927 = vmatpush1.bf16.msra.mxu0 0
    %928 = vmatprep.mubr.bf16.mxu0 0
    %929 = vmatmul.mubr.bf16.gmra.mrb[0].mxu0 %v816
    %v930 = vpop.f32.mrb[0].mxu0
    %v931 = vadd.f32 0.0, %v930
    %v932 = vpop.f32.mrb[0].mxu0
    %v933 = vpop.f32.mrb[0].mxu0
    %v934 = vadd.f32 0.0, %v933
    %v935 = vpop.f32.mrb[0].mxu0
    %936 = vmatprep.mubr.bf16.mxu0 0
    %937 = vmatmul.mubr.bf16.gmra.mrb[0].mxu0 %v817
    %v938 = vpop.f32.mrb[0].mxu0
    %v939 = vadd.f32 0.0, %v938
    %v940 = vpop.f32.mrb[0].mxu0
    %v941 = vpop.f32.mrb[0].mxu0
    %v942 = vadd.f32 0.0, %v941
    %v943 = vpop.f32.mrb[0].mxu0
    %944 = vmatprep.mubr.bf16.mxu0 0
    %945 = vmatmul.mubr.bf16.gmra.mrb[0].mxu0 %v818
    %v946 = vpop.f32.mrb[0].mxu0
    %v947 = vadd.f32 0.0, %v946
    %v948 = vpop.f32.mrb[0].mxu0
    %v949 = vpop.f32.mrb[0].mxu0
    %v950 = vadd.f32 0.0, %v949
    %v951 = vpop.f32.mrb[0].mxu0
    %952 = vmatprep.mubr.bf16.mxu0 0
    %953 = vmatmul.mubr.bf16.gmra.mrb[0].mxu0 %v819
    %v954 = vpop.f32.mrb[0].mxu0
    %v955 = vadd.f32 0.0, %v954
    %v956 = vpop.f32.mrb[0].mxu0
    %v957 = vpop.f32.mrb[0].mxu0
    %v958 = vadd.f32 0.0, %v957
    %v959 = vpop.f32.mrb[0].mxu0
    %960 = vmatprep.mubr.bf16.mxu0 0
    %961 = vmatmul.mubr.bf16.gmra.mrb[0].mxu0 %v820
    %v962 = vpop.f32.mrb[0].mxu0
    %v963 = vadd.f32 0.0, %v962
    %v964 = vpop.f32.mrb[0].mxu0
    %v965 = vpop.f32.mrb[0].mxu0
    %v966 = vadd.f32 0.0, %v965
    %v967 = vpop.f32.mrb[0].mxu0
    %968 = vmatprep.mubr.bf16.mxu0 0
    %969 = vmatmul.mubr.bf16.gmra.mrb[0].mxu0 %v821
    %v970 = vpop.f32.mrb[0].mxu0
    %v971 = vadd.f32 0.0, %v970
    %v972 = vpop.f32.mrb[0].mxu0
    %v973 = vpop.f32.mrb[0].mxu0
    %v974 = vadd.f32 0.0, %v973
    %v975 = vpop.f32.mrb[0].mxu0
    %976 = vmatprep.mubr.bf16.mxu0 0
    %977 = vmatmul.mubr.bf16.gmra.mrb[0].mxu0 %v822
    %v978 = vpop.f32.mrb[0].mxu0
    %v979 = vadd.f32 0.0, %v978
    %v980 = vpop.f32.mrb[0].mxu0
    %v981 = vpop.f32.mrb[0].mxu0
    %v982 = vadd.f32 0.0, %v981
    %v983 = vpop.f32.mrb[0].mxu0
    %984 = vmatprep.mubr.bf16.mxu0 0
    %985 = vmatmul.mubr.bf16.gmra.mrb[0].mxu0 %v823
    %v986 = vpop.f32.mrb[0].mxu0
    %v987 = vadd.f32 0.0, %v986
    %v988 = vpop.f32.mrb[0].mxu0
    %v989 = vpop.f32.mrb[0].mxu0
    %v990 = vadd.f32 0.0, %v989
    %v991 = vpop.f32.mrb[0].mxu0
    %992 = vmatprep.mubr.bf16.mxu0 0
    %993 = vmatmul.mubr.bf16.gmra.mrb[0].mxu0 %v824
    %v994 = vpop.f32.mrb[0].mxu0
    %v995 = vadd.f32 0.0, %v994
    %v996 = vpop.f32.mrb[0].mxu0
    %v997 = vpop.f32.mrb[0].mxu0
    %v998 = vadd.f32 0.0, %v997
    %v999 = vpop.f32.mrb[0].mxu0
    %1000 = vmatprep.mubr.bf16.mxu0 0
    %1001 = vmatmul.mubr.bf16.gmra.mrb[0].mxu0 %v825
    %v1002 = vpop.f32.mrb[0].mxu0
    %v1003 = vadd.f32 0.0, %v1002
    %v1004 = vpop.f32.mrb[0].mxu0
    %v1005 = vpop.f32.mrb[0].mxu0
    %v1006 = vadd.f32 0.0, %v1005
    %v1007 = vpop.f32.mrb[0].mxu0
    %1008 = vmatprep.mubr.bf16.mxu0 0
    %1009 = vmatmul.mubr.bf16.gmra.mrb[0].mxu0 %v826
    %v1010 = vpop.f32.mrb[0].mxu0
    %v1011 = vadd.f32 0.0, %v1010
    %v1012 = vpop.f32.mrb[0].mxu0
    %v1013 = vpop.f32.mrb[0].mxu0
    %v1014 = vadd.f32 0.0, %v1013
    %v1015 = vpop.f32.mrb[0].mxu0
    %1016 = vmatprep.mubr.bf16.mxu0 0
    %1017 = vmatmul.mubr.bf16.gmra.mrb[0].mxu0 %v827
    %v1018 = vpop.f32.mrb[0].mxu0
    %v1019 = vadd.f32 0.0, %v1018
    %v1020 = vpop.f32.mrb[0].mxu0
    %v1021 = vpop.f32.mrb[0].mxu0
    %v1022 = vadd.f32 0.0, %v1021
    %v1023 = vpop.f32.mrb[0].mxu0
    %1024 = vmatprep.mubr.bf16.mxu0 0
    %1025 = vmatmul.mubr.bf16.gmra.mrb[0].mxu0 %v828
    %v1026 = vpop.f32.mrb[0].mxu0
    %v1027 = vadd.f32 0.0, %v1026
    %v1028 = vpop.f32.mrb[0].mxu0
    %v1029 = vpop.f32.mrb[0].mxu0
    %v1030 = vadd.f32 0.0, %v1029
    %v1031 = vpop.f32.mrb[0].mxu0
    %1032 = vmatprep.mubr.bf16.mxu0 0
    %1033 = vmatmul.mubr.bf16.gmra.mrb[0].mxu0 %v829
    %v1034 = vpop.f32.mrb[0].mxu0
    %v1035 = vadd.f32 0.0, %v1034
    %v1036 = vpop.f32.mrb[0].mxu0
    %v1037 = vpop.f32.mrb[0].mxu0
    %v1038 = vadd.f32 0.0, %v1037
    %v1039 = vpop.f32.mrb[0].mxu0
    %1040 = vmatprep.mubr.bf16.mxu0 0
    %1041 = vmatmul.mubr.bf16.gmra.mrb[0].mxu0 %v830
    %v1042 = vpop.f32.mrb[0].mxu0
    %v1043 = vadd.f32 0.0, %v1042
    %v1044 = vpop.f32.mrb[0].mxu0
    %v1045 = vpop.f32.mrb[0].mxu0
    %v1046 = vadd.f32 0.0, %v1045
    %v1047 = vpop.f32.mrb[0].mxu0
    %1048 = vmatprep.mubr.bf16.mxu0 0
    %1049 = vmatmul.mubr.bf16.gmra.mrb[0].mxu0 %v831
    %v1050 = vpop.f32.mrb[0].mxu0
    %v1051 = vadd.f32 0.0, %v1050
    %v1052 = vpop.f32.mrb[0].mxu0
    %v1053 = vpop.f32.mrb[0].mxu0
    %v1054 = vadd.f32 0.0, %v1053
    %v1055 = vpop.f32.mrb[0].mxu0
    %1056 = vdwg.mxu0
    %v1073 = vunpack.c.l.b16 %v688
    %v1074 = vunpack.c.l.b16 %v689
    %v1075 = vunpack.c.l.b16 %v690
    %v1076 = vunpack.c.l.b16 %v691
    %v1077 = vunpack.c.l.b16 %v692
    %v1078 = vunpack.c.l.b16 %v693
    %v1079 = vunpack.c.l.b16 %v694
    %v1080 = vunpack.c.l.b16 %v695
    %v1081 = vunpack.c.l.b16 %v696
    %v1082 = vunpack.c.l.b16 %v697
    %v1083 = vunpack.c.l.b16 %v698
    %v1084 = vunpack.c.l.b16 %v699
    %v1085 = vunpack.c.l.b16 %v700
    %v1086 = vunpack.c.l.b16 %v701
    %v1087 = vunpack.c.l.b16 %v702
    %v1088 = vunpack.c.l.b16 %v703
    %v1089 = vpack.c.b16 %v1074, %v1073
    %v1090 = vpack.c.b16 %v1076, %v1075
    %v1091 = vpack.c.b16 %v1078, %v1077
    %v1092 = vpack.c.b16 %v1080, %v1079
    %v1093 = vpack.c.b16 %v1082, %v1081
    %v1094 = vpack.c.b16 %v1084, %v1083
    %v1095 = vpack.c.b16 %v1086, %v1085
    %v1096 = vpack.c.b16 %v1088, %v1087
    %1105 = vmatprep.subr.bf16.mxu0 0
    %1106 = vmatpush1.bf16.msra.mxu0 %v1089
    %1107 = vmatprep.subr.bf16.mxu0 0
    %1108 = vmatpush1.bf16.msra.mxu0 %v1090
    %1109 = vmatprep.subr.bf16.mxu0 0
    %1110 = vmatpush1.bf16.msra.mxu0 %v1091
    %1111 = vmatprep.subr.bf16.mxu0 0
    %1112 = vmatpush1.bf16.msra.mxu0 %v1092
    %1113 = vmatprep.subr.bf16.mxu0 0
    %1114 = vmatpush1.bf16.msra.mxu0 %v1093
    %1115 = vmatprep.subr.bf16.mxu0 0
    %1116 = vmatpush1.bf16.msra.mxu0 %v1094
    %1117 = vmatprep.subr.bf16.mxu0 0
    %1118 = vmatpush1.bf16.msra.mxu0 %v1095
    %1119 = vmatprep.subr.bf16.mxu0 0
    %1120 = vmatpush1.bf16.msra.mxu0 %v1096
    %1121 = vmatprep.subr.bf16.mxu0 0
    %1122 = vmatpush1.bf16.msra.mxu0 0
    %1123 = vmatprep.subr.bf16.mxu0 0
    %1124 = vmatpush1.bf16.msra.mxu0 0
    %1125 = vmatprep.subr.bf16.mxu0 0
    %1126 = vmatpush1.bf16.msra.mxu0 0
    %1127 = vmatprep.subr.bf16.mxu0 0
    %1128 = vmatpush1.bf16.msra.mxu0 0
    %1129 = vmatprep.subr.bf16.mxu0 0
    %1130 = vmatpush1.bf16.msra.mxu0 0
    %1131 = vmatprep.subr.bf16.mxu0 0
    %1132 = vmatpush1.bf16.msra.mxu0 0
    %1133 = vmatprep.subr.bf16.mxu0 0
    %1134 = vmatpush1.bf16.msra.mxu0 0
    %1135 = vmatprep.subr.bf16.mxu0 0
    %1136 = vmatpush1.bf16.msra.mxu0 0
    %1137 = vmatprep.mubr.bf16.mxu0 0
    %1138 = vmatmul.mubr.bf16.gmra.mrb[0].mxu0 %v672
    %v1139 = vpop.f32.mrb[0].mxu0
    %v1140 = vadd.f32 %v931, %v1139
    %v1141 = vpop.f32.mrb[0].mxu0
    %v1142 = vpop.f32.mrb[0].mxu0
    %v1143 = vadd.f32 %v934, %v1142
    %v1144 = vpop.f32.mrb[0].mxu0
    %1145 = vmatprep.mubr.bf16.mxu0 0
    %1146 = vmatmul.mubr.bf16.gmra.mrb[0].mxu0 %v673
    %v1147 = vpop.f32.mrb[0].mxu0
    %v1148 = vadd.f32 %v939, %v1147
    %v1149 = vpop.f32.mrb[0].mxu0
    %v1150 = vpop.f32.mrb[0].mxu0
    %v1151 = vadd.f32 %v942, %v1150
    %v1152 = vpop.f32.mrb[0].mxu0
    %1153 = vmatprep.mubr.bf16.mxu0 0
    %1154 = vmatmul.mubr.bf16.gmra.mrb[0].mxu0 %v674
    %v1155 = vpop.f32.mrb[0].mxu0
    %v1156 = vadd.f32 %v947, %v1155
    %v1157 = vpop.f32.mrb[0].mxu0
    %v1158 = vpop.f32.mrb[0].mxu0
    %v1159 = vadd.f32 %v950, %v1158
    %v1160 = vpop.f32.mrb[0].mxu0
    %1161 = vmatprep.mubr.bf16.mxu0 0
    %1162 = vmatmul.mubr.bf16.gmra.mrb[0].mxu0 %v675
    %v1163 = vpop.f32.mrb[0].mxu0
    %v1164 = vadd.f32 %v955, %v1163
    %v1165 = vpop.f32.mrb[0].mxu0
    %v1166 = vpop.f32.mrb[0].mxu0
    %v1167 = vadd.f32 %v958, %v1166
    %v1168 = vpop.f32.mrb[0].mxu0
    %1169 = vmatprep.mubr.bf16.mxu0 0
    %1170 = vmatmul.mubr.bf16.gmra.mrb[0].mxu0 %v676
    %v1171 = vpop.f32.mrb[0].mxu0
    %v1172 = vadd.f32 %v963, %v1171
    %v1173 = vpop.f32.mrb[0].mxu0
    %v1174 = vpop.f32.mrb[0].mxu0
    %v1175 = vadd.f32 %v966, %v1174
    %v1176 = vpop.f32.mrb[0].mxu0
    %1177 = vmatprep.mubr.bf16.mxu0 0
    %1178 = vmatmul.mubr.bf16.gmra.mrb[0].mxu0 %v677
    %v1179 = vpop.f32.mrb[0].mxu0
    %v1180 = vadd.f32 %v971, %v1179
    %v1181 = vpop.f32.mrb[0].mxu0
    %v1182 = vpop.f32.mrb[0].mxu0
    %v1183 = vadd.f32 %v974, %v1182
    %v1184 = vpop.f32.mrb[0].mxu0
    %1185 = vmatprep.mubr.bf16.mxu0 0
    %1186 = vmatmul.mubr.bf16.gmra.mrb[0].mxu0 %v678
    %v1187 = vpop.f32.mrb[0].mxu0
    %v1188 = vadd.f32 %v979, %v1187
    %v1189 = vpop.f32.mrb[0].mxu0
    %v1190 = vpop.f32.mrb[0].mxu0
    %v1191 = vadd.f32 %v982, %v1190
    %v1192 = vpop.f32.mrb[0].mxu0
    %1193 = vmatprep.mubr.bf16.mxu0 0
    %1194 = vmatmul.mubr.bf16.gmra.mrb[0].mxu0 %v679
    %v1195 = vpop.f32.mrb[0].mxu0
    %v1196 = vadd.f32 %v987, %v1195
    %v1197 = vpop.f32.mrb[0].mxu0
    %v1198 = vpop.f32.mrb[0].mxu0
    %v1199 = vadd.f32 %v990, %v1198
    %v1200 = vpop.f32.mrb[0].mxu0
    %1201 = vmatprep.mubr.bf16.mxu0 0
    %1202 = vmatmul.mubr.bf16.gmra.mrb[0].mxu0 %v680
    %v1203 = vpop.f32.mrb[0].mxu0
    %v1204 = vadd.f32 %v995, %v1203
    %v1205 = vpop.f32.mrb[0].mxu0
    %v1206 = vpop.f32.mrb[0].mxu0
    %v1207 = vadd.f32 %v998, %v1206
    %v1208 = vpop.f32.mrb[0].mxu0
    %1209 = vmatprep.mubr.bf16.mxu0 0
    %1210 = vmatmul.mubr.bf16.gmra.mrb[0].mxu0 %v681
    %v1211 = vpop.f32.mrb[0].mxu0
    %v1212 = vadd.f32 %v1003, %v1211
    %v1213 = vpop.f32.mrb[0].mxu0
    %v1214 = vpop.f32.mrb[0].mxu0
    %v1215 = vadd.f32 %v1006, %v1214
    %v1216 = vpop.f32.mrb[0].mxu0
    %1217 = vmatprep.mubr.bf16.mxu0 0
    %1218 = vmatmul.mubr.bf16.gmra.mrb[0].mxu0 %v682
    %v1219 = vpop.f32.mrb[0].mxu0
    %v1220 = vadd.f32 %v1011, %v1219
    %v1221 = vpop.f32.mrb[0].mxu0
    %v1222 = vpop.f32.mrb[0].mxu0
    %v1223 = vadd.f32 %v1014, %v1222
    %v1224 = vpop.f32.mrb[0].mxu0
    %1225 = vmatprep.mubr.bf16.mxu0 0
    %1226 = vmatmul.mubr.bf16.gmra.mrb[0].mxu0 %v683
    %v1227 = vpop.f32.mrb[0].mxu0
    %v1228 = vadd.f32 %v1019, %v1227
    %v1229 = vpop.f32.mrb[0].mxu0
    %v1230 = vpop.f32.mrb[0].mxu0
    %v1231 = vadd.f32 %v1022, %v1230
    %v1232 = vpop.f32.mrb[0].mxu0
    %1233 = vmatprep.mubr.bf16.mxu0 0
    %1234 = vmatmul.mubr.bf16.gmra.mrb[0].mxu0 %v684
    %v1235 = vpop.f32.mrb[0].mxu0
    %v1236 = vadd.f32 %v1027, %v1235
    %v1237 = vpop.f32.mrb[0].mxu0
    %v1238 = vpop.f32.mrb[0].mxu0
    %v1239 = vadd.f32 %v1030, %v1238
    %v1240 = vpop.f32.mrb[0].mxu0
    %1241 = vmatprep.mubr.bf16.mxu0 0
    %1242 = vmatmul.mubr.bf16.gmra.mrb[0].mxu0 %v685
    %v1243 = vpop.f32.mrb[0].mxu0
    %v1244 = vadd.f32 %v1035, %v1243
    %v1245 = vpop.f32.mrb[0].mxu0
    %v1246 = vpop.f32.mrb[0].mxu0
    %v1247 = vadd.f32 %v1038, %v1246
    %v1248 = vpop.f32.mrb[0].mxu0
    %1249 = vmatprep.mubr.bf16.mxu0 0
    %1250 = vmatmul.mubr.bf16.gmra.mrb[0].mxu0 %v686
    %v1251 = vpop.f32.mrb[0].mxu0
    %v1252 = vadd.f32 %v1043, %v1251
    %v1253 = vpop.f32.mrb[0].mxu0
    %v1254 = vpop.f32.mrb[0].mxu0
    %v1255 = vadd.f32 %v1046, %v1254
    %v1256 = vpop.f32.mrb[0].mxu0
    %1257 = vmatprep.mubr.bf16.mxu0 0
    %1258 = vmatmul.mubr.bf16.gmra.mrb[0].mxu0 %v687
    %v1259 = vpop.f32.mrb[0].mxu0
    %v1260 = vadd.f32 %v1051, %v1259
    %v1261 = vpop.f32.mrb[0].mxu0
    %v1262 = vpop.f32.mrb[0].mxu0
    %v1263 = vadd.f32 %v1054, %v1262
    %v1264 = vpop.f32.mrb[0].mxu0
    %1265 = vdwg.mxu0
    %v1266 = vld [vmem:[%s5] sm:$0x1]
    %v1268 = vlaneseq
    %v1269 = vshrl.u32 %v1268, 7
    %v1270 = vsub.s32 0, %v1269
    %v1271 = vrot.slane %v1266, %v1270
    %v1273 = vadd.f32 %v1140, %v1271
    %v1274 = vadd.f32 %v1143, %v1271
    %v1275 = vadd.f32 %v1148, %v1271
    %v1276 = vadd.f32 %v1151, %v1271
    %v1277 = vadd.f32 %v1156, %v1271
    %v1278 = vadd.f32 %v1159, %v1271
    %v1279 = vadd.f32 %v1164, %v1271
    %v1280 = vadd.f32 %v1167, %v1271
    %v1281 = vadd.f32 %v1172, %v1271
    %v1282 = vadd.f32 %v1175, %v1271
    %v1283 = vadd.f32 %v1180, %v1271
    %v1284 = vadd.f32 %v1183, %v1271
    %v1285 = vadd.f32 %v1188, %v1271
    %v1286 = vadd.f32 %v1191, %v1271
    %v1287 = vadd.f32 %v1196, %v1271
    %v1288 = vadd.f32 %v1199, %v1271
    %v1289 = vadd.f32 %v1204, %v1271
    %v1290 = vadd.f32 %v1207, %v1271
    %v1291 = vadd.f32 %v1212, %v1271
    %v1292 = vadd.f32 %v1215, %v1271
    %v1293 = vadd.f32 %v1220, %v1271
    %v1294 = vadd.f32 %v1223, %v1271
    %v1295 = vadd.f32 %v1228, %v1271
    %v1296 = vadd.f32 %v1231, %v1271
    %v1297 = vadd.f32 %v1236, %v1271
    %v1298 = vadd.f32 %v1239, %v1271
    %v1299 = vadd.f32 %v1244, %v1271
    %v1300 = vadd.f32 %v1247, %v1271
    %v1301 = vadd.f32 %v1252, %v1271
    %v1302 = vadd.f32 %v1255, %v1271
    %v1303 = vadd.f32 %v1260, %v1271
    %v1304 = vadd.f32 %v1263, %v1271
    %v1305 = vmax.f32 %v1273, 0.0
    %v1306 = vmax.f32 %v1274, 0.0
    %v1307 = vmax.f32 %v1275, 0.0
    %v1308 = vmax.f32 %v1276, 0.0
    %v1309 = vmax.f32 %v1277, 0.0
    %v1310 = vmax.f32 %v1278, 0.0
    %v1311 = vmax.f32 %v1279, 0.0
    %v1312 = vmax.f32 %v1280, 0.0
    %v1313 = vmax.f32 %v1281, 0.0
    %v1314 = vmax.f32 %v1282, 0.0
    %v1315 = vmax.f32 %v1283, 0.0
    %v1316 = vmax.f32 %v1284, 0.0
    %v1317 = vmax.f32 %v1285, 0.0
    %v1318 = vmax.f32 %v1286, 0.0
    %v1319 = vmax.f32 %v1287, 0.0
    %v1320 = vmax.f32 %v1288, 0.0
    %v1321 = vmax.f32 %v1289, 0.0
    %v1322 = vmax.f32 %v1290, 0.0
    %v1323 = vmax.f32 %v1291, 0.0
    %v1324 = vmax.f32 %v1292, 0.0
    %v1325 = vmax.f32 %v1293, 0.0
    %v1326 = vmax.f32 %v1294, 0.0
    %v1327 = vmax.f32 %v1295, 0.0
    %v1328 = vmax.f32 %v1296, 0.0
    %v1329 = vmax.f32 %v1297, 0.0
    %v1330 = vmax.f32 %v1298, 0.0
    %v1331 = vmax.f32 %v1299, 0.0
    %v1332 = vmax.f32 %v1300, 0.0
    %v1333 = vmax.f32 %v1301, 0.0
    %v1334 = vmax.f32 %v1302, 0.0
    %v1335 = vmax.f32 %v1303, 0.0
    %v1336 = vmax.f32 %v1304, 0.0
    %v1337 = vpack.c.bf16 %v1306, %v1305
    %v1338 = vpack.c.bf16 %v1308, %v1307
    %v1339 = vpack.c.bf16 %v1310, %v1309
    %v1340 = vpack.c.bf16 %v1312, %v1311
    %v1341 = vpack.c.bf16 %v1314, %v1313
    %v1342 = vpack.c.bf16 %v1316, %v1315
    %v1343 = vpack.c.bf16 %v1318, %v1317
    %v1344 = vpack.c.bf16 %v1320, %v1319
    %v1345 = vpack.c.bf16 %v1322, %v1321
    %v1346 = vpack.c.bf16 %v1324, %v1323
    %v1347 = vpack.c.bf16 %v1326, %v1325
    %v1348 = vpack.c.bf16 %v1328, %v1327
    %v1349 = vpack.c.bf16 %v1330, %v1329
    %v1350 = vpack.c.bf16 %v1332, %v1331
    %v1351 = vpack.c.bf16 %v1334, %v1333
    %v1352 = vpack.c.bf16 %v1336, %v1335
    %v1369 = vunpack.c.l.b16 %v1337
    %v1370 = vunpack.c.h.b16 %v1337
    %v1371 = vunpack.c.l.b16 %v1338
    %v1372 = vunpack.c.h.b16 %v1338
    %v1373 = vunpack.c.l.b16 %v1339
    %v1374 = vunpack.c.h.b16 %v1339
    %v1375 = vunpack.c.l.b16 %v1340
    %v1376 = vunpack.c.h.b16 %v1340
    %v1377 = vunpack.c.l.b16 %v1341
    %v1378 = vunpack.c.h.b16 %v1341
    %v1379 = vunpack.c.l.b16 %v1342
    %v1380 = vunpack.c.h.b16 %v1342
    %v1381 = vunpack.c.l.b16 %v1343
    %v1382 = vunpack.c.h.b16 %v1343
    %v1383 = vunpack.c.l.b16 %v1344
    %v1384 = vunpack.c.h.b16 %v1344
    %v1385 = vunpack.c.l.b16 %v1345
    %v1386 = vunpack.c.h.b16 %v1345
    %v1387 = vunpack.c.l.b16 %v1346
    %v1388 = vunpack.c.h.b16 %v1346
    %v1389 = vunpack.c.l.b16 %v1347
    %v1390 = vunpack.c.h.b16 %v1347
    %v1391 = vunpack.c.l.b16 %v1348
    %v1392 = vunpack.c.h.b16 %v1348
    %v1393 = vunpack.c.l.b16 %v1349
    %v1394 = vunpack.c.h.b16 %v1349
    %v1395 = vunpack.c.l.b16 %v1350
    %v1396 = vunpack.c.h.b16 %v1350
    %v1397 = vunpack.c.l.b16 %v1351
    %v1398 = vunpack.c.h.b16 %v1351
    %v1399 = vunpack.c.l.b16 %v1352
    %v1400 = vunpack.c.h.b16 %v1352
    %v1401 = vpack.c.b16 %v1369, %v1369
    %v1402 = vpack.c.b16 %v1370, %v1370
    %v1403 = vpack.c.b16 %v1371, %v1371
    %v1404 = vpack.c.b16 %v1372, %v1372
    %v1405 = vpack.c.b16 %v1373, %v1373
    %v1406 = vpack.c.b16 %v1374, %v1374
    %v1407 = vpack.c.b16 %v1375, %v1375
    %v1408 = vpack.c.b16 %v1376, %v1376
    %v1409 = vpack.c.b16 %v1377, %v1377
    %v1410 = vpack.c.b16 %v1378, %v1378
    %v1411 = vpack.c.b16 %v1379, %v1379
    %v1412 = vpack.c.b16 %v1380, %v1380
    %v1413 = vpack.c.b16 %v1381, %v1381
    %v1414 = vpack.c.b16 %v1382, %v1382
    %v1415 = vpack.c.b16 %v1383, %v1383
    %v1416 = vpack.c.b16 %v1384, %v1384
    %v1417 = vpack.c.b16 %v1385, %v1385
    %v1418 = vpack.c.b16 %v1386, %v1386
    %v1419 = vpack.c.b16 %v1387, %v1387
    %v1420 = vpack.c.b16 %v1388, %v1388
    %v1421 = vpack.c.b16 %v1389, %v1389
    %v1422 = vpack.c.b16 %v1390, %v1390
    %v1423 = vpack.c.b16 %v1391, %v1391
    %v1424 = vpack.c.b16 %v1392, %v1392
    %v1425 = vpack.c.b16 %v1393, %v1393
    %v1426 = vpack.c.b16 %v1394, %v1394
    %v1427 = vpack.c.b16 %v1395, %v1395
    %v1428 = vpack.c.b16 %v1396, %v1396
    %v1429 = vpack.c.b16 %v1397, %v1397
    %v1430 = vpack.c.b16 %v1398, %v1398
    %v1431 = vpack.c.b16 %v1399, %v1399
    %v1432 = vpack.c.b16 %v1400, %v1400
    %1465 = vst [vmem:[%s6] sm:$0xf] %v1401
    %1466 = vst [vmem:[%s6 + $0x4] sm:$0xf] %v1402
    %1467 = vst [vmem:[%s6 + $0x8] sm:$0xf] %v1403
    %1468 = vst [vmem:[%s6 + $0xc] sm:$0xf] %v1404
    %1469 = vst [vmem:[%s6 + $0x10] sm:$0xf] %v1405
    %1470 = vst [vmem:[%s6 + $0x14] sm:$0xf] %v1406
    %1471 = vst [vmem:[%s6 + $0x18] sm:$0xf] %v1407
    %1472 = vst [vmem:[%s6 + $0x1c] sm:$0xf] %v1408
    %1473 = vst [vmem:[%s6 + $0x20] sm:$0xf] %v1409
    %1474 = vst [vmem:[%s6 + $0x24] sm:$0xf] %v1410
    %1475 = vst [vmem:[%s6 + $0x28] sm:$0xf] %v1411
    %1476 = vst [vmem:[%s6 + $0x2c] sm:$0xf] %v1412
    %1477 = vst [vmem:[%s6 + $0x30] sm:$0xf] %v1413
    %1478 = vst [vmem:[%s6 + $0x34] sm:$0xf] %v1414
    %1479 = vst [vmem:[%s6 + $0x38] sm:$0xf] %v1415
    %1480 = vst [vmem:[%s6 + $0x3c] sm:$0xf] %v1416
    %1481 = vst [vmem:[%s6 + $0x40] sm:$0xf] %v1417
    %1482 = vst [vmem:[%s6 + $0x44] sm:$0xf] %v1418
    %1483 = vst [vmem:[%s6 + $0x48] sm:$0xf] %v1419
    %1484 = vst [vmem:[%s6 + $0x4c] sm:$0xf] %v1420
    %1485 = vst [vmem:[%s6 + $0x50] sm:$0xf] %v1421
    %1486 = vst [vmem:[%s6 + $0x54] sm:$0xf] %v1422
    %1487 = vst [vmem:[%s6 + $0x58] sm:$0xf] %v1423
    %1488 = vst [vmem:[%s6 + $0x5c] sm:$0xf] %v1424
    %1489 = vst [vmem:[%s6 + $0x60] sm:$0xf] %v1425
    %1490 = vst [vmem:[%s6 + $0x64] sm:$0xf] %v1426
    %1491 = vst [vmem:[%s6 + $0x68] sm:$0xf] %v1427
    %1492 = vst [vmem:[%s6 + $0x6c] sm:$0xf] %v1428
    %1493 = vst [vmem:[%s6 + $0x70] sm:$0xf] %v1429
    %1494 = vst [vmem:[%s6 + $0x74] sm:$0xf] %v1430
    %1495 = vst [vmem:[%s6 + $0x78] sm:$0xf] %v1431
    %1496 = vst [vmem:[%s6 + $0x7c] sm:$0xf] %v1432
  $region33: #{sage_forward.4} parent=0 // pred_fallthru
    _
  // Predicated region
  $region34: #{sage_forward.4} parent=0 // pred_check
    _
  $region35: #{sage_forward.4} parent=0 // pred_check_branch
    %1498 = sbr.rel (0) target = $region37
  $region36: #{sage_forward.4} parent=0 // pred_region
    _
  $region37: #{sage_forward.4} parent=0 // pred_fallthru
    _
  // Predicated region
  $region38: #{sage_forward.4} parent=0 // pred_check
    _
  $region39: #{sage_forward.4} parent=0 // pred_check_branch
    %1500 = sbr.rel (0) target = $region41
  $region40: #{sage_forward.4} parent=0 // pred_region
    _
  $region41: #{sage_forward.4} parent=0 // pred_fallthru
    _

// kernel: sage_forward.3
$region0: #{sage_forward.3}
  #allocation0 [shape = 'u32[]', space=smem, size = 0x4, offset = 0x4, fixed_abs, tag = 'smem constant byte address 0x4 - core index']
  #allocation1 [shape = 'u32[144,128]{1,0:T(1,128)}', space=vmem, size = 0x12000, scoped, tag = 'internal scratch']
  #allocation2 [shape = 'f32[256,128]{1,0:T(8,128)}', space=vmem, size = 0x20000, scoped, tag = 'scratch operand']
  %s0 = inlined_call_operand.hbm [shape: bf16[256,256], index: 0, kind: input, shape index: {}]
  %s1 = inlined_call_operand.hbm [shape: bf16[256,128], index: 1, kind: input, shape index: {}, may-alias: {1,2}]
  %s2 = inlined_call_operand.hbm [shape: bf16[256,128], index: 2, kind: input, shape index: {}, may-alias: {1,2}]
  %s3 = inlined_call_operand.hbm [shape: bf16[128,128], index: 3, kind: input, shape index: {}]
  %s4 = inlined_call_operand.hbm [shape: bf16[128,128], index: 4, kind: input, shape index: {}]
  %s5 = inlined_call_operand.hbm [shape: f32[1,128], index: 5, kind: input, shape index: {}]
  %s6 = inlined_call_operand.vmem [shape: bf16[256,128], index: 6, kind: output, shape index: {}]
  %s7 = sld [smem:[#allocation0]]
  $region66: #{sage_forward.3} parent=0
    _
  %s9 = ssub.s32 1, %s7
  %s10 = scalar_select 0, %s9, %s7
  $region1: #{sage_forward.3} parent=0
    #allocation3 [shape = 'u8[131072]{0}', space=vmem, size = 0x20000, scoped, tag = 'input window, operand 0, single buffered']
    #allocation4 [shape = 's32[1]{0}', space=sflag, size = 0x4, scoped, tag = 'scoped memory for sage_forward.3']
    #allocation5 [shape = 'u8[65536]{0}', space=vmem, size = 0x10000, scoped, tag = 'input window, operand 1, single buffered']
    #allocation6 [shape = 's32[1]{0}', space=sflag, size = 0x4, scoped, tag = 'scoped memory for sage_forward.3']
    #allocation7 [shape = 'u8[65536]{0}', space=vmem, size = 0x10000, scoped, tag = 'input window, operand 2, single buffered']
    #allocation8 [shape = 'u8[32768]{0}', space=vmem, size = 0x8000, scoped, tag = 'input window, operand 3, single buffered']
    #allocation9 [shape = 's32[1]{0}', space=sflag, size = 0x4, scoped, tag = 'scoped memory for sage_forward.3']
    #allocation10 [shape = 'u8[32768]{0}', space=vmem, size = 0x8000, scoped, tag = 'input window, operand 4, single buffered']
    #allocation11 [shape = 'u8[512]{0}', space=vmem, size = 0x400, scoped, tag = 'input window, operand 5, single buffered']
    #allocation12 [shape = 's32[1]{0}', space=sflag, size = 0x4, scoped, tag = 'scoped memory for sage_forward.3']
    %11 = vsyncpa [#allocation4], 0
    %12 = vsyncpa [#allocation6], 0
    %13 = vsyncpa [#allocation9], 0
    %14 = vsyncpa [#allocation12], 0
    // Predicated region
    $region2: #{sage_forward.3} parent=1 // pred_check
      _
    $region3: #{sage_forward.3} parent=1 // pred_check_branch
      %16 = sbr.rel (0) target = $region5
    $region4: #{sage_forward.3} parent=1 // pred_region
      %s18 = ssub.s32 4096, 4096
      %19 = vsyncadd [#allocation4], %s18
      %s20 = sshll.u32 [#allocation3], 4
      %s21 = int_to_ptr.vmem [resolvable:$true] %s20
      %26 = dma.hbm_to_vmem [thread:$0]  %s0, 4096, %s21, [#allocation4], 128, 128, 8
    $region5: #{sage_forward.3} parent=1 // pred_fallthru
      _
    // Predicated region
    $region6: #{sage_forward.3} parent=1 // pred_check
      _
    $region7: #{sage_forward.3} parent=1 // pred_check_branch
      %28 = sbr.rel (0) target = $region9
    $region8: #{sage_forward.3} parent=1 // pred_region
      %s30 = ssub.s32 2048, 2048
      %31 = vsyncadd [#allocation6], %s30
      %s32 = sshll.u32 [#allocation5], 4
      %s33 = int_to_ptr.vmem [resolvable:$true] %s32
      %38 = dma.hbm_to_vmem [thread:$0]  %s1, 2048, %s33, [#allocation6], 64, 64, 4
    $region9: #{sage_forward.3} parent=1 // pred_fallthru
      _
    // Predicated region
    $region10: #{sage_forward.3} parent=1 // pred_check
      _
    $region11: #{sage_forward.3} parent=1 // pred_check_branch
      %40 = sbr.rel (0) target = $region13
    $region12: #{sage_forward.3} parent=1 // pred_region
      %s42 = ssub.s32 2048, 2048
      %43 = vsyncadd [#allocation6], %s42
      %s44 = sshll.u32 [#allocation7], 4
      %s45 = int_to_ptr.vmem [resolvable:$true] %s44
      %50 = dma.hbm_to_vmem [thread:$0]  %s2, 2048, %s45, [#allocation6], 64, 64, 4
    $region13: #{sage_forward.3} parent=1 // pred_fallthru
      _
    // Predicated region
    $region14: #{sage_forward.3} parent=1 // pred_check
      _
    $region15: #{sage_forward.3} parent=1 // pred_check_branch
      %52 = sbr.rel (0) target = $region17
    $region16: #{sage_forward.3} parent=1 // pred_region
      %s54 = ssub.s32 1024, 1024
      %55 = vsyncadd [#allocation9], %s54
      %s56 = sshll.u32 [#allocation8], 4
      %s57 = int_to_ptr.vmem [resolvable:$true] %s56
      %62 = dma.hbm_to_vmem [thread:$0]  %s3, 1024, %s57, [#allocation9], 64, 64, 4
    $region17: #{sage_forward.3} parent=1 // pred_fallthru
      _
    // Predicated region
    $region18: #{sage_forward.3} parent=1 // pred_check
      _
    $region19: #{sage_forward.3} parent=1 // pred_check_branch
      %64 = sbr.rel (0) target = $region21
    $region20: #{sage_forward.3} parent=1 // pred_region
      %s66 = ssub.s32 1024, 1024
      %67 = vsyncadd [#allocation9], %s66
      %s68 = sshll.u32 [#allocation10], 4
      %s69 = int_to_ptr.vmem [resolvable:$true] %s68
      %74 = dma.hbm_to_vmem [thread:$0]  %s4, 1024, %s69, [#allocation9], 64, 64, 4
    $region21: #{sage_forward.3} parent=1 // pred_fallthru
      _
    // Predicated region
    $region22: #{sage_forward.3} parent=1 // pred_check
      _
    $region23: #{sage_forward.3} parent=1 // pred_check_branch
      %76 = sbr.rel (0) target = $region25
    $region24: #{sage_forward.3} parent=1 // pred_region
      %s78 = ssub.s32 16, 16
      %79 = vsyncadd [#allocation12], %s78
      %s81 = sshll.u32 [#allocation11], 4
      %s82 = int_to_ptr.vmem [resolvable:$true] %s81
      %84 = dma.hbm_to_vmem [thread:$0]  %s5, 16, %s82, [#allocation12]
    $region25: #{sage_forward.3} parent=1 // pred_fallthru
      _
    // Predicated region
    $region26: #{sage_forward.3} parent=1 // pred_check
      _
    $region27: #{sage_forward.3} parent=1 // pred_check_branch
      %86 = sbr.rel (0) target = $region29
    $region28: #{sage_forward.3} parent=1 // pred_region
      %87 = dma.done [#allocation4], 4096
    $region29: #{sage_forward.3} parent=1 // pred_fallthru
      _
    // Predicated region
    $region30: #{sage_forward.3} parent=1 // pred_check
      _
    $region31: #{sage_forward.3} parent=1 // pred_check_branch
      %89 = sbr.rel (0) target = $region33
    $region32: #{sage_forward.3} parent=1 // pred_region
      %90 = dma.done [#allocation6], 2048
    $region33: #{sage_forward.3} parent=1 // pred_fallthru
      _
    // Predicated region
    $region34: #{sage_forward.3} parent=1 // pred_check
      _
    $region35: #{sage_forward.3} parent=1 // pred_check_branch
      %92 = sbr.rel (0) target = $region37
    $region36: #{sage_forward.3} parent=1 // pred_region
      %93 = dma.done [#allocation6], 2048
    $region37: #{sage_forward.3} parent=1 // pred_fallthru
      _
    // Predicated region
    $region38: #{sage_forward.3} parent=1 // pred_check
      _
    $region39: #{sage_forward.3} parent=1 // pred_check_branch
      %95 = sbr.rel (0) target = $region41
    $region40: #{sage_forward.3} parent=1 // pred_region
      %96 = dma.done [#allocation9], 1024
    $region41: #{sage_forward.3} parent=1 // pred_fallthru
      _
    // Predicated region
    $region42: #{sage_forward.3} parent=1 // pred_check
      _
    $region43: #{sage_forward.3} parent=1 // pred_check_branch
      %98 = sbr.rel (0) target = $region45
    $region44: #{sage_forward.3} parent=1 // pred_region
      %99 = dma.done [#allocation9], 1024
    $region45: #{sage_forward.3} parent=1 // pred_fallthru
      _
    // Predicated region
    $region46: #{sage_forward.3} parent=1 // pred_check
      _
    $region47: #{sage_forward.3} parent=1 // pred_check_branch
      %101 = sbr.rel (0) target = $region49
    $region48: #{sage_forward.3} parent=1 // pred_region
      %102 = dma.done [#allocation12], 16
    $region49: #{sage_forward.3} parent=1 // pred_fallthru
      _
    %p104 = scmp.eq.s32.totalorder 0, 0
    // Predicated region
    $region50: #{sage_forward.3} parent=1 // pred_check
      %p105 = pneg %p104
    $region51: #{sage_forward.3} parent=1 // pred_check_branch
      %107 = sbr.rel (%p105) target = $region53
    $region52: #{sage_forward.3} parent=1 // pred_region
      %108 = vst [vmem:[#allocation2] sm:$0xff] 0.0
      %109 = vst [vmem:[#allocation2 + $0x8] sm:$0xff] 0.0
      %110 = vst [vmem:[#allocation2 + $0x10] sm:$0xff] 0.0
      %111 = vst [vmem:[#allocation2 + $0x18] sm:$0xff] 0.0
      %112 = vst [vmem:[#allocation2 + $0x20] sm:$0xff] 0.0
      %113 = vst [vmem:[#allocation2 + $0x28] sm:$0xff] 0.0
      %114 = vst [vmem:[#allocation2 + $0x30] sm:$0xff] 0.0
      %115 = vst [vmem:[#allocation2 + $0x38] sm:$0xff] 0.0
      %116 = vst [vmem:[#allocation2 + $0x40] sm:$0xff] 0.0
      %117 = vst [vmem:[#allocation2 + $0x48] sm:$0xff] 0.0
      %118 = vst [vmem:[#allocation2 + $0x50] sm:$0xff] 0.0
      %119 = vst [vmem:[#allocation2 + $0x58] sm:$0xff] 0.0
      %120 = vst [vmem:[#allocation2 + $0x60] sm:$0xff] 0.0
      %121 = vst [vmem:[#allocation2 + $0x68] sm:$0xff] 0.0
      %122 = vst [vmem:[#allocation2 + $0x70] sm:$0xff] 0.0
      %123 = vst [vmem:[#allocation2 + $0x78] sm:$0xff] 0.0
      %124 = vst [vmem:[#allocation2 + $0x80] sm:$0xff] 0.0
      %125 = vst [vmem:[#allocation2 + $0x88] sm:$0xff] 0.0
      %126 = vst [vmem:[#allocation2 + $0x90] sm:$0xff] 0.0
      %127 = vst [vmem:[#allocation2 + $0x98] sm:$0xff] 0.0
      %128 = vst [vmem:[#allocation2 + $0xa0] sm:$0xff] 0.0
      %129 = vst [vmem:[#allocation2 + $0xa8] sm:$0xff] 0.0
      %130 = vst [vmem:[#allocation2 + $0xb0] sm:$0xff] 0.0
      %131 = vst [vmem:[#allocation2 + $0xb8] sm:$0xff] 0.0
      %132 = vst [vmem:[#allocation2 + $0xc0] sm:$0xff] 0.0
      %133 = vst [vmem:[#allocation2 + $0xc8] sm:$0xff] 0.0
      %134 = vst [vmem:[#allocation2 + $0xd0] sm:$0xff] 0.0
      %135 = vst [vmem:[#allocation2 + $0xd8] sm:$0xff] 0.0
      %136 = vst [vmem:[#allocation2 + $0xe0] sm:$0xff] 0.0
      %137 = vst [vmem:[#allocation2 + $0xe8] sm:$0xff] 0.0
      %138 = vst [vmem:[#allocation2 + $0xf0] sm:$0xff] 0.0
      %139 = vst [vmem:[#allocation2 + $0xf8] sm:$0xff] 0.0
    $region53: #{sage_forward.3} parent=1 // pred_fallthru
      _
    %v140 = vld [vmem:[#allocation2] sm:$0xff]
    %v141 = vld [vmem:[#allocation2 + $0x8] sm:$0xff]
    %v142 = vld [vmem:[#allocation2 + $0x10] sm:$0xff]
    %v143 = vld [vmem:[#allocation2 + $0x18] sm:$0xff]
    %v144 = vld [vmem:[#allocation2 + $0x20] sm:$0xff]
    %v145 = vld [vmem:[#allocation2 + $0x28] sm:$0xff]
    %v146 = vld [vmem:[#allocation2 + $0x30] sm:$0xff]
    %v147 = vld [vmem:[#allocation2 + $0x38] sm:$0xff]
    %v148 = vld [vmem:[#allocation2 + $0x40] sm:$0xff]
    %v149 = vld [vmem:[#allocation2 + $0x48] sm:$0xff]
    %v150 = vld [vmem:[#allocation2 + $0x50] sm:$0xff]
    %v151 = vld [vmem:[#allocation2 + $0x58] sm:$0xff]
    %v152 = vld [vmem:[#allocation2 + $0x60] sm:$0xff]
    %v153 = vld [vmem:[#allocation2 + $0x68] sm:$0xff]
    %v154 = vld [vmem:[#allocation2 + $0x70] sm:$0xff]
    %v155 = vld [vmem:[#allocation2 + $0x78] sm:$0xff]
    %v156 = vld [vmem:[#allocation2 + $0x80] sm:$0xff]
    %v157 = vld [vmem:[#allocation2 + $0x88] sm:$0xff]
    %v158 = vld [vmem:[#allocation2 + $0x90] sm:$0xff]
    %v159 = vld [vmem:[#allocation2 + $0x98] sm:$0xff]
    %v160 = vld [vmem:[#allocation2 + $0xa0] sm:$0xff]
    %v161 = vld [vmem:[#allocation2 + $0xa8] sm:$0xff]
    %v162 = vld [vmem:[#allocation2 + $0xb0] sm:$0xff]
    %v163 = vld [vmem:[#allocation2 + $0xb8] sm:$0xff]
    %v164 = vld [vmem:[#allocation2 + $0xc0] sm:$0xff]
    %v165 = vld [vmem:[#allocation2 + $0xc8] sm:$0xff]
    %v166 = vld [vmem:[#allocation2 + $0xd0] sm:$0xff]
    %v167 = vld [vmem:[#allocation2 + $0xd8] sm:$0xff]
    %v168 = vld [vmem:[#allocation2 + $0xe0] sm:$0xff]
    %v169 = vld [vmem:[#allocation2 + $0xe8] sm:$0xff]
    %v170 = vld [vmem:[#allocation2 + $0xf0] sm:$0xff]
    %v171 = vld [vmem:[#allocation2 + $0xf8] sm:$0xff]
    %v172 = vld [vmem:[#allocation3] sm:$0xff]
    %v173 = vld [vmem:[#allocation3 + $0x8] sm:$0xff]
    %v174 = vld [vmem:[#allocation3 + $0x10] sm:$0xff]
    %v175 = vld [vmem:[#allocation3 + $0x18] sm:$0xff]
    %v176 = vld [vmem:[#allocation3 + $0x20] sm:$0xff]
    %v177 = vld [vmem:[#allocation3 + $0x28] sm:$0xff]
    %v178 = vld [vmem:[#allocation3 + $0x30] sm:$0xff]
    %v179 = vld [vmem:[#allocation3 + $0x38] sm:$0xff]
    %v180 = vld [vmem:[#allocation3 + $0x40] sm:$0xff]
    %v181 = vld [vmem:[#allocation3 + $0x48] sm:$0xff]
    %v182 = vld [vmem:[#allocation3 + $0x50] sm:$0xff]
    %v183 = vld [vmem:[#allocation3 + $0x58] sm:$0xff]
    %v184 = vld [vmem:[#allocation3 + $0x60] sm:$0xff]
    %v185 = vld [vmem:[#allocation3 + $0x68] sm:$0xff]
    %v186 = vld [vmem:[#allocation3 + $0x70] sm:$0xff]
    %v187 = vld [vmem:[#allocation3 + $0x78] sm:$0xff]
    %v188 = vld [vmem:[#allocation3 + $0x80] sm:$0xff]
    %v189 = vld [vmem:[#allocation3 + $0x88] sm:$0xff]
    %v190 = vld [vmem:[#allocation3 + $0x90] sm:$0xff]
    %v191 = vld [vmem:[#allocation3 + $0x98] sm:$0xff]
    %v192 = vld [vmem:[#allocation3 + $0xa0] sm:$0xff]
    %v193 = vld [vmem:[#allocation3 + $0xa8] sm:$0xff]
    %v194 = vld [vmem:[#allocation3 + $0xb0] sm:$0xff]
    %v195 = vld [vmem:[#allocation3 + $0xb8] sm:$0xff]
    %v196 = vld [vmem:[#allocation3 + $0xc0] sm:$0xff]
    %v197 = vld [vmem:[#allocation3 + $0xc8] sm:$0xff]
    %v198 = vld [vmem:[#allocation3 + $0xd0] sm:$0xff]
    %v199 = vld [vmem:[#allocation3 + $0xd8] sm:$0xff]
    %v200 = vld [vmem:[#allocation3 + $0xe0] sm:$0xff]
    %v201 = vld [vmem:[#allocation3 + $0xe8] sm:$0xff]
    %v202 = vld [vmem:[#allocation3 + $0xf0] sm:$0xff]
    %v203 = vld [vmem:[#allocation3 + $0xf8] sm:$0xff]
    %v204 = vld [vmem:[#allocation5] sm:$0xf]
    %v205 = vld [vmem:[#allocation5 + $0x4] sm:$0xf]
    %v206 = vld [vmem:[#allocation5 + $0x8] sm:$0xf]
    %v207 = vld [vmem:[#allocation5 + $0xc] sm:$0xf]
    %v208 = vld [vmem:[#allocation5 + $0x10] sm:$0xf]
    %v209 = vld [vmem:[#allocation5 + $0x14] sm:$0xf]
    %v210 = vld [vmem:[#allocation5 + $0x18] sm:$0xf]
    %v211 = vld [vmem:[#allocation5 + $0x1c] sm:$0xf]
    %v212 = vld [vmem:[#allocation5 + $0x20] sm:$0xf]
    %v213 = vld [vmem:[#allocation5 + $0x24] sm:$0xf]
    %v214 = vld [vmem:[#allocation5 + $0x28] sm:$0xf]
    %v215 = vld [vmem:[#allocation5 + $0x2c] sm:$0xf]
    %v216 = vld [vmem:[#allocation5 + $0x30] sm:$0xf]
    %v217 = vld [vmem:[#allocation5 + $0x34] sm:$0xf]
    %v218 = vld [vmem:[#allocation5 + $0x38] sm:$0xf]
    %v219 = vld [vmem:[#allocation5 + $0x3c] sm:$0xf]
    %v220 = vld [vmem:[#allocation5 + $0x40] sm:$0xf]
    %v221 = vld [vmem:[#allocation5 + $0x44] sm:$0xf]
    %v222 = vld [vmem:[#allocation5 + $0x48] sm:$0xf]
    %v223 = vld [vmem:[#allocation5 + $0x4c] sm:$0xf]
    %v224 = vld [vmem:[#allocation5 + $0x50] sm:$0xf]
    %v225 = vld [vmem:[#allocation5 + $0x54] sm:$0xf]
    %v226 = vld [vmem:[#allocation5 + $0x58] sm:$0xf]
    %v227 = vld [vmem:[#allocation5 + $0x5c] sm:$0xf]
    %v228 = vld [vmem:[#allocation5 + $0x60] sm:$0xf]
    %v229 = vld [vmem:[#allocation5 + $0x64] sm:$0xf]
    %v230 = vld [vmem:[#allocation5 + $0x68] sm:$0xf]
    %v231 = vld [vmem:[#allocation5 + $0x6c] sm:$0xf]
    %v232 = vld [vmem:[#allocation5 + $0x70] sm:$0xf]
    %v233 = vld [vmem:[#allocation5 + $0x74] sm:$0xf]
    %v234 = vld [vmem:[#allocation5 + $0x78] sm:$0xf]
    %v235 = vld [vmem:[#allocation5 + $0x7c] sm:$0xf]
    %v268 = vunpack.c.l.b16 %v172
    %v269 = vunpack.c.h.b16 %v172
    %v270 = vunpack.c.l.b16 %v173
    %v271 = vunpack.c.h.b16 %v173
    %v272 = vunpack.c.l.b16 %v174
    %v273 = vunpack.c.h.b16 %v174
    %v274 = vunpack.c.l.b16 %v175
    %v275 = vunpack.c.h.b16 %v175
    %v276 = vunpack.c.l.b16 %v176
    %v277 = vunpack.c.h.b16 %v176
    %v278 = vunpack.c.l.b16 %v177
    %v279 = vunpack.c.h.b16 %v177
    %v280 = vunpack.c.l.b16 %v178
    %v281 = vunpack.c.h.b16 %v178
    %v282 = vunpack.c.l.b16 %v179
    %v283 = vunpack.c.h.b16 %v179
    %v284 = vunpack.c.l.b16 %v180
    %v285 = vunpack.c.h.b16 %v180
    %v286 = vunpack.c.l.b16 %v181
    %v287 = vunpack.c.h.b16 %v181
    %v288 = vunpack.c.l.b16 %v182
    %v289 = vunpack.c.h.b16 %v182
    %v290 = vunpack.c.l.b16 %v183
    %v291 = vunpack.c.h.b16 %v183
    %v292 = vunpack.c.l.b16 %v184
    %v293 = vunpack.c.h.b16 %v184
    %v294 = vunpack.c.l.b16 %v185
    %v295 = vunpack.c.h.b16 %v185
    %v296 = vunpack.c.l.b16 %v186
    %v297 = vunpack.c.h.b16 %v186
    %v298 = vunpack.c.l.b16 %v187
    %v299 = vunpack.c.h.b16 %v187
    %v300 = vunpack.c.l.b16 %v188
    %v301 = vunpack.c.h.b16 %v188
    %v302 = vunpack.c.l.b16 %v189
    %v303 = vunpack.c.h.b16 %v189
    %v304 = vunpack.c.l.b16 %v190
    %v305 = vunpack.c.h.b16 %v190
    %v306 = vunpack.c.l.b16 %v191
    %v307 = vunpack.c.h.b16 %v191
    %v308 = vunpack.c.l.b16 %v192
    %v309 = vunpack.c.h.b16 %v192
    %v310 = vunpack.c.l.b16 %v193
    %v311 = vunpack.c.h.b16 %v193
    %v312 = vunpack.c.l.b16 %v194
    %v313 = vunpack.c.h.b16 %v194
    %v314 = vunpack.c.l.b16 %v195
    %v315 = vunpack.c.h.b16 %v195
    %v316 = vunpack.c.l.b16 %v196
    %v317 = vunpack.c.h.b16 %v196
    %v318 = vunpack.c.l.b16 %v197
    %v319 = vunpack.c.h.b16 %v197
    %v320 = vunpack.c.l.b16 %v198
    %v321 = vunpack.c.h.b16 %v198
    %v322 = vunpack.c.l.b16 %v199
    %v323 = vunpack.c.h.b16 %v199
    %v324 = vunpack.c.l.b16 %v200
    %v325 = vunpack.c.h.b16 %v200
    %v326 = vunpack.c.l.b16 %v201
    %v327 = vunpack.c.h.b16 %v201
    %v328 = vunpack.c.l.b16 %v202
    %v329 = vunpack.c.h.b16 %v202
    %v330 = vunpack.c.l.b16 %v203
    %v331 = vunpack.c.h.b16 %v203
    %v332 = vpack.c.b16 %v270, %v268
    %v333 = vpack.c.b16 %v271, %v269
    %v334 = vpack.c.b16 %v274, %v272
    %v335 = vpack.c.b16 %v275, %v273
    %v336 = vpack.c.b16 %v278, %v276
    %v337 = vpack.c.b16 %v279, %v277
    %v338 = vpack.c.b16 %v282, %v280
    %v339 = vpack.c.b16 %v283, %v281
    %v340 = vpack.c.b16 %v286, %v284
    %v341 = vpack.c.b16 %v287, %v285
    %v342 = vpack.c.b16 %v290, %v288
    %v343 = vpack.c.b16 %v291, %v289
    %v344 = vpack.c.b16 %v294, %v292
    %v345 = vpack.c.b16 %v295, %v293
    %v346 = vpack.c.b16 %v298, %v296
    %v347 = vpack.c.b16 %v299, %v297
    %v348 = vpack.c.b16 %v302, %v300
    %v349 = vpack.c.b16 %v303, %v301
    %v350 = vpack.c.b16 %v306, %v304
    %v351 = vpack.c.b16 %v307, %v305
    %v352 = vpack.c.b16 %v310, %v308
    %v353 = vpack.c.b16 %v311, %v309
    %v354 = vpack.c.b16 %v314, %v312
    %v355 = vpack.c.b16 %v315, %v313
    %v356 = vpack.c.b16 %v318, %v316
    %v357 = vpack.c.b16 %v319, %v317
    %v358 = vpack.c.b16 %v322, %v320
    %v359 = vpack.c.b16 %v323, %v321
    %v360 = vpack.c.b16 %v326, %v324
    %v361 = vpack.c.b16 %v327, %v325
    %v362 = vpack.c.b16 %v330, %v328
    %v363 = vpack.c.b16 %v331, %v329
    %v428 = vunpack.c.l.b16 %v204
    %v429 = vunpack.c.l.b16 %v205
    %v430 = vunpack.c.l.b16 %v206
    %v431 = vunpack.c.l.b16 %v207
    %v432 = vunpack.c.l.b16 %v208
    %v433 = vunpack.c.l.b16 %v209
    %v434 = vunpack.c.l.b16 %v210
    %v435 = vunpack.c.l.b16 %v211
    %v436 = vunpack.c.l.b16 %v212
    %v437 = vunpack.c.l.b16 %v213
    %v438 = vunpack.c.l.b16 %v214
    %v439 = vunpack.c.l.b16 %v215
    %v440 = vunpack.c.l.b16 %v216
    %v441 = vunpack.c.l.b16 %v217
    %v442 = vunpack.c.l.b16 %v218
    %v443 = vunpack.c.l.b16 %v219
    %v444 = vunpack.c.l.b16 %v220
    %v445 = vunpack.c.l.b16 %v221
    %v446 = vunpack.c.l.b16 %v222
    %v447 = vunpack.c.l.b16 %v223
    %v448 = vunpack.c.l.b16 %v224
    %v449 = vunpack.c.l.b16 %v225
    %v450 = vunpack.c.l.b16 %v226
    %v451 = vunpack.c.l.b16 %v227
    %v452 = vunpack.c.l.b16 %v228
    %v453 = vunpack.c.l.b16 %v229
    %v454 = vunpack.c.l.b16 %v230
    %v455 = vunpack.c.l.b16 %v231
    %v456 = vunpack.c.l.b16 %v232
    %v457 = vunpack.c.l.b16 %v233
    %v458 = vunpack.c.l.b16 %v234
    %v459 = vunpack.c.l.b16 %v235
    %v460 = vpack.c.b16 %v429, %v428
    %v461 = vpack.c.b16 %v431, %v430
    %v462 = vpack.c.b16 %v433, %v432
    %v463 = vpack.c.b16 %v435, %v434
    %v464 = vpack.c.b16 %v437, %v436
    %v465 = vpack.c.b16 %v439, %v438
    %v466 = vpack.c.b16 %v441, %v440
    %v467 = vpack.c.b16 %v443, %v442
    %v468 = vpack.c.b16 %v445, %v444
    %v469 = vpack.c.b16 %v447, %v446
    %v470 = vpack.c.b16 %v449, %v448
    %v471 = vpack.c.b16 %v451, %v450
    %v472 = vpack.c.b16 %v453, %v452
    %v473 = vpack.c.b16 %v455, %v454
    %v474 = vpack.c.b16 %v457, %v456
    %v475 = vpack.c.b16 %v459, %v458
    %492 = vmatprep.subr.bf16.mxu0 0
    %493 = vmatpush1.bf16.msra.mxu0 %v460
    %494 = vmatprep.subr.bf16.mxu0 0
    %495 = vmatpush1.bf16.msra.mxu0 %v461
    %496 = vmatprep.subr.bf16.mxu0 0
    %497 = vmatpush1.bf16.msra.mxu0 %v462
    %498 = vmatprep.subr.bf16.mxu0 0
    %499 = vmatpush1.bf16.msra.mxu0 %v463
    %500 = vmatprep.subr.bf16.mxu0 0
    %501 = vmatpush1.bf16.msra.mxu0 %v464
    %502 = vmatprep.subr.bf16.mxu0 0
    %503 = vmatpush1.bf16.msra.mxu0 %v465
    %504 = vmatprep.subr.bf16.mxu0 0
    %505 = vmatpush1.bf16.msra.mxu0 %v466
    %506 = vmatprep.subr.bf16.mxu0 0
    %507 = vmatpush1.bf16.msra.mxu0 %v467
    %508 = vmatprep.subr.bf16.mxu0 0
    %509 = vmatpush1.bf16.msra.mxu0 %v468
    %510 = vmatprep.subr.bf16.mxu0 0
    %511 = vmatpush1.bf16.msra.mxu0 %v469
    %512 = vmatprep.subr.bf16.mxu0 0
    %513 = vmatpush1.bf16.msra.mxu0 %v470
    %514 = vmatprep.subr.bf16.mxu0 0
    %515 = vmatpush1.bf16.msra.mxu0 %v471
    %516 = vmatprep.subr.bf16.mxu0 0
    %517 = vmatpush1.bf16.msra.mxu0 %v472
    %518 = vmatprep.subr.bf16.mxu0 0
    %519 = vmatpush1.bf16.msra.mxu0 %v473
    %520 = vmatprep.subr.bf16.mxu0 0
    %521 = vmatpush1.bf16.msra.mxu0 %v474
    %522 = vmatprep.subr.bf16.mxu0 0
    %523 = vmatpush1.bf16.msra.mxu0 %v475
    %524 = vmatprep.mubr.bf16.mxu0 %v333
    %525 = vmatmul.mubr.bf16.gmra.mrb[0].mxu0 %v332
    %v526 = vpop.f32.mrb[0].mxu0
    %v527 = vadd.f32 0.0, %v526
    %v528 = vpop.f32.mrb[0].mxu0
    %v529 = vpop.f32.mrb[0].mxu0
    %v530 = vadd.f32 0.0, %v529
    %v531 = vpop.f32.mrb[0].mxu0
    %532 = vmatprep.mubr.bf16.mxu0 %v335
    %533 = vmatmul.mubr.bf16.gmra.mrb[0].mxu0 %v334
    %v534 = vpop.f32.mrb[0].mxu0
    %v535 = vadd.f32 0.0, %v534
    %v536 = vpop.f32.mrb[0].mxu0
    %v537 = vpop.f32.mrb[0].mxu0
    %v538 = vadd.f32 0.0, %v537
    %v539 = vpop.f32.mrb[0].mxu0
    %540 = vmatprep.mubr.bf16.mxu0 %v337
    %541 = vmatmul.mubr.bf16.gmra.mrb[0].mxu0 %v336
    %v542 = vpop.f32.mrb[0].mxu0
    %v543 = vadd.f32 0.0, %v542
    %v544 = vpop.f32.mrb[0].mxu0
    %v545 = vpop.f32.mrb[0].mxu0
    %v546 = vadd.f32 0.0, %v545
    %v547 = vpop.f32.mrb[0].mxu0
    %548 = vmatprep.mubr.bf16.mxu0 %v339
    %549 = vmatmul.mubr.bf16.gmra.mrb[0].mxu0 %v338
    %v550 = vpop.f32.mrb[0].mxu0
    %v551 = vadd.f32 0.0, %v550
    %v552 = vpop.f32.mrb[0].mxu0
    %v553 = vpop.f32.mrb[0].mxu0
    %v554 = vadd.f32 0.0, %v553
    %v555 = vpop.f32.mrb[0].mxu0
    %556 = vmatprep.mubr.bf16.mxu0 %v341
    %557 = vmatmul.mubr.bf16.gmra.mrb[0].mxu0 %v340
    %v558 = vpop.f32.mrb[0].mxu0
    %v559 = vadd.f32 0.0, %v558
    %v560 = vpop.f32.mrb[0].mxu0
    %v561 = vpop.f32.mrb[0].mxu0
    %v562 = vadd.f32 0.0, %v561
    %v563 = vpop.f32.mrb[0].mxu0
    %564 = vmatprep.mubr.bf16.mxu0 %v343
    %565 = vmatmul.mubr.bf16.gmra.mrb[0].mxu0 %v342
    %v566 = vpop.f32.mrb[0].mxu0
    %v567 = vadd.f32 0.0, %v566
    %v568 = vpop.f32.mrb[0].mxu0
    %v569 = vpop.f32.mrb[0].mxu0
    %v570 = vadd.f32 0.0, %v569
    %v571 = vpop.f32.mrb[0].mxu0
    %572 = vmatprep.mubr.bf16.mxu0 %v345
    %573 = vmatmul.mubr.bf16.gmra.mrb[0].mxu0 %v344
    %v574 = vpop.f32.mrb[0].mxu0
    %v575 = vadd.f32 0.0, %v574
    %v576 = vpop.f32.mrb[0].mxu0
    %v577 = vpop.f32.mrb[0].mxu0
    %v578 = vadd.f32 0.0, %v577
    %v579 = vpop.f32.mrb[0].mxu0
    %580 = vmatprep.mubr.bf16.mxu0 %v347
    %581 = vmatmul.mubr.bf16.gmra.mrb[0].mxu0 %v346
    %v582 = vpop.f32.mrb[0].mxu0
    %v583 = vadd.f32 0.0, %v582
    %v584 = vpop.f32.mrb[0].mxu0
    %v585 = vpop.f32.mrb[0].mxu0
    %v586 = vadd.f32 0.0, %v585
    %v587 = vpop.f32.mrb[0].mxu0
    %588 = vmatprep.mubr.bf16.mxu0 %v349
    %589 = vmatmul.mubr.bf16.gmra.mrb[0].mxu0 %v348
    %v590 = vpop.f32.mrb[0].mxu0
    %v591 = vadd.f32 0.0, %v590
    %v592 = vpop.f32.mrb[0].mxu0
    %v593 = vpop.f32.mrb[0].mxu0
    %v594 = vadd.f32 0.0, %v593
    %v595 = vpop.f32.mrb[0].mxu0
    %596 = vmatprep.mubr.bf16.mxu0 %v351
    %597 = vmatmul.mubr.bf16.gmra.mrb[0].mxu0 %v350
    %v598 = vpop.f32.mrb[0].mxu0
    %v599 = vadd.f32 0.0, %v598
    %v600 = vpop.f32.mrb[0].mxu0
    %v601 = vpop.f32.mrb[0].mxu0
    %v602 = vadd.f32 0.0, %v601
    %v603 = vpop.f32.mrb[0].mxu0
    %604 = vmatprep.mubr.bf16.mxu0 %v353
    %605 = vmatmul.mubr.bf16.gmra.mrb[0].mxu0 %v352
    %v606 = vpop.f32.mrb[0].mxu0
    %v607 = vadd.f32 0.0, %v606
    %v608 = vpop.f32.mrb[0].mxu0
    %v609 = vpop.f32.mrb[0].mxu0
    %v610 = vadd.f32 0.0, %v609
    %v611 = vpop.f32.mrb[0].mxu0
    %612 = vmatprep.mubr.bf16.mxu0 %v355
    %613 = vmatmul.mubr.bf16.gmra.mrb[0].mxu0 %v354
    %v614 = vpop.f32.mrb[0].mxu0
    %v615 = vadd.f32 0.0, %v614
    %v616 = vpop.f32.mrb[0].mxu0
    %v617 = vpop.f32.mrb[0].mxu0
    %v618 = vadd.f32 0.0, %v617
    %v619 = vpop.f32.mrb[0].mxu0
    %620 = vmatprep.mubr.bf16.mxu0 %v357
    %621 = vmatmul.mubr.bf16.gmra.mrb[0].mxu0 %v356
    %v622 = vpop.f32.mrb[0].mxu0
    %v623 = vadd.f32 0.0, %v622
    %v624 = vpop.f32.mrb[0].mxu0
    %v625 = vpop.f32.mrb[0].mxu0
    %v626 = vadd.f32 0.0, %v625
    %v627 = vpop.f32.mrb[0].mxu0
    %628 = vmatprep.mubr.bf16.mxu0 %v359
    %629 = vmatmul.mubr.bf16.gmra.mrb[0].mxu0 %v358
    %v630 = vpop.f32.mrb[0].mxu0
    %v631 = vadd.f32 0.0, %v630
    %v632 = vpop.f32.mrb[0].mxu0
    %v633 = vpop.f32.mrb[0].mxu0
    %v634 = vadd.f32 0.0, %v633
    %v635 = vpop.f32.mrb[0].mxu0
    %636 = vmatprep.mubr.bf16.mxu0 %v361
    %637 = vmatmul.mubr.bf16.gmra.mrb[0].mxu0 %v360
    %v638 = vpop.f32.mrb[0].mxu0
    %v639 = vadd.f32 0.0, %v638
    %v640 = vpop.f32.mrb[0].mxu0
    %v641 = vpop.f32.mrb[0].mxu0
    %v642 = vadd.f32 0.0, %v641
    %v643 = vpop.f32.mrb[0].mxu0
    %644 = vmatprep.mubr.bf16.mxu0 %v363
    %645 = vmatmul.mubr.bf16.gmra.mrb[0].mxu0 %v362
    %v646 = vpop.f32.mrb[0].mxu0
    %v647 = vadd.f32 0.0, %v646
    %v648 = vpop.f32.mrb[0].mxu0
    %v649 = vpop.f32.mrb[0].mxu0
    %v650 = vadd.f32 0.0, %v649
    %v651 = vpop.f32.mrb[0].mxu0
    %652 = vdwg.mxu0
    %v653 = vadd.f32 %v140, %v527
    %v654 = vadd.f32 %v141, %v530
    %v655 = vadd.f32 %v142, %v535
    %v656 = vadd.f32 %v143, %v538
    %v657 = vadd.f32 %v144, %v543
    %v658 = vadd.f32 %v145, %v546
    %v659 = vadd.f32 %v146, %v551
    %v660 = vadd.f32 %v147, %v554
    %v661 = vadd.f32 %v148, %v559
    %v662 = vadd.f32 %v149, %v562
    %v663 = vadd.f32 %v150, %v567
    %v664 = vadd.f32 %v151, %v570
    %v665 = vadd.f32 %v152, %v575
    %v666 = vadd.f32 %v153, %v578
    %v667 = vadd.f32 %v154, %v583
    %v668 = vadd.f32 %v155, %v586
    %v669 = vadd.f32 %v156, %v591
    %v670 = vadd.f32 %v157, %v594
    %v671 = vadd.f32 %v158, %v599
    %v672 = vadd.f32 %v159, %v602
    %v673 = vadd.f32 %v160, %v607
    %v674 = vadd.f32 %v161, %v610
    %v675 = vadd.f32 %v162, %v615
    %v676 = vadd.f32 %v163, %v618
    %v677 = vadd.f32 %v164, %v623
    %v678 = vadd.f32 %v165, %v626
    %v679 = vadd.f32 %v166, %v631
    %v680 = vadd.f32 %v167, %v634
    %v681 = vadd.f32 %v168, %v639
    %v682 = vadd.f32 %v169, %v642
    %v683 = vadd.f32 %v170, %v647
    %v684 = vadd.f32 %v171, %v650
    %685 = vst [vmem:[#allocation2] sm:$0xff] %v653
    %686 = vst [vmem:[#allocation2 + $0x8] sm:$0xff] %v654
    %687 = vst [vmem:[#allocation2 + $0x10] sm:$0xff] %v655
    %688 = vst [vmem:[#allocation2 + $0x18] sm:$0xff] %v656
    %689 = vst [vmem:[#allocation2 + $0x20] sm:$0xff] %v657
    %690 = vst [vmem:[#allocation2 + $0x28] sm:$0xff] %v658
    %691 = vst [vmem:[#allocation2 + $0x30] sm:$0xff] %v659
    %692 = vst [vmem:[#allocation2 + $0x38] sm:$0xff] %v660
    %693 = vst [vmem:[#allocation2 + $0x40] sm:$0xff] %v661
    %694 = vst [vmem:[#allocation2 + $0x48] sm:$0xff] %v662
    %695 = vst [vmem:[#allocation2 + $0x50] sm:$0xff] %v663
    %696 = vst [vmem:[#allocation2 + $0x58] sm:$0xff] %v664
    %697 = vst [vmem:[#allocation2 + $0x60] sm:$0xff] %v665
    %698 = vst [vmem:[#allocation2 + $0x68] sm:$0xff] %v666
    %699 = vst [vmem:[#allocation2 + $0x70] sm:$0xff] %v667
    %700 = vst [vmem:[#allocation2 + $0x78] sm:$0xff] %v668
    %701 = vst [vmem:[#allocation2 + $0x80] sm:$0xff] %v669
    %702 = vst [vmem:[#allocation2 + $0x88] sm:$0xff] %v670
    %703 = vst [vmem:[#allocation2 + $0x90] sm:$0xff] %v671
    %704 = vst [vmem:[#allocation2 + $0x98] sm:$0xff] %v672
    %705 = vst [vmem:[#allocation2 + $0xa0] sm:$0xff] %v673
    %706 = vst [vmem:[#allocation2 + $0xa8] sm:$0xff] %v674
    %707 = vst [vmem:[#allocation2 + $0xb0] sm:$0xff] %v675
    %708 = vst [vmem:[#allocation2 + $0xb8] sm:$0xff] %v676
    %709 = vst [vmem:[#allocation2 + $0xc0] sm:$0xff] %v677
    %710 = vst [vmem:[#allocation2 + $0xc8] sm:$0xff] %v678
    %711 = vst [vmem:[#allocation2 + $0xd0] sm:$0xff] %v679
    %712 = vst [vmem:[#allocation2 + $0xd8] sm:$0xff] %v680
    %713 = vst [vmem:[#allocation2 + $0xe0] sm:$0xff] %v681
    %714 = vst [vmem:[#allocation2 + $0xe8] sm:$0xff] %v682
    %715 = vst [vmem:[#allocation2 + $0xf0] sm:$0xff] %v683
    %716 = vst [vmem:[#allocation2 + $0xf8] sm:$0xff] %v684
    // Predicated region
    $region54: #{sage_forward.3} parent=1 // pred_check
      %p717 = pneg %p104
    $region55: #{sage_forward.3} parent=1 // pred_check_branch
      %719 = sbr.rel (%p717) target = $region57
    $region56: #{sage_forward.3} parent=1 // pred_region
      %v720 = vld [vmem:[#allocation2] sm:$0xff]
      %v721 = vld [vmem:[#allocation2 + $0x8] sm:$0xff]
      %v722 = vld [vmem:[#allocation2 + $0x10] sm:$0xff]
      %v723 = vld [vmem:[#allocation2 + $0x18] sm:$0xff]
      %v724 = vld [vmem:[#allocation2 + $0x20] sm:$0xff]
      %v725 = vld [vmem:[#allocation2 + $0x28] sm:$0xff]
      %v726 = vld [vmem:[#allocation2 + $0x30] sm:$0xff]
      %v727 = vld [vmem:[#allocation2 + $0x38] sm:$0xff]
      %v728 = vld [vmem:[#allocation2 + $0x40] sm:$0xff]
      %v729 = vld [vmem:[#allocation2 + $0x48] sm:$0xff]
      %v730 = vld [vmem:[#allocation2 + $0x50] sm:$0xff]
      %v731 = vld [vmem:[#allocation2 + $0x58] sm:$0xff]
      %v732 = vld [vmem:[#allocation2 + $0x60] sm:$0xff]
      %v733 = vld [vmem:[#allocation2 + $0x68] sm:$0xff]
      %v734 = vld [vmem:[#allocation2 + $0x70] sm:$0xff]
      %v735 = vld [vmem:[#allocation2 + $0x78] sm:$0xff]
      %v736 = vld [vmem:[#allocation2 + $0x80] sm:$0xff]
      %v737 = vld [vmem:[#allocation2 + $0x88] sm:$0xff]
      %v738 = vld [vmem:[#allocation2 + $0x90] sm:$0xff]
      %v739 = vld [vmem:[#allocation2 + $0x98] sm:$0xff]
      %v740 = vld [vmem:[#allocation2 + $0xa0] sm:$0xff]
      %v741 = vld [vmem:[#allocation2 + $0xa8] sm:$0xff]
      %v742 = vld [vmem:[#allocation2 + $0xb0] sm:$0xff]
      %v743 = vld [vmem:[#allocation2 + $0xb8] sm:$0xff]
      %v744 = vld [vmem:[#allocation2 + $0xc0] sm:$0xff]
      %v745 = vld [vmem:[#allocation2 + $0xc8] sm:$0xff]
      %v746 = vld [vmem:[#allocation2 + $0xd0] sm:$0xff]
      %v747 = vld [vmem:[#allocation2 + $0xd8] sm:$0xff]
      %v748 = vld [vmem:[#allocation2 + $0xe0] sm:$0xff]
      %v749 = vld [vmem:[#allocation2 + $0xe8] sm:$0xff]
      %v750 = vld [vmem:[#allocation2 + $0xf0] sm:$0xff]
      %v751 = vld [vmem:[#allocation2 + $0xf8] sm:$0xff]
      %v752 = vpack.c.bf16 %v721, %v720
      %v753 = vpack.c.bf16 %v723, %v722
      %v754 = vpack.c.bf16 %v725, %v724
      %v755 = vpack.c.bf16 %v727, %v726
      %v756 = vpack.c.bf16 %v729, %v728
      %v757 = vpack.c.bf16 %v731, %v730
      %v758 = vpack.c.bf16 %v733, %v732
      %v759 = vpack.c.bf16 %v735, %v734
      %v760 = vpack.c.bf16 %v737, %v736
      %v761 = vpack.c.bf16 %v739, %v738
      %v762 = vpack.c.bf16 %v741, %v740
      %v763 = vpack.c.bf16 %v743, %v742
      %v764 = vpack.c.bf16 %v745, %v744
      %v765 = vpack.c.bf16 %v747, %v746
      %v766 = vpack.c.bf16 %v749, %v748
      %v767 = vpack.c.bf16 %v751, %v750
      %v768 = vld [vmem:[#allocation8] sm:$0xf]
      %v769 = vld [vmem:[#allocation8 + $0x4] sm:$0xf]
      %v770 = vld [vmem:[#allocation8 + $0x8] sm:$0xf]
      %v771 = vld [vmem:[#allocation8 + $0xc] sm:$0xf]
      %v772 = vld [vmem:[#allocation8 + $0x10] sm:$0xf]
      %v773 = vld [vmem:[#allocation8 + $0x14] sm:$0xf]
      %v774 = vld [vmem:[#allocation8 + $0x18] sm:$0xf]
      %v775 = vld [vmem:[#allocation8 + $0x1c] sm:$0xf]
      %v776 = vld [vmem:[#allocation8 + $0x20] sm:$0xf]
      %v777 = vld [vmem:[#allocation8 + $0x24] sm:$0xf]
      %v778 = vld [vmem:[#allocation8 + $0x28] sm:$0xf]
      %v779 = vld [vmem:[#allocation8 + $0x2c] sm:$0xf]
      %v780 = vld [vmem:[#allocation8 + $0x30] sm:$0xf]
      %v781 = vld [vmem:[#allocation8 + $0x34] sm:$0xf]
      %v782 = vld [vmem:[#allocation8 + $0x38] sm:$0xf]
      %v783 = vld [vmem:[#allocation8 + $0x3c] sm:$0xf]
      %v784 = vld [vmem:[#allocation7] sm:$0xf]
      %v785 = vld [vmem:[#allocation7 + $0x4] sm:$0xf]
      %v786 = vld [vmem:[#allocation7 + $0x8] sm:$0xf]
      %v787 = vld [vmem:[#allocation7 + $0xc] sm:$0xf]
      %v788 = vld [vmem:[#allocation7 + $0x10] sm:$0xf]
      %v789 = vld [vmem:[#allocation7 + $0x14] sm:$0xf]
      %v790 = vld [vmem:[#allocation7 + $0x18] sm:$0xf]
      %v791 = vld [vmem:[#allocation7 + $0x1c] sm:$0xf]
      %v792 = vld [vmem:[#allocation7 + $0x20] sm:$0xf]
      %v793 = vld [vmem:[#allocation7 + $0x24] sm:$0xf]
      %v794 = vld [vmem:[#allocation7 + $0x28] sm:$0xf]
      %v795 = vld [vmem:[#allocation7 + $0x2c] sm:$0xf]
      %v796 = vld [vmem:[#allocation7 + $0x30] sm:$0xf]
      %v797 = vld [vmem:[#allocation7 + $0x34] sm:$0xf]
      %v798 = vld [vmem:[#allocation7 + $0x38] sm:$0xf]
      %v799 = vld [vmem:[#allocation7 + $0x3c] sm:$0xf]
      %v800 = vld [vmem:[#allocation7 + $0x40] sm:$0xf]
      %v801 = vld [vmem:[#allocation7 + $0x44] sm:$0xf]
      %v802 = vld [vmem:[#allocation7 + $0x48] sm:$0xf]
      %v803 = vld [vmem:[#allocation7 + $0x4c] sm:$0xf]
      %v804 = vld [vmem:[#allocation7 + $0x50] sm:$0xf]
      %v805 = vld [vmem:[#allocation7 + $0x54] sm:$0xf]
      %v806 = vld [vmem:[#allocation7 + $0x58] sm:$0xf]
      %v807 = vld [vmem:[#allocation7 + $0x5c] sm:$0xf]
      %v808 = vld [vmem:[#allocation7 + $0x60] sm:$0xf]
      %v809 = vld [vmem:[#allocation7 + $0x64] sm:$0xf]
      %v810 = vld [vmem:[#allocation7 + $0x68] sm:$0xf]
      %v811 = vld [vmem:[#allocation7 + $0x6c] sm:$0xf]
      %v812 = vld [vmem:[#allocation7 + $0x70] sm:$0xf]
      %v813 = vld [vmem:[#allocation7 + $0x74] sm:$0xf]
      %v814 = vld [vmem:[#allocation7 + $0x78] sm:$0xf]
      %v815 = vld [vmem:[#allocation7 + $0x7c] sm:$0xf]
      %v816 = vld [vmem:[#allocation10] sm:$0xf]
      %v817 = vld [vmem:[#allocation10 + $0x4] sm:$0xf]
      %v818 = vld [vmem:[#allocation10 + $0x8] sm:$0xf]
      %v819 = vld [vmem:[#allocation10 + $0xc] sm:$0xf]
      %v820 = vld [vmem:[#allocation10 + $0x10] sm:$0xf]
      %v821 = vld [vmem:[#allocation10 + $0x14] sm:$0xf]
      %v822 = vld [vmem:[#allocation10 + $0x18] sm:$0xf]
      %v823 = vld [vmem:[#allocation10 + $0x1c] sm:$0xf]
      %v824 = vld [vmem:[#allocation10 + $0x20] sm:$0xf]
      %v825 = vld [vmem:[#allocation10 + $0x24] sm:$0xf]
      %v826 = vld [vmem:[#allocation10 + $0x28] sm:$0xf]
      %v827 = vld [vmem:[#allocation10 + $0x2c] sm:$0xf]
      %v828 = vld [vmem:[#allocation10 + $0x30] sm:$0xf]
      %v829 = vld [vmem:[#allocation10 + $0x34] sm:$0xf]
      %v830 = vld [vmem:[#allocation10 + $0x38] sm:$0xf]
      %v831 = vld [vmem:[#allocation10 + $0x3c] sm:$0xf]
      %v864 = vunpack.c.l.b16 %v784
      %v865 = vunpack.c.l.b16 %v785
      %v866 = vunpack.c.l.b16 %v786
      %v867 = vunpack.c.l.b16 %v787
      %v868 = vunpack.c.l.b16 %v788
      %v869 = vunpack.c.l.b16 %v789
      %v870 = vunpack.c.l.b16 %v790
      %v871 = vunpack.c.l.b16 %v791
      %v872 = vunpack.c.l.b16 %v792
      %v873 = vunpack.c.l.b16 %v793
      %v874 = vunpack.c.l.b16 %v794
      %v875 = vunpack.c.l.b16 %v795
      %v876 = vunpack.c.l.b16 %v796
      %v877 = vunpack.c.l.b16 %v797
      %v878 = vunpack.c.l.b16 %v798
      %v879 = vunpack.c.l.b16 %v799
      %v880 = vunpack.c.l.b16 %v800
      %v881 = vunpack.c.l.b16 %v801
      %v882 = vunpack.c.l.b16 %v802
      %v883 = vunpack.c.l.b16 %v803
      %v884 = vunpack.c.l.b16 %v804
      %v885 = vunpack.c.l.b16 %v805
      %v886 = vunpack.c.l.b16 %v806
      %v887 = vunpack.c.l.b16 %v807
      %v888 = vunpack.c.l.b16 %v808
      %v889 = vunpack.c.l.b16 %v809
      %v890 = vunpack.c.l.b16 %v810
      %v891 = vunpack.c.l.b16 %v811
      %v892 = vunpack.c.l.b16 %v812
      %v893 = vunpack.c.l.b16 %v813
      %v894 = vunpack.c.l.b16 %v814
      %v895 = vunpack.c.l.b16 %v815
      %v896 = vpack.c.b16 %v865, %v864
      %v897 = vpack.c.b16 %v867, %v866
      %v898 = vpack.c.b16 %v869, %v868
      %v899 = vpack.c.b16 %v871, %v870
      %v900 = vpack.c.b16 %v873, %v872
      %v901 = vpack.c.b16 %v875, %v874
      %v902 = vpack.c.b16 %v877, %v876
      %v903 = vpack.c.b16 %v879, %v878
      %v904 = vpack.c.b16 %v881, %v880
      %v905 = vpack.c.b16 %v883, %v882
      %v906 = vpack.c.b16 %v885, %v884
      %v907 = vpack.c.b16 %v887, %v886
      %v908 = vpack.c.b16 %v889, %v888
      %v909 = vpack.c.b16 %v891, %v890
      %v910 = vpack.c.b16 %v893, %v892
      %v911 = vpack.c.b16 %v895, %v894
      %v944 = vunpack.c.l.b16 %v816
      %v945 = vunpack.c.l.b16 %v817
      %v946 = vunpack.c.l.b16 %v818
      %v947 = vunpack.c.l.b16 %v819
      %v948 = vunpack.c.l.b16 %v820
      %v949 = vunpack.c.l.b16 %v821
      %v950 = vunpack.c.l.b16 %v822
      %v951 = vunpack.c.l.b16 %v823
      %v952 = vunpack.c.l.b16 %v824
      %v953 = vunpack.c.l.b16 %v825
      %v954 = vunpack.c.l.b16 %v826
      %v955 = vunpack.c.l.b16 %v827
      %v956 = vunpack.c.l.b16 %v828
      %v957 = vunpack.c.l.b16 %v829
      %v958 = vunpack.c.l.b16 %v830
      %v959 = vunpack.c.l.b16 %v831
      %v960 = vpack.c.b16 %v945, %v944
      %v961 = vpack.c.b16 %v947, %v946
      %v962 = vpack.c.b16 %v949, %v948
      %v963 = vpack.c.b16 %v951, %v950
      %v964 = vpack.c.b16 %v953, %v952
      %v965 = vpack.c.b16 %v955, %v954
      %v966 = vpack.c.b16 %v957, %v956
      %v967 = vpack.c.b16 %v959, %v958
      %976 = vmatprep.subr.bf16.mxu0 0
      %977 = vmatpush1.bf16.msra.mxu0 %v960
      %978 = vmatprep.subr.bf16.mxu0 0
      %979 = vmatpush1.bf16.msra.mxu0 %v961
      %980 = vmatprep.subr.bf16.mxu0 0
      %981 = vmatpush1.bf16.msra.mxu0 %v962
      %982 = vmatprep.subr.bf16.mxu0 0
      %983 = vmatpush1.bf16.msra.mxu0 %v963
      %984 = vmatprep.subr.bf16.mxu0 0
      %985 = vmatpush1.bf16.msra.mxu0 %v964
      %986 = vmatprep.subr.bf16.mxu0 0
      %987 = vmatpush1.bf16.msra.mxu0 %v965
      %988 = vmatprep.subr.bf16.mxu0 0
      %989 = vmatpush1.bf16.msra.mxu0 %v966
      %990 = vmatprep.subr.bf16.mxu0 0
      %991 = vmatpush1.bf16.msra.mxu0 %v967
      %992 = vmatprep.subr.bf16.mxu0 0
      %993 = vmatpush1.bf16.msra.mxu0 0
      %994 = vmatprep.subr.bf16.mxu0 0
      %995 = vmatpush1.bf16.msra.mxu0 0
      %996 = vmatprep.subr.bf16.mxu0 0
      %997 = vmatpush1.bf16.msra.mxu0 0
      %998 = vmatprep.subr.bf16.mxu0 0
      %999 = vmatpush1.bf16.msra.mxu0 0
      %1000 = vmatprep.subr.bf16.mxu0 0
      %1001 = vmatpush1.bf16.msra.mxu0 0
      %1002 = vmatprep.subr.bf16.mxu0 0
      %1003 = vmatpush1.bf16.msra.mxu0 0
      %1004 = vmatprep.subr.bf16.mxu0 0
      %1005 = vmatpush1.bf16.msra.mxu0 0
      %1006 = vmatprep.subr.bf16.mxu0 0
      %1007 = vmatpush1.bf16.msra.mxu0 0
      %1008 = vmatprep.mubr.bf16.mxu0 0
      %1009 = vmatmul.mubr.bf16.gmra.mrb[0].mxu0 %v896
      %v1010 = vpop.f32.mrb[0].mxu0
      %v1011 = vadd.f32 0.0, %v1010
      %v1012 = vpop.f32.mrb[0].mxu0
      %v1013 = vpop.f32.mrb[0].mxu0
      %v1014 = vadd.f32 0.0, %v1013
      %v1015 = vpop.f32.mrb[0].mxu0
      %1016 = vmatprep.mubr.bf16.mxu0 0
      %1017 = vmatmul.mubr.bf16.gmra.mrb[0].mxu0 %v897
      %v1018 = vpop.f32.mrb[0].mxu0
      %v1019 = vadd.f32 0.0, %v1018
      %v1020 = vpop.f32.mrb[0].mxu0
      %v1021 = vpop.f32.mrb[0].mxu0
      %v1022 = vadd.f32 0.0, %v1021
      %v1023 = vpop.f32.mrb[0].mxu0
      %1024 = vmatprep.mubr.bf16.mxu0 0
      %1025 = vmatmul.mubr.bf16.gmra.mrb[0].mxu0 %v898
      %v1026 = vpop.f32.mrb[0].mxu0
      %v1027 = vadd.f32 0.0, %v1026
      %v1028 = vpop.f32.mrb[0].mxu0
      %v1029 = vpop.f32.mrb[0].mxu0
      %v1030 = vadd.f32 0.0, %v1029
      %v1031 = vpop.f32.mrb[0].mxu0
      %1032 = vmatprep.mubr.bf16.mxu0 0
      %1033 = vmatmul.mubr.bf16.gmra.mrb[0].mxu0 %v899
      %v1034 = vpop.f32.mrb[0].mxu0
      %v1035 = vadd.f32 0.0, %v1034
      %v1036 = vpop.f32.mrb[0].mxu0
      %v1037 = vpop.f32.mrb[0].mxu0
      %v1038 = vadd.f32 0.0, %v1037
      %v1039 = vpop.f32.mrb[0].mxu0
      %1040 = vmatprep.mubr.bf16.mxu0 0
      %1041 = vmatmul.mubr.bf16.gmra.mrb[0].mxu0 %v900
      %v1042 = vpop.f32.mrb[0].mxu0
      %v1043 = vadd.f32 0.0, %v1042
      %v1044 = vpop.f32.mrb[0].mxu0
      %v1045 = vpop.f32.mrb[0].mxu0
      %v1046 = vadd.f32 0.0, %v1045
      %v1047 = vpop.f32.mrb[0].mxu0
      %1048 = vmatprep.mubr.bf16.mxu0 0
      %1049 = vmatmul.mubr.bf16.gmra.mrb[0].mxu0 %v901
      %v1050 = vpop.f32.mrb[0].mxu0
      %v1051 = vadd.f32 0.0, %v1050
      %v1052 = vpop.f32.mrb[0].mxu0
      %v1053 = vpop.f32.mrb[0].mxu0
      %v1054 = vadd.f32 0.0, %v1053
      %v1055 = vpop.f32.mrb[0].mxu0
      %1056 = vmatprep.mubr.bf16.mxu0 0
      %1057 = vmatmul.mubr.bf16.gmra.mrb[0].mxu0 %v902
      %v1058 = vpop.f32.mrb[0].mxu0
      %v1059 = vadd.f32 0.0, %v1058
      %v1060 = vpop.f32.mrb[0].mxu0
      %v1061 = vpop.f32.mrb[0].mxu0
      %v1062 = vadd.f32 0.0, %v1061
      %v1063 = vpop.f32.mrb[0].mxu0
      %1064 = vmatprep.mubr.bf16.mxu0 0
      %1065 = vmatmul.mubr.bf16.gmra.mrb[0].mxu0 %v903
      %v1066 = vpop.f32.mrb[0].mxu0
      %v1067 = vadd.f32 0.0, %v1066
      %v1068 = vpop.f32.mrb[0].mxu0
      %v1069 = vpop.f32.mrb[0].mxu0
      %v1070 = vadd.f32 0.0, %v1069
      %v1071 = vpop.f32.mrb[0].mxu0
      %1072 = vmatprep.mubr.bf16.mxu0 0
      %1073 = vmatmul.mubr.bf16.gmra.mrb[0].mxu0 %v904
      %v1074 = vpop.f32.mrb[0].mxu0
      %v1075 = vadd.f32 0.0, %v1074
      %v1076 = vpop.f32.mrb[0].mxu0
      %v1077 = vpop.f32.mrb[0].mxu0
      %v1078 = vadd.f32 0.0, %v1077
      %v1079 = vpop.f32.mrb[0].mxu0
      %1080 = vmatprep.mubr.bf16.mxu0 0
      %1081 = vmatmul.mubr.bf16.gmra.mrb[0].mxu0 %v905
      %v1082 = vpop.f32.mrb[0].mxu0
      %v1083 = vadd.f32 0.0, %v1082
      %v1084 = vpop.f32.mrb[0].mxu0
      %v1085 = vpop.f32.mrb[0].mxu0
      %v1086 = vadd.f32 0.0, %v1085
      %v1087 = vpop.f32.mrb[0].mxu0
      %1088 = vmatprep.mubr.bf16.mxu0 0
      %1089 = vmatmul.mubr.bf16.gmra.mrb[0].mxu0 %v906
      %v1090 = vpop.f32.mrb[0].mxu0
      %v1091 = vadd.f32 0.0, %v1090
      %v1092 = vpop.f32.mrb[0].mxu0
      %v1093 = vpop.f32.mrb[0].mxu0
      %v1094 = vadd.f32 0.0, %v1093
      %v1095 = vpop.f32.mrb[0].mxu0
      %1096 = vmatprep.mubr.bf16.mxu0 0
      %1097 = vmatmul.mubr.bf16.gmra.mrb[0].mxu0 %v907
      %v1098 = vpop.f32.mrb[0].mxu0
      %v1099 = vadd.f32 0.0, %v1098
      %v1100 = vpop.f32.mrb[0].mxu0
      %v1101 = vpop.f32.mrb[0].mxu0
      %v1102 = vadd.f32 0.0, %v1101
      %v1103 = vpop.f32.mrb[0].mxu0
      %1104 = vmatprep.mubr.bf16.mxu0 0
      %1105 = vmatmul.mubr.bf16.gmra.mrb[0].mxu0 %v908
      %v1106 = vpop.f32.mrb[0].mxu0
      %v1107 = vadd.f32 0.0, %v1106
      %v1108 = vpop.f32.mrb[0].mxu0
      %v1109 = vpop.f32.mrb[0].mxu0
      %v1110 = vadd.f32 0.0, %v1109
      %v1111 = vpop.f32.mrb[0].mxu0
      %1112 = vmatprep.mubr.bf16.mxu0 0
      %1113 = vmatmul.mubr.bf16.gmra.mrb[0].mxu0 %v909
      %v1114 = vpop.f32.mrb[0].mxu0
      %v1115 = vadd.f32 0.0, %v1114
      %v1116 = vpop.f32.mrb[0].mxu0
      %v1117 = vpop.f32.mrb[0].mxu0
      %v1118 = vadd.f32 0.0, %v1117
      %v1119 = vpop.f32.mrb[0].mxu0
      %1120 = vmatprep.mubr.bf16.mxu0 0
      %1121 = vmatmul.mubr.bf16.gmra.mrb[0].mxu0 %v910
      %v1122 = vpop.f32.mrb[0].mxu0
      %v1123 = vadd.f32 0.0, %v1122
      %v1124 = vpop.f32.mrb[0].mxu0
      %v1125 = vpop.f32.mrb[0].mxu0
      %v1126 = vadd.f32 0.0, %v1125
      %v1127 = vpop.f32.mrb[0].mxu0
      %1128 = vmatprep.mubr.bf16.mxu0 0
      %1129 = vmatmul.mubr.bf16.gmra.mrb[0].mxu0 %v911
      %v1130 = vpop.f32.mrb[0].mxu0
      %v1131 = vadd.f32 0.0, %v1130
      %v1132 = vpop.f32.mrb[0].mxu0
      %v1133 = vpop.f32.mrb[0].mxu0
      %v1134 = vadd.f32 0.0, %v1133
      %v1135 = vpop.f32.mrb[0].mxu0
      %1136 = vdwg.mxu0
      %v1153 = vunpack.c.l.b16 %v768
      %v1154 = vunpack.c.l.b16 %v769
      %v1155 = vunpack.c.l.b16 %v770
      %v1156 = vunpack.c.l.b16 %v771
      %v1157 = vunpack.c.l.b16 %v772
      %v1158 = vunpack.c.l.b16 %v773
      %v1159 = vunpack.c.l.b16 %v774
      %v1160 = vunpack.c.l.b16 %v775
      %v1161 = vunpack.c.l.b16 %v776
      %v1162 = vunpack.c.l.b16 %v777
      %v1163 = vunpack.c.l.b16 %v778
      %v1164 = vunpack.c.l.b16 %v779
      %v1165 = vunpack.c.l.b16 %v780
      %v1166 = vunpack.c.l.b16 %v781
      %v1167 = vunpack.c.l.b16 %v782
      %v1168 = vunpack.c.l.b16 %v783
      %v1169 = vpack.c.b16 %v1154, %v1153
      %v1170 = vpack.c.b16 %v1156, %v1155
      %v1171 = vpack.c.b16 %v1158, %v1157
      %v1172 = vpack.c.b16 %v1160, %v1159
      %v1173 = vpack.c.b16 %v1162, %v1161
      %v1174 = vpack.c.b16 %v1164, %v1163
      %v1175 = vpack.c.b16 %v1166, %v1165
      %v1176 = vpack.c.b16 %v1168, %v1167
      %1185 = vmatprep.subr.bf16.mxu0 0
      %1186 = vmatpush1.bf16.msra.mxu0 %v1169
      %1187 = vmatprep.subr.bf16.mxu0 0
      %1188 = vmatpush1.bf16.msra.mxu0 %v1170
      %1189 = vmatprep.subr.bf16.mxu0 0
      %1190 = vmatpush1.bf16.msra.mxu0 %v1171
      %1191 = vmatprep.subr.bf16.mxu0 0
      %1192 = vmatpush1.bf16.msra.mxu0 %v1172
      %1193 = vmatprep.subr.bf16.mxu0 0
      %1194 = vmatpush1.bf16.msra.mxu0 %v1173
      %1195 = vmatprep.subr.bf16.mxu0 0
      %1196 = vmatpush1.bf16.msra.mxu0 %v1174
      %1197 = vmatprep.subr.bf16.mxu0 0
      %1198 = vmatpush1.bf16.msra.mxu0 %v1175
      %1199 = vmatprep.subr.bf16.mxu0 0
      %1200 = vmatpush1.bf16.msra.mxu0 %v1176
      %1201 = vmatprep.subr.bf16.mxu0 0
      %1202 = vmatpush1.bf16.msra.mxu0 0
      %1203 = vmatprep.subr.bf16.mxu0 0
      %1204 = vmatpush1.bf16.msra.mxu0 0
      %1205 = vmatprep.subr.bf16.mxu0 0
      %1206 = vmatpush1.bf16.msra.mxu0 0
      %1207 = vmatprep.subr.bf16.mxu0 0
      %1208 = vmatpush1.bf16.msra.mxu0 0
      %1209 = vmatprep.subr.bf16.mxu0 0
      %1210 = vmatpush1.bf16.msra.mxu0 0
      %1211 = vmatprep.subr.bf16.mxu0 0
      %1212 = vmatpush1.bf16.msra.mxu0 0
      %1213 = vmatprep.subr.bf16.mxu0 0
      %1214 = vmatpush1.bf16.msra.mxu0 0
      %1215 = vmatprep.subr.bf16.mxu0 0
      %1216 = vmatpush1.bf16.msra.mxu0 0
      %1217 = vmatprep.mubr.bf16.mxu0 0
      %1218 = vmatmul.mubr.bf16.gmra.mrb[0].mxu0 %v752
      %v1219 = vpop.f32.mrb[0].mxu0
      %v1220 = vadd.f32 %v1011, %v1219
      %v1221 = vpop.f32.mrb[0].mxu0
      %v1222 = vpop.f32.mrb[0].mxu0
      %v1223 = vadd.f32 %v1014, %v1222
      %v1224 = vpop.f32.mrb[0].mxu0
      %1225 = vmatprep.mubr.bf16.mxu0 0
      %1226 = vmatmul.mubr.bf16.gmra.mrb[0].mxu0 %v753
      %v1227 = vpop.f32.mrb[0].mxu0
      %v1228 = vadd.f32 %v1019, %v1227
      %v1229 = vpop.f32.mrb[0].mxu0
      %v1230 = vpop.f32.mrb[0].mxu0
      %v1231 = vadd.f32 %v1022, %v1230
      %v1232 = vpop.f32.mrb[0].mxu0
      %1233 = vmatprep.mubr.bf16.mxu0 0
      %1234 = vmatmul.mubr.bf16.gmra.mrb[0].mxu0 %v754
      %v1235 = vpop.f32.mrb[0].mxu0
      %v1236 = vadd.f32 %v1027, %v1235
      %v1237 = vpop.f32.mrb[0].mxu0
      %v1238 = vpop.f32.mrb[0].mxu0
      %v1239 = vadd.f32 %v1030, %v1238
      %v1240 = vpop.f32.mrb[0].mxu0
      %1241 = vmatprep.mubr.bf16.mxu0 0
      %1242 = vmatmul.mubr.bf16.gmra.mrb[0].mxu0 %v755
      %v1243 = vpop.f32.mrb[0].mxu0
      %v1244 = vadd.f32 %v1035, %v1243
      %v1245 = vpop.f32.mrb[0].mxu0
      %v1246 = vpop.f32.mrb[0].mxu0
      %v1247 = vadd.f32 %v1038, %v1246
      %v1248 = vpop.f32.mrb[0].mxu0
      %1249 = vmatprep.mubr.bf16.mxu0 0
      %1250 = vmatmul.mubr.bf16.gmra.mrb[0].mxu0 %v756
      %v1251 = vpop.f32.mrb[0].mxu0
      %v1252 = vadd.f32 %v1043, %v1251
      %v1253 = vpop.f32.mrb[0].mxu0
      %v1254 = vpop.f32.mrb[0].mxu0
      %v1255 = vadd.f32 %v1046, %v1254
      %v1256 = vpop.f32.mrb[0].mxu0
      %1257 = vmatprep.mubr.bf16.mxu0 0
      %1258 = vmatmul.mubr.bf16.gmra.mrb[0].mxu0 %v757
      %v1259 = vpop.f32.mrb[0].mxu0
      %v1260 = vadd.f32 %v1051, %v1259
      %v1261 = vpop.f32.mrb[0].mxu0
      %v1262 = vpop.f32.mrb[0].mxu0
      %v1263 = vadd.f32 %v1054, %v1262
      %v1264 = vpop.f32.mrb[0].mxu0
      %1265 = vmatprep.mubr.bf16.mxu0 0
      %1266 = vmatmul.mubr.bf16.gmra.mrb[0].mxu0 %v758
      %v1267 = vpop.f32.mrb[0].mxu0
      %v1268 = vadd.f32 %v1059, %v1267
      %v1269 = vpop.f32.mrb[0].mxu0
      %v1270 = vpop.f32.mrb[0].mxu0
      %v1271 = vadd.f32 %v1062, %v1270
      %v1272 = vpop.f32.mrb[0].mxu0
      %1273 = vmatprep.mubr.bf16.mxu0 0
      %1274 = vmatmul.mubr.bf16.gmra.mrb[0].mxu0 %v759
      %v1275 = vpop.f32.mrb[0].mxu0
      %v1276 = vadd.f32 %v1067, %v1275
      %v1277 = vpop.f32.mrb[0].mxu0
      %v1278 = vpop.f32.mrb[0].mxu0
      %v1279 = vadd.f32 %v1070, %v1278
      %v1280 = vpop.f32.mrb[0].mxu0
      %1281 = vmatprep.mubr.bf16.mxu0 0
      %1282 = vmatmul.mubr.bf16.gmra.mrb[0].mxu0 %v760
      %v1283 = vpop.f32.mrb[0].mxu0
      %v1284 = vadd.f32 %v1075, %v1283
      %v1285 = vpop.f32.mrb[0].mxu0
      %v1286 = vpop.f32.mrb[0].mxu0
      %v1287 = vadd.f32 %v1078, %v1286
      %v1288 = vpop.f32.mrb[0].mxu0
      %1289 = vmatprep.mubr.bf16.mxu0 0
      %1290 = vmatmul.mubr.bf16.gmra.mrb[0].mxu0 %v761
      %v1291 = vpop.f32.mrb[0].mxu0
      %v1292 = vadd.f32 %v1083, %v1291
      %v1293 = vpop.f32.mrb[0].mxu0
      %v1294 = vpop.f32.mrb[0].mxu0
      %v1295 = vadd.f32 %v1086, %v1294
      %v1296 = vpop.f32.mrb[0].mxu0
      %1297 = vmatprep.mubr.bf16.mxu0 0
      %1298 = vmatmul.mubr.bf16.gmra.mrb[0].mxu0 %v762
      %v1299 = vpop.f32.mrb[0].mxu0
      %v1300 = vadd.f32 %v1091, %v1299
      %v1301 = vpop.f32.mrb[0].mxu0
      %v1302 = vpop.f32.mrb[0].mxu0
      %v1303 = vadd.f32 %v1094, %v1302
      %v1304 = vpop.f32.mrb[0].mxu0
      %1305 = vmatprep.mubr.bf16.mxu0 0
      %1306 = vmatmul.mubr.bf16.gmra.mrb[0].mxu0 %v763
      %v1307 = vpop.f32.mrb[0].mxu0
      %v1308 = vadd.f32 %v1099, %v1307
      %v1309 = vpop.f32.mrb[0].mxu0
      %v1310 = vpop.f32.mrb[0].mxu0
      %v1311 = vadd.f32 %v1102, %v1310
      %v1312 = vpop.f32.mrb[0].mxu0
      %1313 = vmatprep.mubr.bf16.mxu0 0
      %1314 = vmatmul.mubr.bf16.gmra.mrb[0].mxu0 %v764
      %v1315 = vpop.f32.mrb[0].mxu0
      %v1316 = vadd.f32 %v1107, %v1315
      %v1317 = vpop.f32.mrb[0].mxu0
      %v1318 = vpop.f32.mrb[0].mxu0
      %v1319 = vadd.f32 %v1110, %v1318
      %v1320 = vpop.f32.mrb[0].mxu0
      %1321 = vmatprep.mubr.bf16.mxu0 0
      %1322 = vmatmul.mubr.bf16.gmra.mrb[0].mxu0 %v765
      %v1323 = vpop.f32.mrb[0].mxu0
      %v1324 = vadd.f32 %v1115, %v1323
      %v1325 = vpop.f32.mrb[0].mxu0
      %v1326 = vpop.f32.mrb[0].mxu0
      %v1327 = vadd.f32 %v1118, %v1326
      %v1328 = vpop.f32.mrb[0].mxu0
      %1329 = vmatprep.mubr.bf16.mxu0 0
      %1330 = vmatmul.mubr.bf16.gmra.mrb[0].mxu0 %v766
      %v1331 = vpop.f32.mrb[0].mxu0
      %v1332 = vadd.f32 %v1123, %v1331
      %v1333 = vpop.f32.mrb[0].mxu0
      %v1334 = vpop.f32.mrb[0].mxu0
      %v1335 = vadd.f32 %v1126, %v1334
      %v1336 = vpop.f32.mrb[0].mxu0
      %1337 = vmatprep.mubr.bf16.mxu0 0
      %1338 = vmatmul.mubr.bf16.gmra.mrb[0].mxu0 %v767
      %v1339 = vpop.f32.mrb[0].mxu0
      %v1340 = vadd.f32 %v1131, %v1339
      %v1341 = vpop.f32.mrb[0].mxu0
      %v1342 = vpop.f32.mrb[0].mxu0
      %v1343 = vadd.f32 %v1134, %v1342
      %v1344 = vpop.f32.mrb[0].mxu0
      %1345 = vdwg.mxu0
      %v1346 = vld [vmem:[#allocation11] sm:$0x1]
      %v1348 = vlaneseq
      %v1349 = vshrl.u32 %v1348, 7
      %v1350 = vsub.s32 0, %v1349
      %v1351 = vrot.slane %v1346, %v1350
      %v1353 = vadd.f32 %v1220, %v1351
      %v1354 = vadd.f32 %v1223, %v1351
      %v1355 = vadd.f32 %v1228, %v1351
      %v1356 = vadd.f32 %v1231, %v1351
      %v1357 = vadd.f32 %v1236, %v1351
      %v1358 = vadd.f32 %v1239, %v1351
      %v1359 = vadd.f32 %v1244, %v1351
      %v1360 = vadd.f32 %v1247, %v1351
      %v1361 = vadd.f32 %v1252, %v1351
      %v1362 = vadd.f32 %v1255, %v1351
      %v1363 = vadd.f32 %v1260, %v1351
      %v1364 = vadd.f32 %v1263, %v1351
      %v1365 = vadd.f32 %v1268, %v1351
      %v1366 = vadd.f32 %v1271, %v1351
      %v1367 = vadd.f32 %v1276, %v1351
      %v1368 = vadd.f32 %v1279, %v1351
      %v1369 = vadd.f32 %v1284, %v1351
      %v1370 = vadd.f32 %v1287, %v1351
      %v1371 = vadd.f32 %v1292, %v1351
      %v1372 = vadd.f32 %v1295, %v1351
      %v1373 = vadd.f32 %v1300, %v1351
      %v1374 = vadd.f32 %v1303, %v1351
      %v1375 = vadd.f32 %v1308, %v1351
      %v1376 = vadd.f32 %v1311, %v1351
      %v1377 = vadd.f32 %v1316, %v1351
      %v1378 = vadd.f32 %v1319, %v1351
      %v1379 = vadd.f32 %v1324, %v1351
      %v1380 = vadd.f32 %v1327, %v1351
      %v1381 = vadd.f32 %v1332, %v1351
      %v1382 = vadd.f32 %v1335, %v1351
      %v1383 = vadd.f32 %v1340, %v1351
      %v1384 = vadd.f32 %v1343, %v1351
      %v1385 = vmax.f32 %v1353, 0.0
      %v1386 = vmax.f32 %v1354, 0.0
      %v1387 = vmax.f32 %v1355, 0.0
      %v1388 = vmax.f32 %v1356, 0.0
      %v1389 = vmax.f32 %v1357, 0.0
      %v1390 = vmax.f32 %v1358, 0.0
      %v1391 = vmax.f32 %v1359, 0.0
      %v1392 = vmax.f32 %v1360, 0.0
      %v1393 = vmax.f32 %v1361, 0.0
      %v1394 = vmax.f32 %v1362, 0.0
      %v1395 = vmax.f32 %v1363, 0.0
      %v1396 = vmax.f32 %v1364, 0.0
      %v1397 = vmax.f32 %v1365, 0.0
      %v1398 = vmax.f32 %v1366, 0.0
      %v1399 = vmax.f32 %v1367, 0.0
      %v1400 = vmax.f32 %v1368, 0.0
      %v1401 = vmax.f32 %v1369, 0.0
      %v1402 = vmax.f32 %v1370, 0.0
      %v1403 = vmax.f32 %v1371, 0.0
      %v1404 = vmax.f32 %v1372, 0.0
      %v1405 = vmax.f32 %v1373, 0.0
      %v1406 = vmax.f32 %v1374, 0.0
      %v1407 = vmax.f32 %v1375, 0.0
      %v1408 = vmax.f32 %v1376, 0.0
      %v1409 = vmax.f32 %v1377, 0.0
      %v1410 = vmax.f32 %v1378, 0.0
      %v1411 = vmax.f32 %v1379, 0.0
      %v1412 = vmax.f32 %v1380, 0.0
      %v1413 = vmax.f32 %v1381, 0.0
      %v1414 = vmax.f32 %v1382, 0.0
      %v1415 = vmax.f32 %v1383, 0.0
      %v1416 = vmax.f32 %v1384, 0.0
      %v1417 = vpack.c.bf16 %v1386, %v1385
      %v1418 = vpack.c.bf16 %v1388, %v1387
      %v1419 = vpack.c.bf16 %v1390, %v1389
      %v1420 = vpack.c.bf16 %v1392, %v1391
      %v1421 = vpack.c.bf16 %v1394, %v1393
      %v1422 = vpack.c.bf16 %v1396, %v1395
      %v1423 = vpack.c.bf16 %v1398, %v1397
      %v1424 = vpack.c.bf16 %v1400, %v1399
      %v1425 = vpack.c.bf16 %v1402, %v1401
      %v1426 = vpack.c.bf16 %v1404, %v1403
      %v1427 = vpack.c.bf16 %v1406, %v1405
      %v1428 = vpack.c.bf16 %v1408, %v1407
      %v1429 = vpack.c.bf16 %v1410, %v1409
      %v1430 = vpack.c.bf16 %v1412, %v1411
      %v1431 = vpack.c.bf16 %v1414, %v1413
      %v1432 = vpack.c.bf16 %v1416, %v1415
      %v1449 = vunpack.c.l.b16 %v1417
      %v1450 = vunpack.c.h.b16 %v1417
      %v1451 = vunpack.c.l.b16 %v1418
      %v1452 = vunpack.c.h.b16 %v1418
      %v1453 = vunpack.c.l.b16 %v1419
      %v1454 = vunpack.c.h.b16 %v1419
      %v1455 = vunpack.c.l.b16 %v1420
      %v1456 = vunpack.c.h.b16 %v1420
      %v1457 = vunpack.c.l.b16 %v1421
      %v1458 = vunpack.c.h.b16 %v1421
      %v1459 = vunpack.c.l.b16 %v1422
      %v1460 = vunpack.c.h.b16 %v1422
      %v1461 = vunpack.c.l.b16 %v1423
      %v1462 = vunpack.c.h.b16 %v1423
      %v1463 = vunpack.c.l.b16 %v1424
      %v1464 = vunpack.c.h.b16 %v1424
      %v1465 = vunpack.c.l.b16 %v1425
      %v1466 = vunpack.c.h.b16 %v1425
      %v1467 = vunpack.c.l.b16 %v1426
      %v1468 = vunpack.c.h.b16 %v1426
      %v1469 = vunpack.c.l.b16 %v1427
      %v1470 = vunpack.c.h.b16 %v1427
      %v1471 = vunpack.c.l.b16 %v1428
      %v1472 = vunpack.c.h.b16 %v1428
      %v1473 = vunpack.c.l.b16 %v1429
      %v1474 = vunpack.c.h.b16 %v1429
      %v1475 = vunpack.c.l.b16 %v1430
      %v1476 = vunpack.c.h.b16 %v1430
      %v1477 = vunpack.c.l.b16 %v1431
      %v1478 = vunpack.c.h.b16 %v1431
      %v1479 = vunpack.c.l.b16 %v1432
      %v1480 = vunpack.c.h.b16 %v1432
      %v1481 = vpack.c.b16 %v1449, %v1449
      %v1482 = vpack.c.b16 %v1450, %v1450
      %v1483 = vpack.c.b16 %v1451, %v1451
      %v1484 = vpack.c.b16 %v1452, %v1452
      %v1485 = vpack.c.b16 %v1453, %v1453
      %v1486 = vpack.c.b16 %v1454, %v1454
      %v1487 = vpack.c.b16 %v1455, %v1455
      %v1488 = vpack.c.b16 %v1456, %v1456
      %v1489 = vpack.c.b16 %v1457, %v1457
      %v1490 = vpack.c.b16 %v1458, %v1458
      %v1491 = vpack.c.b16 %v1459, %v1459
      %v1492 = vpack.c.b16 %v1460, %v1460
      %v1493 = vpack.c.b16 %v1461, %v1461
      %v1494 = vpack.c.b16 %v1462, %v1462
      %v1495 = vpack.c.b16 %v1463, %v1463
      %v1496 = vpack.c.b16 %v1464, %v1464
      %v1497 = vpack.c.b16 %v1465, %v1465
      %v1498 = vpack.c.b16 %v1466, %v1466
      %v1499 = vpack.c.b16 %v1467, %v1467
      %v1500 = vpack.c.b16 %v1468, %v1468
      %v1501 = vpack.c.b16 %v1469, %v1469
      %v1502 = vpack.c.b16 %v1470, %v1470
      %v1503 = vpack.c.b16 %v1471, %v1471
      %v1504 = vpack.c.b16 %v1472, %v1472
      %v1505 = vpack.c.b16 %v1473, %v1473
      %v1506 = vpack.c.b16 %v1474, %v1474
      %v1507 = vpack.c.b16 %v1475, %v1475
      %v1508 = vpack.c.b16 %v1476, %v1476
      %v1509 = vpack.c.b16 %v1477, %v1477
      %v1510 = vpack.c.b16 %v1478, %v1478
      %v1511 = vpack.c.b16 %v1479, %v1479
      %v1512 = vpack.c.b16 %v1480, %v1480
      %1545 = vst [vmem:[%s6] sm:$0xf] %v1481
      %1546 = vst [vmem:[%s6 + $0x4] sm:$0xf] %v1482
      %1547 = vst [vmem:[%s6 + $0x8] sm:$0xf] %v1483
      %1548 = vst [vmem:[%s6 + $0xc] sm:$0xf] %v1484
      %1549 = vst [vmem:[%s6 + $0x10] sm:$0xf] %v1485
      %1550 = vst [vmem:[%s6 + $0x14] sm:$0xf] %v1486
      %1551 = vst [vmem:[%s6 + $0x18] sm:$0xf] %v1487
      %1552 = vst [vmem:[%s6 + $0x1c] sm:$0xf] %v1488
      %1553 = vst [vmem:[%s6 + $0x20] sm:$0xf] %v1489
      %1554 = vst [vmem:[%s6 + $0x24] sm:$0xf] %v1490
      %1555 = vst [vmem:[%s6 + $0x28] sm:$0xf] %v1491
      %1556 = vst [vmem:[%s6 + $0x2c] sm:$0xf] %v1492
      %1557 = vst [vmem:[%s6 + $0x30] sm:$0xf] %v1493
      %1558 = vst [vmem:[%s6 + $0x34] sm:$0xf] %v1494
      %1559 = vst [vmem:[%s6 + $0x38] sm:$0xf] %v1495
      %1560 = vst [vmem:[%s6 + $0x3c] sm:$0xf] %v1496
      %1561 = vst [vmem:[%s6 + $0x40] sm:$0xf] %v1497
      %1562 = vst [vmem:[%s6 + $0x44] sm:$0xf] %v1498
      %1563 = vst [vmem:[%s6 + $0x48] sm:$0xf] %v1499
      %1564 = vst [vmem:[%s6 + $0x4c] sm:$0xf] %v1500
      %1565 = vst [vmem:[%s6 + $0x50] sm:$0xf] %v1501
      %1566 = vst [vmem:[%s6 + $0x54] sm:$0xf] %v1502
      %1567 = vst [vmem:[%s6 + $0x58] sm:$0xf] %v1503
      %1568 = vst [vmem:[%s6 + $0x5c] sm:$0xf] %v1504
      %1569 = vst [vmem:[%s6 + $0x60] sm:$0xf] %v1505
      %1570 = vst [vmem:[%s6 + $0x64] sm:$0xf] %v1506
      %1571 = vst [vmem:[%s6 + $0x68] sm:$0xf] %v1507
      %1572 = vst [vmem:[%s6 + $0x6c] sm:$0xf] %v1508
      %1573 = vst [vmem:[%s6 + $0x70] sm:$0xf] %v1509
      %1574 = vst [vmem:[%s6 + $0x74] sm:$0xf] %v1510
      %1575 = vst [vmem:[%s6 + $0x78] sm:$0xf] %v1511
      %1576 = vst [vmem:[%s6 + $0x7c] sm:$0xf] %v1512
    $region57: #{sage_forward.3} parent=1 // pred_fallthru
      _
    // Predicated region
    $region58: #{sage_forward.3} parent=1 // pred_check
      _
    $region59: #{sage_forward.3} parent=1 // pred_check_branch
      %1578 = sbr.rel (0) target = $region61
    $region60: #{sage_forward.3} parent=1 // pred_region
      _
    $region61: #{sage_forward.3} parent=1 // pred_fallthru
      _
    // Predicated region
    $region62: #{sage_forward.3} parent=1 // pred_check
      _
    $region63: #{sage_forward.3} parent=1 // pred_check_branch
      %1580 = sbr.rel (0) target = $region65
    $region64: #{sage_forward.3} parent=1 // pred_region
      _
    $region65: #{sage_forward.3} parent=1 // pred_fallthru
      _
    %1581 = vsyncpa [#allocation4], 1
    %1582 = vsyncpa [#allocation6], 1
    %1583 = vsyncpa [#allocation9], 1
    %1584 = vsyncpa [#allocation12], 1

</llo_original>
